<compile_context>
chip_gen: v7x
topology: tpu7x:2x2x1
jax: 0.10.0
libtpu: 0.0.40
codegen_flags: <defaults>
</compile_context>

<pallas_src>
import numpy as np
import jax
import jax.numpy as jnp
from jax.experimental import pallas as pl
from jax.experimental.pallas import tpu as pltpu

# ---------------- config (small, BEiT-shaped) ----------------
IMG = 32
PATCH = 16
CHANS = 3
HIDDEN = 32
HEADS = 2
HEAD_DIM = HIDDEN // HEADS          # 16
LAYERS = 2
INTER = 4 * HIDDEN                  # 128
NUM_LABELS = 27
HEAD_PAD = 128                      # lane-padded classifier width (sliced back to 27)
LN_EPS = 1e-12
GRID_HW = IMG // PATCH              # 2
NUM_PATCHES = GRID_HW * GRID_HW     # 4
TOKENS = NUM_PATCHES + 1            # 5 (cls + patches)
PATCH_DIM = CHANS * PATCH * PATCH   # 768

# vec32 row layout: all width-HIDDEN f32 vector params coalesced into one (NVEC32, HIDDEN) operand
VEC_TOK = 0                          # rows [0, TOKENS): token bias (row0 = cls token, rows 1.. = patch_b)
VEC_LAYER = TOKENS                   # 8 rows per layer follow
(V_LN1_G, V_LN1_B, V_PROJ_B, V_G1, V_LN2_G, V_LN2_B, V_FC2_B, V_G2) = range(8)
VEC_POOL_G = VEC_LAYER + 8 * LAYERS
VEC_POOL_B = VEC_POOL_G + 1
NVEC32 = VEC_POOL_B + 1              # 23


# ---------------- fused Pallas kernel: one sample (T tokens) per grid step ----------------
def _fused_forward_kernel(xp_ref, attn_bias_ref, patch_w_ref, qkv_w_ref, q_b_ref,
                          proj_w_ref, fc1_w_ref, fc2_w_ref, head_w_ref,
                          vec32_ref, vec128_ref, logits_ref):
    def layer_norm(t, g, b):
        mu = jnp.mean(t, axis=-1, keepdims=True)
        var = jnp.mean((t - mu) * (t - mu), axis=-1, keepdims=True)
        return (t - mu) * jax.lax.rsqrt(var + LN_EPS) * g + b

    # ---- patch embedding: conv(k=16, s=16) == patchify + matmul.
    # Row 0 of xp is all-zero (cls slot); the token-bias rows add the cls token / patch bias.
    xp = xp_ref[0].astype(jnp.bfloat16)                                    # (T, PATCH_DIM)
    h = jnp.dot(xp, patch_w_ref[...], preferred_element_type=jnp.float32)
    h = h + vec32_ref[VEC_TOK:VEC_TOK + TOKENS, :]                         # (T, D) f32

    for l in range(LAYERS):
        base = VEC_LAYER + 8 * l
        ln1_g = vec32_ref[base + V_LN1_G]
        ln1_b = vec32_ref[base + V_LN1_B]
        proj_b = vec32_ref[base + V_PROJ_B]          # includes folded value bias
        g1 = vec32_ref[base + V_G1]
        ln2_g = vec32_ref[base + V_LN2_G]
        ln2_b = vec32_ref[base + V_LN2_B]
        fc2_b = vec32_ref[base + V_FC2_B]
        g2 = vec32_ref[base + V_G2]

        # ---- attention (per-head packed projections; q scale pre-folded, key has no bias) ----
        n = layer_norm(h, ln1_g, ln1_b)
        nb = n.astype(jnp.bfloat16)
        a = jnp.zeros((TOKENS, HIDDEN), jnp.float32)
        for hh in range(HEADS):
            q = jnp.dot(nb, qkv_w_ref[l, 0, hh],
                        preferred_element_type=jnp.float32) + q_b_ref[l, hh]
            k = jnp.dot(nb, qkv_w_ref[l, 1, hh], preferred_element_type=jnp.float32)
            v = jnp.dot(nb, qkv_w_ref[l, 2, hh], preferred_element_type=jnp.float32)
            # contract head_dim directly (no transpose relayout)
            s = jax.lax.dot_general(q, k, (((1,), (1,)), ((), ())),
                                    preferred_element_type=jnp.float32)
            s = s + attn_bias_ref[l, hh]                                   # rel-pos bias (T, T)
            m = jnp.max(s, axis=-1, keepdims=True)
            p = jnp.exp(s - m)
            p = p * pl.reciprocal(jnp.sum(p, axis=-1, keepdims=True), approx=True)
            o = jnp.dot(p.astype(jnp.bfloat16), v.astype(jnp.bfloat16),
                        preferred_element_type=jnp.float32)                # (T, HEAD_DIM)
            # accumulate per-head output projection (no lane concat of head outputs)
            a = a + jnp.dot(o.astype(jnp.bfloat16), proj_w_ref[l, hh],
                            preferred_element_type=jnp.float32)
        a = a + proj_b
        h = h + g1 * a                                                     # layer-scale residual

        # ---- MLP block ----
        n = layer_norm(h, ln2_g, ln2_b)
        m1 = jnp.dot(n.astype(jnp.bfloat16), fc1_w_ref[l],
                     preferred_element_type=jnp.float32) + vec128_ref[l]
        # TODO(synk): BEiT uses exact erf-GELU; tanh approximation used here for TPU lowering.
        m1 = jax.nn.gelu(m1, approximate=True)
        m2 = jnp.dot(m1.astype(jnp.bfloat16), fc2_w_ref[l],
                     preferred_element_type=jnp.float32) + fc2_b
        h = h + g2 * m2                                                    # layer-scale residual

    # ---- BEiT pooler: mean over patch tokens (iota mask, no unaligned slice), LN, classifier ----
    tok = jax.lax.broadcasted_iota(jnp.int32, (TOKENS, 1), 0)
    pool_w = jnp.where(tok == 0, 0.0, 1.0 / NUM_PATCHES)                   # 0 for cls row
    pooled = jnp.sum(h * pool_w, axis=0, keepdims=True)                    # (1, D)
    pooled = layer_norm(pooled, vec32_ref[VEC_POOL_G], vec32_ref[VEC_POOL_B])
    logits = jnp.dot(pooled.astype(jnp.bfloat16), head_w_ref[...],
                     preferred_element_type=jnp.float32) + vec128_ref[LAYERS]
    logits_ref[0] = logits.astype(logits_ref.dtype)                        # (1, HEAD_PAD)


# ---------------- relative position bias index (BEiT-style) ----------------
def _relative_position_index(window_size):
    wh, ww = window_size
    num_patches = wh * ww
    num_rel = (2 * wh - 1) * (2 * ww - 1) + 3
    coords = np.stack(np.meshgrid(np.arange(wh), np.arange(ww), indexing="ij"))
    coords_flat = coords.reshape(2, -1)
    rel = coords_flat[:, :, None] - coords_flat[:, None, :]
    rel = rel.transpose(1, 2, 0).astype(np.int64)
    rel[:, :, 0] += wh - 1
    rel[:, :, 1] += ww - 1
    rel[:, :, 0] *= 2 * ww - 1
    idx = np.zeros((num_patches + 1, num_patches + 1), dtype=np.int32)
    idx[1:, 1:] = rel.sum(-1)
    idx[0, 0:] = num_rel - 3
    idx[0:, 0] = num_rel - 2
    idx[0, 0] = num_rel - 1
    return jnp.asarray(idx), num_rel


# ---------------- parameters (deterministic synthetic init) ----------------
def init_params(key, num_rel_distance):
    keys = iter(jax.random.split(key, 8 + 16 * LAYERS))

    def nrm(shape):
        return 0.02 * jax.random.normal(next(keys), shape, jnp.float32)

    params = {
        "patch_w": nrm((PATCH_DIM, HIDDEN)),
        "patch_b": nrm((HIDDEN,)),
        "cls": nrm((1, 1, HIDDEN)),
        "pool_ln_g": jnp.ones((HIDDEN,), jnp.float32),
        "pool_ln_b": jnp.zeros((HIDDEN,), jnp.float32),
        "cls_w": nrm((HIDDEN, NUM_LABELS)),
        "cls_b": jnp.zeros((NUM_LABELS,), jnp.float32),
        "layers": [],
    }
    for _ in range(LAYERS):
        params["layers"].append({
            "ln1_g": jnp.ones((HIDDEN,), jnp.float32),
            "ln1_b": jnp.zeros((HIDDEN,), jnp.float32),
            "q_w": nrm((HIDDEN, HIDDEN)), "q_b": nrm((HIDDEN,)),
            "k_w": nrm((HIDDEN, HIDDEN)),                      # BEiT: key has no bias
            "v_w": nrm((HIDDEN, HIDDEN)), "v_b": nrm((HIDDEN,)),
            "rel_bias_table": nrm((num_rel_distance, HEADS)),
            "proj_w": nrm((HIDDEN, HIDDEN)), "proj_b": nrm((HIDDEN,)),
            "gamma_1": 0.1 * jnp.ones((HIDDEN,), jnp.float32),
            "ln2_g": jnp.ones((HIDDEN,), jnp.float32),
            "ln2_b": jnp.zeros((HIDDEN,), jnp.float32),
            "fc1_w": nrm((HIDDEN, INTER)), "fc1_b": nrm((INTER,)),
            "fc2_w": nrm((INTER, HIDDEN)), "fc2_b": nrm((HIDDEN,)),
            "gamma_2": 0.1 * jnp.ones((HIDDEN,), jnp.float32),
        })
    return params


# ---------------- pack params for the fused kernel (once, outside the forward) ----------------
def pack_params(params, rel_idx):
    layers = params["layers"]
    scale = float(HEAD_DIM) ** -0.5

    qkv_l, qb_l, proj_l, bias_l, vrows = [], [], [], [], []

    # token bias: row 0 = cls token, rows 1..NP = patch-embedding bias
    vrows.append(params["cls"].reshape(1, HIDDEN))
    vrows.append(jnp.tile(params["patch_b"][None, :], (NUM_PATCHES, 1)))

    for lyr in layers:
        # per-head q/k/v weights (q pre-scaled by 1/sqrt(head_dim))
        per_kind = []
        for w, sc in ((lyr["q_w"], scale), (lyr["k_w"], 1.0), (lyr["v_w"], 1.0)):
            per_kind.append(jnp.stack(
                [w[:, h * HEAD_DIM:(h + 1) * HEAD_DIM] * sc for h in range(HEADS)]))
        qkv_l.append(jnp.stack(per_kind))                                  # (3, H, D, HD)
        qb_l.append(jnp.stack(
            [lyr["q_b"][None, h * HEAD_DIM:(h + 1) * HEAD_DIM] * scale
             for h in range(HEADS)]))                                      # (H, 1, HD)
        proj_l.append(jnp.stack(
            [lyr["proj_w"][h * HEAD_DIM:(h + 1) * HEAD_DIM, :]
             for h in range(HEADS)]))                                      # (H, HD, D)

        # relative-position bias gather (per sample, (H, T, T) — no batch mask needed)
        rb = lyr["rel_bias_table"][rel_idx.reshape(-1)]
        bias_l.append(rb.reshape(TOKENS, TOKENS, HEADS).transpose(2, 0, 1))

        # fold value bias into proj_b (softmax rows sum to 1): (o + v_b) @ W_p + b_p
        proj_b_folded = lyr["proj_b"] + lyr["v_b"] @ lyr["proj_w"]
        vrows.append(jnp.stack([lyr["ln1_g"], lyr["ln1_b"], proj_b_folded, lyr["gamma_1"],
                                lyr["ln2_g"], lyr["ln2_b"], lyr["fc2_b"], lyr["gamma_2"]]))

    vrows.append(jnp.stack([params["pool_ln_g"], params["pool_ln_b"]]))

    # lane-padded classifier (padded columns zero; wrapper slices back to NUM_LABELS)
    head_w = jnp.zeros((HIDDEN, HEAD_PAD), jnp.float32).at[:, :NUM_LABELS].set(params["cls_w"])
    head_b = jnp.zeros((1, HEAD_PAD), jnp.float32).at[0, :NUM_LABELS].set(params["cls_b"])
    vec128 = jnp.concatenate([jnp.stack([l["fc1_b"] for l in layers]), head_b], axis=0)

    return {
        "attn_bias": jnp.stack(bias_l),                                    # (L, H, T, T) f32
        "patch_w": params["patch_w"].astype(jnp.bfloat16),                 # (768, D)
        "qkv_w": jnp.stack(qkv_l).astype(jnp.bfloat16),                    # (L, 3, H, D, HD)
        "q_b": jnp.stack(qb_l),                                            # (L, H, 1, HD) f32
        "proj_w": jnp.stack(proj_l).astype(jnp.bfloat16),                  # (L, H, HD, D)
        "fc1_w": jnp.stack([l["fc1_w"] for l in layers]).astype(jnp.bfloat16),  # (L, D, INTER)
        "fc2_w": jnp.stack([l["fc2_w"] for l in layers]).astype(jnp.bfloat16),  # (L, INTER, D)
        "head_w": head_w.astype(jnp.bfloat16),                             # (D, HEAD_PAD)
        "vec32": jnp.concatenate(vrows, axis=0),                           # (NVEC32, D) f32
        "vec128": vec128,                                                  # (L+1, HEAD_PAD) f32
    }


# ---------------- forward pass (OtherModel.forward -> logits) ----------------
def other_model_forward(packed, pixel_values):
    B = pixel_values.shape[0]

    # patchify glue: conv(k=s=16) -> per-patch (c, ph, pw) vectors; row 0 is a zero row (cls slot)
    x = pixel_values.reshape(B, CHANS, GRID_HW, PATCH, GRID_HW, PATCH)
    x = x.transpose(0, 2, 4, 1, 3, 5).reshape(B, NUM_PATCHES, PATCH_DIM)
    xp = jnp.pad(x, ((0, 0), (1, 0), (0, 0)))                              # (B, T, PATCH_DIM)

    def full(shape):
        return pl.BlockSpec(shape, lambda b, _s=shape: (0,) * len(_s))

    in_specs = [
        pl.BlockSpec((1, TOKENS, PATCH_DIM), lambda b: (b, 0, 0)),          # per-sample tokens
        full((LAYERS, HEADS, TOKENS, TOKENS)),                              # attn_bias
        full((PATCH_DIM, HIDDEN)),                                          # patch_w
        full((LAYERS, 3, HEADS, HIDDEN, HEAD_DIM)),                         # qkv_w
        full((LAYERS, HEADS, 1, HEAD_DIM)),                                 # q_b
        full((LAYERS, HEADS, HEAD_DIM, HIDDEN)),                            # proj_w
        full((LAYERS, HIDDEN, INTER)),                                      # fc1_w
        full((LAYERS, INTER, HIDDEN)),                                      # fc2_w
        full((HIDDEN, HEAD_PAD)),                                           # head_w
        full((NVEC32, HIDDEN)),                                             # vec32
        full((LAYERS + 1, HEAD_PAD)),                                       # vec128
    ]

    logits_pad = pl.pallas_call(
        _fused_forward_kernel,
        grid=(B,),
        out_shape=jax.ShapeDtypeStruct((B, 1, HEAD_PAD), jnp.float32),
        in_specs=in_specs,
        out_specs=pl.BlockSpec((1, 1, HEAD_PAD), lambda b: (b, 0, 0)),
        compiler_params=pltpu.CompilerParams(dimension_semantics=("parallel",)),
    )(xp, packed["attn_bias"], packed["patch_w"], packed["qkv_w"], packed["q_b"],
      packed["proj_w"], packed["fc1_w"], packed["fc2_w"], packed["head_w"],
      packed["vec32"], packed["vec128"])

    return logits_pad[:, 0, :NUM_LABELS]


# ---------------- main ----------------
if __name__ == "__main__":
    key = jax.random.PRNGKey(0)
    k_params, k_input = jax.random.split(key)

    rel_idx, num_rel = _relative_position_index((GRID_HW, GRID_HW))
    params = init_params(k_params, num_rel)
    packed = pack_params(params, rel_idx)
    assert packed["vec32"].shape == (NVEC32, HIDDEN)

    B = 2
    pixel_values = jax.random.normal(k_input, (B, CHANS, IMG, IMG), jnp.float32)

    fwd = jax.jit(other_model_forward)
    logits = jax.block_until_ready(fwd(packed, pixel_values))

    assert logits.shape == (B, NUM_LABELS)
    assert bool(jnp.all(jnp.isfinite(logits)))
    print("KERNEL_OK")
</pallas_src>

<mosaic_0001>
module attributes {stable_mosaic.version = 11 : i64} {
  func.func @_fused_forward_kernel(%arg0: i32, %arg1: memref<1x5x768xf32, #tpu.memory_space<vmem>>, %arg2: memref<2x2x5x5xf32, #tpu.memory_space<vmem>>, %arg3: memref<768x32xbf16, #tpu.memory_space<vmem>>, %arg4: memref<2x3x2x32x16xbf16, #tpu.memory_space<vmem>>, %arg5: memref<2x2x1x16xf32, #tpu.memory_space<vmem>>, %arg6: memref<2x2x16x32xbf16, #tpu.memory_space<vmem>>, %arg7: memref<2x32x128xbf16, #tpu.memory_space<vmem>>, %arg8: memref<2x128x32xbf16, #tpu.memory_space<vmem>>, %arg9: memref<32x128xbf16, #tpu.memory_space<vmem>>, %arg10: memref<23x32xf32, #tpu.memory_space<vmem>>, %arg11: memref<3x128xf32, #tpu.memory_space<vmem>>, %arg12: memref<1x1x128xf32, #tpu.memory_space<vmem>>) attributes {dimension_semantics = [#tpu.dimension_semantics<parallel>], iteration_bounds = array<i64: 2>, scalar_prefetch = 0 : i64, scratch_operands = 0 : i64, tpu.core_type = #tpu.core_type<tc>, window_params = [{transform_indices = @transform_0, window_bounds = array<i64: 1, 5, 768>}, {pipeline_mode = #tpu.pipeline_mode<synchronous>, transform_indices = @transform_1, window_bounds = array<i64: 2, 2, 5, 5>}, {pipeline_mode = #tpu.pipeline_mode<synchronous>, transform_indices = @transform_2, window_bounds = array<i64: 768, 32>}, {pipeline_mode = #tpu.pipeline_mode<synchronous>, transform_indices = @transform_3, window_bounds = array<i64: 2, 3, 2, 32, 16>}, {pipeline_mode = #tpu.pipeline_mode<synchronous>, transform_indices = @transform_4, window_bounds = array<i64: 2, 2, 1, 16>}, {pipeline_mode = #tpu.pipeline_mode<synchronous>, transform_indices = @transform_5, window_bounds = array<i64: 2, 2, 16, 32>}, {pipeline_mode = #tpu.pipeline_mode<synchronous>, transform_indices = @transform_6, window_bounds = array<i64: 2, 32, 128>}, {pipeline_mode = #tpu.pipeline_mode<synchronous>, transform_indices = @transform_7, window_bounds = array<i64: 2, 128, 32>}, {pipeline_mode = #tpu.pipeline_mode<synchronous>, transform_indices = @transform_8, window_bounds = array<i64: 32, 128>}, {pipeline_mode = #tpu.pipeline_mode<synchronous>, transform_indices = @transform_9, window_bounds = array<i64: 23, 32>}, {pipeline_mode = #tpu.pipeline_mode<synchronous>, transform_indices = @transform_10, window_bounds = array<i64: 3, 128>}, {transform_indices = @transform_11, window_bounds = array<i64: 1, 1, 128>}]} {
    %c0 = arith.constant 0 : index
    %c0_0 = arith.constant 0 : index
    %c0_1 = arith.constant 0 : index
    %0 = vector.load %arg1[%c0, %c0_0, %c0_1] : memref<1x5x768xf32, #tpu.memory_space<vmem>>, vector<1x5x768xf32>
    %1 = vector.shape_cast %0 : vector<1x5x768xf32> to vector<5x768xf32>
    %2 = arith.truncf %1 : vector<5x768xf32> to vector<5x768xbf16>
    %c0_2 = arith.constant 0 : index
    %c0_3 = arith.constant 0 : index
    %3 = vector.load %arg3[%c0_2, %c0_3] : memref<768x32xbf16, #tpu.memory_space<vmem>>, vector<768x32xbf16>
    %cst = arith.constant dense<0.000000e+00> : vector<5x32xf32>
    %4 = tpu.matmul %2, %3, %cst {dimension_numbers = #tpu.dot_dimension_numbers<[1], [0], [0], [1], [0, 0, 1, 1], [], []>} : vector<5x768xbf16>, vector<768x32xbf16>, vector<5x32xf32> -> vector<5x32xf32>
    %c0_4 = arith.constant 0 : index
    %c0_5 = arith.constant 0 : index
    %5 = vector.load %arg10[%c0_4, %c0_5] : memref<23x32xf32, #tpu.memory_space<vmem>>, vector<5x32xf32>
    %6 = arith.addf %4, %5 : vector<5x32xf32>
    %c5 = arith.constant 5 : index
    %c0_6 = arith.constant 0 : index
    %7 = vector.load %arg10[%c5, %c0_6] : memref<23x32xf32, #tpu.memory_space<vmem>>, vector<1x32xf32>
    %8 = vector.shape_cast %7 : vector<1x32xf32> to vector<32xf32>
    %c6 = arith.constant 6 : index
    %c0_7 = arith.constant 0 : index
    %9 = vector.load %arg10[%c6, %c0_7] : memref<23x32xf32, #tpu.memory_space<vmem>>, vector<1x32xf32>
    %10 = vector.shape_cast %9 : vector<1x32xf32> to vector<32xf32>
    %c7 = arith.constant 7 : index
    %c0_8 = arith.constant 0 : index
    %11 = vector.load %arg10[%c7, %c0_8] : memref<23x32xf32, #tpu.memory_space<vmem>>, vector<1x32xf32>
    %12 = vector.shape_cast %11 : vector<1x32xf32> to vector<32xf32>
    %c8 = arith.constant 8 : index
    %c0_9 = arith.constant 0 : index
    %13 = vector.load %arg10[%c8, %c0_9] : memref<23x32xf32, #tpu.memory_space<vmem>>, vector<1x32xf32>
    %14 = vector.shape_cast %13 : vector<1x32xf32> to vector<32xf32>
    %c9 = arith.constant 9 : index
    %c0_10 = arith.constant 0 : index
    %15 = vector.load %arg10[%c9, %c0_10] : memref<23x32xf32, #tpu.memory_space<vmem>>, vector<1x32xf32>
    %16 = vector.shape_cast %15 : vector<1x32xf32> to vector<32xf32>
    %c10 = arith.constant 10 : index
    %c0_11 = arith.constant 0 : index
    %17 = vector.load %arg10[%c10, %c0_11] : memref<23x32xf32, #tpu.memory_space<vmem>>, vector<1x32xf32>
    %18 = vector.shape_cast %17 : vector<1x32xf32> to vector<32xf32>
    %c11 = arith.constant 11 : index
    %c0_12 = arith.constant 0 : index
    %19 = vector.load %arg10[%c11, %c0_12] : memref<23x32xf32, #tpu.memory_space<vmem>>, vector<1x32xf32>
    %20 = vector.shape_cast %19 : vector<1x32xf32> to vector<32xf32>
    %c12 = arith.constant 12 : index
    %c0_13 = arith.constant 0 : index
    %21 = vector.load %arg10[%c12, %c0_13] : memref<23x32xf32, #tpu.memory_space<vmem>>, vector<1x32xf32>
    %22 = vector.shape_cast %21 : vector<1x32xf32> to vector<32xf32>
    %cst_14 = arith.constant dense<0.000000e+00> : vector<5xf32>
    %23 = vector.multi_reduction <add>, %6, %cst_14 [1] : vector<5x32xf32> to vector<5xf32>
    %24 = vector.shape_cast %23 : vector<5xf32> to vector<5x1xf32>
    %cst_15 = arith.constant 3.200000e+01 : f32
    %25 = vector.broadcast %cst_15 : f32 to vector<5x1xf32>
    %26 = arith.divf %24, %25 : vector<5x1xf32>
    %27 = vector.broadcast %26 : vector<5x1xf32> to vector<5x32xf32>
    %28 = arith.subf %6, %27 : vector<5x32xf32>
    %29 = vector.broadcast %26 : vector<5x1xf32> to vector<5x32xf32>
    %30 = arith.subf %6, %29 : vector<5x32xf32>
    %31 = arith.mulf %28, %30 : vector<5x32xf32>
    %cst_16 = arith.constant dense<0.000000e+00> : vector<5xf32>
    %32 = vector.multi_reduction <add>, %31, %cst_16 [1] : vector<5x32xf32> to vector<5xf32>
    %33 = vector.shape_cast %32 : vector<5xf32> to vector<5x1xf32>
    %cst_17 = arith.constant 3.200000e+01 : f32
    %34 = vector.broadcast %cst_17 : f32 to vector<5x1xf32>
    %35 = arith.divf %33, %34 : vector<5x1xf32>
    %36 = vector.broadcast %26 : vector<5x1xf32> to vector<5x32xf32>
    %37 = arith.subf %6, %36 : vector<5x32xf32>
    %cst_18 = arith.constant 9.99999996E-13 : f32
    %38 = vector.broadcast %cst_18 : f32 to vector<5x1xf32>
    %39 = arith.addf %35, %38 : vector<5x1xf32>
    %40 = math.rsqrt %39 : vector<5x1xf32>
    %41 = vector.broadcast %40 : vector<5x1xf32> to vector<5x32xf32>
    %42 = arith.mulf %37, %41 : vector<5x32xf32>
    %43 = vector.shape_cast %8 : vector<32xf32> to vector<1x32xf32>
    %44 = vector.broadcast %43 : vector<1x32xf32> to vector<5x32xf32>
    %45 = arith.mulf %42, %44 : vector<5x32xf32>
    %46 = vector.shape_cast %10 : vector<32xf32> to vector<1x32xf32>
    %47 = vector.broadcast %46 : vector<1x32xf32> to vector<5x32xf32>
    %48 = arith.addf %45, %47 : vector<5x32xf32>
    %49 = arith.truncf %48 : vector<5x32xf32> to vector<5x32xbf16>
    %cst_19 = arith.constant 0.000000e+00 : f32
    %50 = vector.broadcast %cst_19 : f32 to vector<5x32xf32>
    %c0_20 = arith.constant 0 : index
    %c0_21 = arith.constant 0 : index
    %c0_22 = arith.constant 0 : index
    %c0_23 = arith.constant 0 : index
    %c0_24 = arith.constant 0 : index
    %51 = vector.load %arg4[%c0_20, %c0_21, %c0_22, %c0_23, %c0_24] : memref<2x3x2x32x16xbf16, #tpu.memory_space<vmem>>, vector<1x1x1x32x16xbf16>
    %52 = vector.shape_cast %51 : vector<1x1x1x32x16xbf16> to vector<32x16xbf16>
    %cst_25 = arith.constant dense<0.000000e+00> : vector<5x16xf32>
    %53 = tpu.matmul %49, %52, %cst_25 {dimension_numbers = #tpu.dot_dimension_numbers<[1], [0], [0], [1], [0, 0, 1, 1], [], []>} : vector<5x32xbf16>, vector<32x16xbf16>, vector<5x16xf32> -> vector<5x16xf32>
    %c0_26 = arith.constant 0 : index
    %c0_27 = arith.constant 0 : index
    %c0_28 = arith.constant 0 : index
    %c0_29 = arith.constant 0 : index
    %54 = vector.load %arg5[%c0_26, %c0_27, %c0_28, %c0_29] : memref<2x2x1x16xf32, #tpu.memory_space<vmem>>, vector<1x1x1x16xf32>
    %55 = vector.shape_cast %54 : vector<1x1x1x16xf32> to vector<1x16xf32>
    %56 = vector.broadcast %55 : vector<1x16xf32> to vector<5x16xf32>
    %57 = arith.addf %53, %56 : vector<5x16xf32>
    %c0_30 = arith.constant 0 : index
    %c1 = arith.constant 1 : index
    %c0_31 = arith.constant 0 : index
    %c0_32 = arith.constant 0 : index
    %c0_33 = arith.constant 0 : index
    %58 = vector.load %arg4[%c0_30, %c1, %c0_31, %c0_32, %c0_33] : memref<2x3x2x32x16xbf16, #tpu.memory_space<vmem>>, vector<1x1x1x32x16xbf16>
    %59 = vector.shape_cast %58 : vector<1x1x1x32x16xbf16> to vector<32x16xbf16>
    %cst_34 = arith.constant dense<0.000000e+00> : vector<5x16xf32>
    %60 = tpu.matmul %49, %59, %cst_34 {dimension_numbers = #tpu.dot_dimension_numbers<[1], [0], [0], [1], [0, 0, 1, 1], [], []>} : vector<5x32xbf16>, vector<32x16xbf16>, vector<5x16xf32> -> vector<5x16xf32>
    %c0_35 = arith.constant 0 : index
    %c2 = arith.constant 2 : index
    %c0_36 = arith.constant 0 : index
    %c0_37 = arith.constant 0 : index
    %c0_38 = arith.constant 0 : index
    %61 = vector.load %arg4[%c0_35, %c2, %c0_36, %c0_37, %c0_38] : memref<2x3x2x32x16xbf16, #tpu.memory_space<vmem>>, vector<1x1x1x32x16xbf16>
    %62 = vector.shape_cast %61 : vector<1x1x1x32x16xbf16> to vector<32x16xbf16>
    %cst_39 = arith.constant dense<0.000000e+00> : vector<5x16xf32>
    %63 = tpu.matmul %49, %62, %cst_39 {dimension_numbers = #tpu.dot_dimension_numbers<[1], [0], [0], [1], [0, 0, 1, 1], [], []>} : vector<5x32xbf16>, vector<32x16xbf16>, vector<5x16xf32> -> vector<5x16xf32>
    %cst_40 = arith.constant dense<0.000000e+00> : vector<5x5xf32>
    %64 = tpu.matmul %57, %60, %cst_40 {dimension_numbers = #tpu.dot_dimension_numbers<[1], [1], [0], [0], [0, 0, 1, 0], [], []>} : vector<5x16xf32>, vector<5x16xf32>, vector<5x5xf32> -> vector<5x5xf32>
    %c0_41 = arith.constant 0 : index
    %c0_42 = arith.constant 0 : index
    %c0_43 = arith.constant 0 : index
    %c0_44 = arith.constant 0 : index
    %65 = vector.load %arg2[%c0_41, %c0_42, %c0_43, %c0_44] : memref<2x2x5x5xf32, #tpu.memory_space<vmem>>, vector<1x1x5x5xf32>
    %66 = vector.shape_cast %65 : vector<1x1x5x5xf32> to vector<5x5xf32>
    %67 = arith.addf %64, %66 : vector<5x5xf32>
    %cst_45 = arith.constant dense<0xFF800000> : vector<5xf32>
    %68 = vector.multi_reduction <maximumf>, %67, %cst_45 [1] : vector<5x5xf32> to vector<5xf32>
    %69 = vector.shape_cast %68 : vector<5xf32> to vector<5x1xf32>
    %70 = vector.broadcast %69 : vector<5x1xf32> to vector<5x5xf32>
    %71 = arith.subf %67, %70 : vector<5x5xf32>
    %72 = math.exp %71 : vector<5x5xf32>
    %cst_46 = arith.constant dense<0.000000e+00> : vector<5xf32>
    %73 = vector.multi_reduction <add>, %72, %cst_46 [1] : vector<5x5xf32> to vector<5xf32>
    %74 = vector.shape_cast %73 : vector<5xf32> to vector<5x1xf32>
    %75 = tpu.reciprocal %74 {approx = true} : vector<5x1xf32> -> vector<5x1xf32>
    %76 = vector.broadcast %75 : vector<5x1xf32> to vector<5x5xf32>
    %77 = arith.mulf %72, %76 : vector<5x5xf32>
    %78 = arith.truncf %77 : vector<5x5xf32> to vector<5x5xbf16>
    %79 = arith.truncf %63 : vector<5x16xf32> to vector<5x16xbf16>
    %cst_47 = arith.constant dense<0.000000e+00> : vector<5x16xf32>
    %80 = tpu.matmul %78, %79, %cst_47 {dimension_numbers = #tpu.dot_dimension_numbers<[1], [0], [0], [1], [0, 0, 1, 1], [], []>} : vector<5x5xbf16>, vector<5x16xbf16>, vector<5x16xf32> -> vector<5x16xf32>
    %81 = arith.truncf %80 : vector<5x16xf32> to vector<5x16xbf16>
    %c0_48 = arith.constant 0 : index
    %c0_49 = arith.constant 0 : index
    %c0_50 = arith.constant 0 : index
    %c0_51 = arith.constant 0 : index
    %82 = vector.load %arg6[%c0_48, %c0_49, %c0_50, %c0_51] : memref<2x2x16x32xbf16, #tpu.memory_space<vmem>>, vector<1x1x16x32xbf16>
    %83 = vector.shape_cast %82 : vector<1x1x16x32xbf16> to vector<16x32xbf16>
    %cst_52 = arith.constant dense<0.000000e+00> : vector<5x32xf32>
    %84 = tpu.matmul %81, %83, %cst_52 {dimension_numbers = #tpu.dot_dimension_numbers<[1], [0], [0], [1], [0, 0, 1, 1], [], []>} : vector<5x16xbf16>, vector<16x32xbf16>, vector<5x32xf32> -> vector<5x32xf32>
    %85 = arith.addf %50, %84 : vector<5x32xf32>
    %c0_53 = arith.constant 0 : index
    %c0_54 = arith.constant 0 : index
    %c1_55 = arith.constant 1 : index
    %c0_56 = arith.constant 0 : index
    %c0_57 = arith.constant 0 : index
    %86 = vector.load %arg4[%c0_53, %c0_54, %c1_55, %c0_56, %c0_57] : memref<2x3x2x32x16xbf16, #tpu.memory_space<vmem>>, vector<1x1x1x32x16xbf16>
    %87 = vector.shape_cast %86 : vector<1x1x1x32x16xbf16> to vector<32x16xbf16>
    %cst_58 = arith.constant dense<0.000000e+00> : vector<5x16xf32>
    %88 = tpu.matmul %49, %87, %cst_58 {dimension_numbers = #tpu.dot_dimension_numbers<[1], [0], [0], [1], [0, 0, 1, 1], [], []>} : vector<5x32xbf16>, vector<32x16xbf16>, vector<5x16xf32> -> vector<5x16xf32>
    %c0_59 = arith.constant 0 : index
    %c1_60 = arith.constant 1 : index
    %c0_61 = arith.constant 0 : index
    %c0_62 = arith.constant 0 : index
    %89 = vector.load %arg5[%c0_59, %c1_60, %c0_61, %c0_62] : memref<2x2x1x16xf32, #tpu.memory_space<vmem>>, vector<1x1x1x16xf32>
    %90 = vector.shape_cast %89 : vector<1x1x1x16xf32> to vector<1x16xf32>
    %91 = vector.broadcast %90 : vector<1x16xf32> to vector<5x16xf32>
    %92 = arith.addf %88, %91 : vector<5x16xf32>
    %c0_63 = arith.constant 0 : index
    %c1_64 = arith.constant 1 : index
    %c1_65 = arith.constant 1 : index
    %c0_66 = arith.constant 0 : index
    %c0_67 = arith.constant 0 : index
    %93 = vector.load %arg4[%c0_63, %c1_64, %c1_65, %c0_66, %c0_67] : memref<2x3x2x32x16xbf16, #tpu.memory_space<vmem>>, vector<1x1x1x32x16xbf16>
    %94 = vector.shape_cast %93 : vector<1x1x1x32x16xbf16> to vector<32x16xbf16>
    %cst_68 = arith.constant dense<0.000000e+00> : vector<5x16xf32>
    %95 = tpu.matmul %49, %94, %cst_68 {dimension_numbers = #tpu.dot_dimension_numbers<[1], [0], [0], [1], [0, 0, 1, 1], [], []>} : vector<5x32xbf16>, vector<32x16xbf16>, vector<5x16xf32> -> vector<5x16xf32>
    %c0_69 = arith.constant 0 : index
    %c2_70 = arith.constant 2 : index
    %c1_71 = arith.constant 1 : index
    %c0_72 = arith.constant 0 : index
    %c0_73 = arith.constant 0 : index
    %96 = vector.load %arg4[%c0_69, %c2_70, %c1_71, %c0_72, %c0_73] : memref<2x3x2x32x16xbf16, #tpu.memory_space<vmem>>, vector<1x1x1x32x16xbf16>
    %97 = vector.shape_cast %96 : vector<1x1x1x32x16xbf16> to vector<32x16xbf16>
    %cst_74 = arith.constant dense<0.000000e+00> : vector<5x16xf32>
    %98 = tpu.matmul %49, %97, %cst_74 {dimension_numbers = #tpu.dot_dimension_numbers<[1], [0], [0], [1], [0, 0, 1, 1], [], []>} : vector<5x32xbf16>, vector<32x16xbf16>, vector<5x16xf32> -> vector<5x16xf32>
    %cst_75 = arith.constant dense<0.000000e+00> : vector<5x5xf32>
    %99 = tpu.matmul %92, %95, %cst_75 {dimension_numbers = #tpu.dot_dimension_numbers<[1], [1], [0], [0], [0, 0, 1, 0], [], []>} : vector<5x16xf32>, vector<5x16xf32>, vector<5x5xf32> -> vector<5x5xf32>
    %c0_76 = arith.constant 0 : index
    %c1_77 = arith.constant 1 : index
    %c0_78 = arith.constant 0 : index
    %c0_79 = arith.constant 0 : index
    %100 = vector.load %arg2[%c0_76, %c1_77, %c0_78, %c0_79] : memref<2x2x5x5xf32, #tpu.memory_space<vmem>>, vector<1x1x5x5xf32>
    %101 = vector.shape_cast %100 : vector<1x1x5x5xf32> to vector<5x5xf32>
    %102 = arith.addf %99, %101 : vector<5x5xf32>
    %cst_80 = arith.constant dense<0xFF800000> : vector<5xf32>
    %103 = vector.multi_reduction <maximumf>, %102, %cst_80 [1] : vector<5x5xf32> to vector<5xf32>
    %104 = vector.shape_cast %103 : vector<5xf32> to vector<5x1xf32>
    %105 = vector.broadcast %104 : vector<5x1xf32> to vector<5x5xf32>
    %106 = arith.subf %102, %105 : vector<5x5xf32>
    %107 = math.exp %106 : vector<5x5xf32>
    %cst_81 = arith.constant dense<0.000000e+00> : vector<5xf32>
    %108 = vector.multi_reduction <add>, %107, %cst_81 [1] : vector<5x5xf32> to vector<5xf32>
    %109 = vector.shape_cast %108 : vector<5xf32> to vector<5x1xf32>
    %110 = tpu.reciprocal %109 {approx = true} : vector<5x1xf32> -> vector<5x1xf32>
    %111 = vector.broadcast %110 : vector<5x1xf32> to vector<5x5xf32>
    %112 = arith.mulf %107, %111 : vector<5x5xf32>
    %113 = arith.truncf %112 : vector<5x5xf32> to vector<5x5xbf16>
    %114 = arith.truncf %98 : vector<5x16xf32> to vector<5x16xbf16>
    %cst_82 = arith.constant dense<0.000000e+00> : vector<5x16xf32>
    %115 = tpu.matmul %113, %114, %cst_82 {dimension_numbers = #tpu.dot_dimension_numbers<[1], [0], [0], [1], [0, 0, 1, 1], [], []>} : vector<5x5xbf16>, vector<5x16xbf16>, vector<5x16xf32> -> vector<5x16xf32>
    %116 = arith.truncf %115 : vector<5x16xf32> to vector<5x16xbf16>
    %c0_83 = arith.constant 0 : index
    %c1_84 = arith.constant 1 : index
    %c0_85 = arith.constant 0 : index
    %c0_86 = arith.constant 0 : index
    %117 = vector.load %arg6[%c0_83, %c1_84, %c0_85, %c0_86] : memref<2x2x16x32xbf16, #tpu.memory_space<vmem>>, vector<1x1x16x32xbf16>
    %118 = vector.shape_cast %117 : vector<1x1x16x32xbf16> to vector<16x32xbf16>
    %cst_87 = arith.constant dense<0.000000e+00> : vector<5x32xf32>
    %119 = tpu.matmul %116, %118, %cst_87 {dimension_numbers = #tpu.dot_dimension_numbers<[1], [0], [0], [1], [0, 0, 1, 1], [], []>} : vector<5x16xbf16>, vector<16x32xbf16>, vector<5x32xf32> -> vector<5x32xf32>
    %120 = arith.addf %85, %119 : vector<5x32xf32>
    %121 = vector.shape_cast %12 : vector<32xf32> to vector<1x32xf32>
    %122 = vector.broadcast %121 : vector<1x32xf32> to vector<5x32xf32>
    %123 = arith.addf %120, %122 : vector<5x32xf32>
    %124 = vector.shape_cast %14 : vector<32xf32> to vector<1x32xf32>
    %125 = vector.broadcast %124 : vector<1x32xf32> to vector<5x32xf32>
    %126 = arith.mulf %125, %123 : vector<5x32xf32>
    %127 = arith.addf %6, %126 : vector<5x32xf32>
    %cst_88 = arith.constant dense<0.000000e+00> : vector<5xf32>
    %128 = vector.multi_reduction <add>, %127, %cst_88 [1] : vector<5x32xf32> to vector<5xf32>
    %129 = vector.shape_cast %128 : vector<5xf32> to vector<5x1xf32>
    %cst_89 = arith.constant 3.200000e+01 : f32
    %130 = vector.broadcast %cst_89 : f32 to vector<5x1xf32>
    %131 = arith.divf %129, %130 : vector<5x1xf32>
    %132 = vector.broadcast %131 : vector<5x1xf32> to vector<5x32xf32>
    %133 = arith.subf %127, %132 : vector<5x32xf32>
    %134 = vector.broadcast %131 : vector<5x1xf32> to vector<5x32xf32>
    %135 = arith.subf %127, %134 : vector<5x32xf32>
    %136 = arith.mulf %133, %135 : vector<5x32xf32>
    %cst_90 = arith.constant dense<0.000000e+00> : vector<5xf32>
    %137 = vector.multi_reduction <add>, %136, %cst_90 [1] : vector<5x32xf32> to vector<5xf32>
    %138 = vector.shape_cast %137 : vector<5xf32> to vector<5x1xf32>
    %cst_91 = arith.constant 3.200000e+01 : f32
    %139 = vector.broadcast %cst_91 : f32 to vector<5x1xf32>
    %140 = arith.divf %138, %139 : vector<5x1xf32>
    %141 = vector.broadcast %131 : vector<5x1xf32> to vector<5x32xf32>
    %142 = arith.subf %127, %141 : vector<5x32xf32>
    %cst_92 = arith.constant 9.99999996E-13 : f32
    %143 = vector.broadcast %cst_92 : f32 to vector<5x1xf32>
    %144 = arith.addf %140, %143 : vector<5x1xf32>
    %145 = math.rsqrt %144 : vector<5x1xf32>
    %146 = vector.broadcast %145 : vector<5x1xf32> to vector<5x32xf32>
    %147 = arith.mulf %142, %146 : vector<5x32xf32>
    %148 = vector.shape_cast %16 : vector<32xf32> to vector<1x32xf32>
    %149 = vector.broadcast %148 : vector<1x32xf32> to vector<5x32xf32>
    %150 = arith.mulf %147, %149 : vector<5x32xf32>
    %151 = vector.shape_cast %18 : vector<32xf32> to vector<1x32xf32>
    %152 = vector.broadcast %151 : vector<1x32xf32> to vector<5x32xf32>
    %153 = arith.addf %150, %152 : vector<5x32xf32>
    %154 = arith.truncf %153 : vector<5x32xf32> to vector<5x32xbf16>
    %c0_93 = arith.constant 0 : index
    %c0_94 = arith.constant 0 : index
    %c0_95 = arith.constant 0 : index
    %155 = vector.load %arg7[%c0_93, %c0_94, %c0_95] : memref<2x32x128xbf16, #tpu.memory_space<vmem>>, vector<1x32x128xbf16>
    %156 = vector.shape_cast %155 : vector<1x32x128xbf16> to vector<32x128xbf16>
    %cst_96 = arith.constant dense<0.000000e+00> : vector<5x128xf32>
    %157 = tpu.matmul %154, %156, %cst_96 {dimension_numbers = #tpu.dot_dimension_numbers<[1], [0], [0], [1], [0, 0, 1, 1], [], []>} : vector<5x32xbf16>, vector<32x128xbf16>, vector<5x128xf32> -> vector<5x128xf32>
    %c0_97 = arith.constant 0 : index
    %c0_98 = arith.constant 0 : index
    %158 = vector.load %arg11[%c0_97, %c0_98] : memref<3x128xf32, #tpu.memory_space<vmem>>, vector<1x128xf32>
    %159 = vector.shape_cast %158 : vector<1x128xf32> to vector<128xf32>
    %160 = vector.shape_cast %159 : vector<128xf32> to vector<1x128xf32>
    %161 = vector.broadcast %160 : vector<1x128xf32> to vector<5x128xf32>
    %162 = arith.addf %157, %161 : vector<5x128xf32>
    %163 = arith.mulf %162, %162 : vector<5x128xf32>
    %164 = arith.mulf %162, %163 : vector<5x128xf32>
    %cst_99 = arith.constant 4.471500e-02 : f32
    %165 = vector.broadcast %cst_99 : f32 to vector<5x128xf32>
    %166 = arith.mulf %165, %164 : vector<5x128xf32>
    %167 = arith.addf %162, %166 : vector<5x128xf32>
    %cst_100 = arith.constant 0.797884583 : f32
    %168 = vector.broadcast %cst_100 : f32 to vector<5x128xf32>
    %169 = arith.mulf %168, %167 : vector<5x128xf32>
    %170 = math.tanh %169 : vector<5x128xf32>
    %cst_101 = arith.constant 1.000000e+00 : f32
    %171 = vector.broadcast %cst_101 : f32 to vector<5x128xf32>
    %172 = arith.addf %171, %170 : vector<5x128xf32>
    %cst_102 = arith.constant 5.000000e-01 : f32
    %173 = vector.broadcast %cst_102 : f32 to vector<5x128xf32>
    %174 = arith.mulf %173, %172 : vector<5x128xf32>
    %175 = arith.mulf %162, %174 : vector<5x128xf32>
    %176 = arith.truncf %175 : vector<5x128xf32> to vector<5x128xbf16>
    %c0_103 = arith.constant 0 : index
    %c0_104 = arith.constant 0 : index
    %c0_105 = arith.constant 0 : index
    %177 = vector.load %arg8[%c0_103, %c0_104, %c0_105] : memref<2x128x32xbf16, #tpu.memory_space<vmem>>, vector<1x128x32xbf16>
    %178 = vector.shape_cast %177 : vector<1x128x32xbf16> to vector<128x32xbf16>
    %cst_106 = arith.constant dense<0.000000e+00> : vector<5x32xf32>
    %179 = tpu.matmul %176, %178, %cst_106 {dimension_numbers = #tpu.dot_dimension_numbers<[1], [0], [0], [1], [0, 0, 1, 1], [], []>} : vector<5x128xbf16>, vector<128x32xbf16>, vector<5x32xf32> -> vector<5x32xf32>
    %180 = vector.shape_cast %20 : vector<32xf32> to vector<1x32xf32>
    %181 = vector.broadcast %180 : vector<1x32xf32> to vector<5x32xf32>
    %182 = arith.addf %179, %181 : vector<5x32xf32>
    %183 = vector.shape_cast %22 : vector<32xf32> to vector<1x32xf32>
    %184 = vector.broadcast %183 : vector<1x32xf32> to vector<5x32xf32>
    %185 = arith.mulf %184, %182 : vector<5x32xf32>
    %186 = arith.addf %127, %185 : vector<5x32xf32>
    %c13 = arith.constant 13 : index
    %c0_107 = arith.constant 0 : index
    %187 = vector.load %arg10[%c13, %c0_107] : memref<23x32xf32, #tpu.memory_space<vmem>>, vector<1x32xf32>
    %188 = vector.shape_cast %187 : vector<1x32xf32> to vector<32xf32>
    %c14 = arith.constant 14 : index
    %c0_108 = arith.constant 0 : index
    %189 = vector.load %arg10[%c14, %c0_108] : memref<23x32xf32, #tpu.memory_space<vmem>>, vector<1x32xf32>
    %190 = vector.shape_cast %189 : vector<1x32xf32> to vector<32xf32>
    %c15 = arith.constant 15 : index
    %c0_109 = arith.constant 0 : index
    %191 = vector.load %arg10[%c15, %c0_109] : memref<23x32xf32, #tpu.memory_space<vmem>>, vector<1x32xf32>
    %192 = vector.shape_cast %191 : vector<1x32xf32> to vector<32xf32>
    %c16 = arith.constant 16 : index
    %c0_110 = arith.constant 0 : index
    %193 = vector.load %arg10[%c16, %c0_110] : memref<23x32xf32, #tpu.memory_space<vmem>>, vector<1x32xf32>
    %194 = vector.shape_cast %193 : vector<1x32xf32> to vector<32xf32>
    %c17 = arith.constant 17 : index
    %c0_111 = arith.constant 0 : index
    %195 = vector.load %arg10[%c17, %c0_111] : memref<23x32xf32, #tpu.memory_space<vmem>>, vector<1x32xf32>
    %196 = vector.shape_cast %195 : vector<1x32xf32> to vector<32xf32>
    %c18 = arith.constant 18 : index
    %c0_112 = arith.constant 0 : index
    %197 = vector.load %arg10[%c18, %c0_112] : memref<23x32xf32, #tpu.memory_space<vmem>>, vector<1x32xf32>
    %198 = vector.shape_cast %197 : vector<1x32xf32> to vector<32xf32>
    %c19 = arith.constant 19 : index
    %c0_113 = arith.constant 0 : index
    %199 = vector.load %arg10[%c19, %c0_113] : memref<23x32xf32, #tpu.memory_space<vmem>>, vector<1x32xf32>
    %200 = vector.shape_cast %199 : vector<1x32xf32> to vector<32xf32>
    %c20 = arith.constant 20 : index
    %c0_114 = arith.constant 0 : index
    %201 = vector.load %arg10[%c20, %c0_114] : memref<23x32xf32, #tpu.memory_space<vmem>>, vector<1x32xf32>
    %202 = vector.shape_cast %201 : vector<1x32xf32> to vector<32xf32>
    %cst_115 = arith.constant dense<0.000000e+00> : vector<5xf32>
    %203 = vector.multi_reduction <add>, %186, %cst_115 [1] : vector<5x32xf32> to vector<5xf32>
    %204 = vector.shape_cast %203 : vector<5xf32> to vector<5x1xf32>
    %cst_116 = arith.constant 3.200000e+01 : f32
    %205 = vector.broadcast %cst_116 : f32 to vector<5x1xf32>
    %206 = arith.divf %204, %205 : vector<5x1xf32>
    %207 = vector.broadcast %206 : vector<5x1xf32> to vector<5x32xf32>
    %208 = arith.subf %186, %207 : vector<5x32xf32>
    %209 = vector.broadcast %206 : vector<5x1xf32> to vector<5x32xf32>
    %210 = arith.subf %186, %209 : vector<5x32xf32>
    %211 = arith.mulf %208, %210 : vector<5x32xf32>
    %cst_117 = arith.constant dense<0.000000e+00> : vector<5xf32>
    %212 = vector.multi_reduction <add>, %211, %cst_117 [1] : vector<5x32xf32> to vector<5xf32>
    %213 = vector.shape_cast %212 : vector<5xf32> to vector<5x1xf32>
    %cst_118 = arith.constant 3.200000e+01 : f32
    %214 = vector.broadcast %cst_118 : f32 to vector<5x1xf32>
    %215 = arith.divf %213, %214 : vector<5x1xf32>
    %216 = vector.broadcast %206 : vector<5x1xf32> to vector<5x32xf32>
    %217 = arith.subf %186, %216 : vector<5x32xf32>
    %cst_119 = arith.constant 9.99999996E-13 : f32
    %218 = vector.broadcast %cst_119 : f32 to vector<5x1xf32>
    %219 = arith.addf %215, %218 : vector<5x1xf32>
    %220 = math.rsqrt %219 : vector<5x1xf32>
    %221 = vector.broadcast %220 : vector<5x1xf32> to vector<5x32xf32>
    %222 = arith.mulf %217, %221 : vector<5x32xf32>
    %223 = vector.shape_cast %188 : vector<32xf32> to vector<1x32xf32>
    %224 = vector.broadcast %223 : vector<1x32xf32> to vector<5x32xf32>
    %225 = arith.mulf %222, %224 : vector<5x32xf32>
    %226 = vector.shape_cast %190 : vector<32xf32> to vector<1x32xf32>
    %227 = vector.broadcast %226 : vector<1x32xf32> to vector<5x32xf32>
    %228 = arith.addf %225, %227 : vector<5x32xf32>
    %229 = arith.truncf %228 : vector<5x32xf32> to vector<5x32xbf16>
    %cst_120 = arith.constant 0.000000e+00 : f32
    %230 = vector.broadcast %cst_120 : f32 to vector<5x32xf32>
    %c1_121 = arith.constant 1 : index
    %c0_122 = arith.constant 0 : index
    %c0_123 = arith.constant 0 : index
    %c0_124 = arith.constant 0 : index
    %c0_125 = arith.constant 0 : index
    %231 = vector.load %arg4[%c1_121, %c0_122, %c0_123, %c0_124, %c0_125] : memref<2x3x2x32x16xbf16, #tpu.memory_space<vmem>>, vector<1x1x1x32x16xbf16>
    %232 = vector.shape_cast %231 : vector<1x1x1x32x16xbf16> to vector<32x16xbf16>
    %cst_126 = arith.constant dense<0.000000e+00> : vector<5x16xf32>
    %233 = tpu.matmul %229, %232, %cst_126 {dimension_numbers = #tpu.dot_dimension_numbers<[1], [0], [0], [1], [0, 0, 1, 1], [], []>} : vector<5x32xbf16>, vector<32x16xbf16>, vector<5x16xf32> -> vector<5x16xf32>
    %c1_127 = arith.constant 1 : index
    %c0_128 = arith.constant 0 : index
    %c0_129 = arith.constant 0 : index
    %c0_130 = arith.constant 0 : index
    %234 = vector.load %arg5[%c1_127, %c0_128, %c0_129, %c0_130] : memref<2x2x1x16xf32, #tpu.memory_space<vmem>>, vector<1x1x1x16xf32>
    %235 = vector.shape_cast %234 : vector<1x1x1x16xf32> to vector<1x16xf32>
    %236 = vector.broadcast %235 : vector<1x16xf32> to vector<5x16xf32>
    %237 = arith.addf %233, %236 : vector<5x16xf32>
    %c1_131 = arith.constant 1 : index
    %c1_132 = arith.constant 1 : index
    %c0_133 = arith.constant 0 : index
    %c0_134 = arith.constant 0 : index
    %c0_135 = arith.constant 0 : index
    %238 = vector.load %arg4[%c1_131, %c1_132, %c0_133, %c0_134, %c0_135] : memref<2x3x2x32x16xbf16, #tpu.memory_space<vmem>>, vector<1x1x1x32x16xbf16>
    %239 = vector.shape_cast %238 : vector<1x1x1x32x16xbf16> to vector<32x16xbf16>
    %cst_136 = arith.constant dense<0.000000e+00> : vector<5x16xf32>
    %240 = tpu.matmul %229, %239, %cst_136 {dimension_numbers = #tpu.dot_dimension_numbers<[1], [0], [0], [1], [0, 0, 1, 1], [], []>} : vector<5x32xbf16>, vector<32x16xbf16>, vector<5x16xf32> -> vector<5x16xf32>
    %c1_137 = arith.constant 1 : index
    %c2_138 = arith.constant 2 : index
    %c0_139 = arith.constant 0 : index
    %c0_140 = arith.constant 0 : index
    %c0_141 = arith.constant 0 : index
    %241 = vector.load %arg4[%c1_137, %c2_138, %c0_139, %c0_140, %c0_141] : memref<2x3x2x32x16xbf16, #tpu.memory_space<vmem>>, vector<1x1x1x32x16xbf16>
    %242 = vector.shape_cast %241 : vector<1x1x1x32x16xbf16> to vector<32x16xbf16>
    %cst_142 = arith.constant dense<0.000000e+00> : vector<5x16xf32>
    %243 = tpu.matmul %229, %242, %cst_142 {dimension_numbers = #tpu.dot_dimension_numbers<[1], [0], [0], [1], [0, 0, 1, 1], [], []>} : vector<5x32xbf16>, vector<32x16xbf16>, vector<5x16xf32> -> vector<5x16xf32>
    %cst_143 = arith.constant dense<0.000000e+00> : vector<5x5xf32>
    %244 = tpu.matmul %237, %240, %cst_143 {dimension_numbers = #tpu.dot_dimension_numbers<[1], [1], [0], [0], [0, 0, 1, 0], [], []>} : vector<5x16xf32>, vector<5x16xf32>, vector<5x5xf32> -> vector<5x5xf32>
    %c1_144 = arith.constant 1 : index
    %c0_145 = arith.constant 0 : index
    %c0_146 = arith.constant 0 : index
    %c0_147 = arith.constant 0 : index
    %245 = vector.load %arg2[%c1_144, %c0_145, %c0_146, %c0_147] : memref<2x2x5x5xf32, #tpu.memory_space<vmem>>, vector<1x1x5x5xf32>
    %246 = vector.shape_cast %245 : vector<1x1x5x5xf32> to vector<5x5xf32>
    %247 = arith.addf %244, %246 : vector<5x5xf32>
    %cst_148 = arith.constant dense<0xFF800000> : vector<5xf32>
    %248 = vector.multi_reduction <maximumf>, %247, %cst_148 [1] : vector<5x5xf32> to vector<5xf32>
    %249 = vector.shape_cast %248 : vector<5xf32> to vector<5x1xf32>
    %250 = vector.broadcast %249 : vector<5x1xf32> to vector<5x5xf32>
    %251 = arith.subf %247, %250 : vector<5x5xf32>
    %252 = math.exp %251 : vector<5x5xf32>
    %cst_149 = arith.constant dense<0.000000e+00> : vector<5xf32>
    %253 = vector.multi_reduction <add>, %252, %cst_149 [1] : vector<5x5xf32> to vector<5xf32>
    %254 = vector.shape_cast %253 : vector<5xf32> to vector<5x1xf32>
    %255 = tpu.reciprocal %254 {approx = true} : vector<5x1xf32> -> vector<5x1xf32>
    %256 = vector.broadcast %255 : vector<5x1xf32> to vector<5x5xf32>
    %257 = arith.mulf %252, %256 : vector<5x5xf32>
    %258 = arith.truncf %257 : vector<5x5xf32> to vector<5x5xbf16>
    %259 = arith.truncf %243 : vector<5x16xf32> to vector<5x16xbf16>
    %cst_150 = arith.constant dense<0.000000e+00> : vector<5x16xf32>
    %260 = tpu.matmul %258, %259, %cst_150 {dimension_numbers = #tpu.dot_dimension_numbers<[1], [0], [0], [1], [0, 0, 1, 1], [], []>} : vector<5x5xbf16>, vector<5x16xbf16>, vector<5x16xf32> -> vector<5x16xf32>
    %261 = arith.truncf %260 : vector<5x16xf32> to vector<5x16xbf16>
    %c1_151 = arith.constant 1 : index
    %c0_152 = arith.constant 0 : index
    %c0_153 = arith.constant 0 : index
    %c0_154 = arith.constant 0 : index
    %262 = vector.load %arg6[%c1_151, %c0_152, %c0_153, %c0_154] : memref<2x2x16x32xbf16, #tpu.memory_space<vmem>>, vector<1x1x16x32xbf16>
    %263 = vector.shape_cast %262 : vector<1x1x16x32xbf16> to vector<16x32xbf16>
    %cst_155 = arith.constant dense<0.000000e+00> : vector<5x32xf32>
    %264 = tpu.matmul %261, %263, %cst_155 {dimension_numbers = #tpu.dot_dimension_numbers<[1], [0], [0], [1], [0, 0, 1, 1], [], []>} : vector<5x16xbf16>, vector<16x32xbf16>, vector<5x32xf32> -> vector<5x32xf32>
    %265 = arith.addf %230, %264 : vector<5x32xf32>
    %c1_156 = arith.constant 1 : index
    %c0_157 = arith.constant 0 : index
    %c1_158 = arith.constant 1 : index
    %c0_159 = arith.constant 0 : index
    %c0_160 = arith.constant 0 : index
    %266 = vector.load %arg4[%c1_156, %c0_157, %c1_158, %c0_159, %c0_160] : memref<2x3x2x32x16xbf16, #tpu.memory_space<vmem>>, vector<1x1x1x32x16xbf16>
    %267 = vector.shape_cast %266 : vector<1x1x1x32x16xbf16> to vector<32x16xbf16>
    %cst_161 = arith.constant dense<0.000000e+00> : vector<5x16xf32>
    %268 = tpu.matmul %229, %267, %cst_161 {dimension_numbers = #tpu.dot_dimension_numbers<[1], [0], [0], [1], [0, 0, 1, 1], [], []>} : vector<5x32xbf16>, vector<32x16xbf16>, vector<5x16xf32> -> vector<5x16xf32>
    %c1_162 = arith.constant 1 : index
    %c1_163 = arith.constant 1 : index
    %c0_164 = arith.constant 0 : index
    %c0_165 = arith.constant 0 : index
    %269 = vector.load %arg5[%c1_162, %c1_163, %c0_164, %c0_165] : memref<2x2x1x16xf32, #tpu.memory_space<vmem>>, vector<1x1x1x16xf32>
    %270 = vector.shape_cast %269 : vector<1x1x1x16xf32> to vector<1x16xf32>
    %271 = vector.broadcast %270 : vector<1x16xf32> to vector<5x16xf32>
    %272 = arith.addf %268, %271 : vector<5x16xf32>
    %c1_166 = arith.constant 1 : index
    %c1_167 = arith.constant 1 : index
    %c1_168 = arith.constant 1 : index
    %c0_169 = arith.constant 0 : index
    %c0_170 = arith.constant 0 : index
    %273 = vector.load %arg4[%c1_166, %c1_167, %c1_168, %c0_169, %c0_170] : memref<2x3x2x32x16xbf16, #tpu.memory_space<vmem>>, vector<1x1x1x32x16xbf16>
    %274 = vector.shape_cast %273 : vector<1x1x1x32x16xbf16> to vector<32x16xbf16>
    %cst_171 = arith.constant dense<0.000000e+00> : vector<5x16xf32>
    %275 = tpu.matmul %229, %274, %cst_171 {dimension_numbers = #tpu.dot_dimension_numbers<[1], [0], [0], [1], [0, 0, 1, 1], [], []>} : vector<5x32xbf16>, vector<32x16xbf16>, vector<5x16xf32> -> vector<5x16xf32>
    %c1_172 = arith.constant 1 : index
    %c2_173 = arith.constant 2 : index
    %c1_174 = arith.constant 1 : index
    %c0_175 = arith.constant 0 : index
    %c0_176 = arith.constant 0 : index
    %276 = vector.load %arg4[%c1_172, %c2_173, %c1_174, %c0_175, %c0_176] : memref<2x3x2x32x16xbf16, #tpu.memory_space<vmem>>, vector<1x1x1x32x16xbf16>
    %277 = vector.shape_cast %276 : vector<1x1x1x32x16xbf16> to vector<32x16xbf16>
    %cst_177 = arith.constant dense<0.000000e+00> : vector<5x16xf32>
    %278 = tpu.matmul %229, %277, %cst_177 {dimension_numbers = #tpu.dot_dimension_numbers<[1], [0], [0], [1], [0, 0, 1, 1], [], []>} : vector<5x32xbf16>, vector<32x16xbf16>, vector<5x16xf32> -> vector<5x16xf32>
    %cst_178 = arith.constant dense<0.000000e+00> : vector<5x5xf32>
    %279 = tpu.matmul %272, %275, %cst_178 {dimension_numbers = #tpu.dot_dimension_numbers<[1], [1], [0], [0], [0, 0, 1, 0], [], []>} : vector<5x16xf32>, vector<5x16xf32>, vector<5x5xf32> -> vector<5x5xf32>
    %c1_179 = arith.constant 1 : index
    %c1_180 = arith.constant 1 : index
    %c0_181 = arith.constant 0 : index
    %c0_182 = arith.constant 0 : index
    %280 = vector.load %arg2[%c1_179, %c1_180, %c0_181, %c0_182] : memref<2x2x5x5xf32, #tpu.memory_space<vmem>>, vector<1x1x5x5xf32>
    %281 = vector.shape_cast %280 : vector<1x1x5x5xf32> to vector<5x5xf32>
    %282 = arith.addf %279, %281 : vector<5x5xf32>
    %cst_183 = arith.constant dense<0xFF800000> : vector<5xf32>
    %283 = vector.multi_reduction <maximumf>, %282, %cst_183 [1] : vector<5x5xf32> to vector<5xf32>
    %284 = vector.shape_cast %283 : vector<5xf32> to vector<5x1xf32>
    %285 = vector.broadcast %284 : vector<5x1xf32> to vector<5x5xf32>
    %286 = arith.subf %282, %285 : vector<5x5xf32>
    %287 = math.exp %286 : vector<5x5xf32>
    %cst_184 = arith.constant dense<0.000000e+00> : vector<5xf32>
    %288 = vector.multi_reduction <add>, %287, %cst_184 [1] : vector<5x5xf32> to vector<5xf32>
    %289 = vector.shape_cast %288 : vector<5xf32> to vector<5x1xf32>
    %290 = tpu.reciprocal %289 {approx = true} : vector<5x1xf32> -> vector<5x1xf32>
    %291 = vector.broadcast %290 : vector<5x1xf32> to vector<5x5xf32>
    %292 = arith.mulf %287, %291 : vector<5x5xf32>
    %293 = arith.truncf %292 : vector<5x5xf32> to vector<5x5xbf16>
    %294 = arith.truncf %278 : vector<5x16xf32> to vector<5x16xbf16>
    %cst_185 = arith.constant dense<0.000000e+00> : vector<5x16xf32>
    %295 = tpu.matmul %293, %294, %cst_185 {dimension_numbers = #tpu.dot_dimension_numbers<[1], [0], [0], [1], [0, 0, 1, 1], [], []>} : vector<5x5xbf16>, vector<5x16xbf16>, vector<5x16xf32> -> vector<5x16xf32>
    %296 = arith.truncf %295 : vector<5x16xf32> to vector<5x16xbf16>
    %c1_186 = arith.constant 1 : index
    %c1_187 = arith.constant 1 : index
    %c0_188 = arith.constant 0 : index
    %c0_189 = arith.constant 0 : index
    %297 = vector.load %arg6[%c1_186, %c1_187, %c0_188, %c0_189] : memref<2x2x16x32xbf16, #tpu.memory_space<vmem>>, vector<1x1x16x32xbf16>
    %298 = vector.shape_cast %297 : vector<1x1x16x32xbf16> to vector<16x32xbf16>
    %cst_190 = arith.constant dense<0.000000e+00> : vector<5x32xf32>
    %299 = tpu.matmul %296, %298, %cst_190 {dimension_numbers = #tpu.dot_dimension_numbers<[1], [0], [0], [1], [0, 0, 1, 1], [], []>} : vector<5x16xbf16>, vector<16x32xbf16>, vector<5x32xf32> -> vector<5x32xf32>
    %300 = arith.addf %265, %299 : vector<5x32xf32>
    %301 = vector.shape_cast %192 : vector<32xf32> to vector<1x32xf32>
    %302 = vector.broadcast %301 : vector<1x32xf32> to vector<5x32xf32>
    %303 = arith.addf %300, %302 : vector<5x32xf32>
    %304 = vector.shape_cast %194 : vector<32xf32> to vector<1x32xf32>
    %305 = vector.broadcast %304 : vector<1x32xf32> to vector<5x32xf32>
    %306 = arith.mulf %305, %303 : vector<5x32xf32>
    %307 = arith.addf %186, %306 : vector<5x32xf32>
    %cst_191 = arith.constant dense<0.000000e+00> : vector<5xf32>
    %308 = vector.multi_reduction <add>, %307, %cst_191 [1] : vector<5x32xf32> to vector<5xf32>
    %309 = vector.shape_cast %308 : vector<5xf32> to vector<5x1xf32>
    %cst_192 = arith.constant 3.200000e+01 : f32
    %310 = vector.broadcast %cst_192 : f32 to vector<5x1xf32>
    %311 = arith.divf %309, %310 : vector<5x1xf32>
    %312 = vector.broadcast %311 : vector<5x1xf32> to vector<5x32xf32>
    %313 = arith.subf %307, %312 : vector<5x32xf32>
    %314 = vector.broadcast %311 : vector<5x1xf32> to vector<5x32xf32>
    %315 = arith.subf %307, %314 : vector<5x32xf32>
    %316 = arith.mulf %313, %315 : vector<5x32xf32>
    %cst_193 = arith.constant dense<0.000000e+00> : vector<5xf32>
    %317 = vector.multi_reduction <add>, %316, %cst_193 [1] : vector<5x32xf32> to vector<5xf32>
    %318 = vector.shape_cast %317 : vector<5xf32> to vector<5x1xf32>
    %cst_194 = arith.constant 3.200000e+01 : f32
    %319 = vector.broadcast %cst_194 : f32 to vector<5x1xf32>
    %320 = arith.divf %318, %319 : vector<5x1xf32>
    %321 = vector.broadcast %311 : vector<5x1xf32> to vector<5x32xf32>
    %322 = arith.subf %307, %321 : vector<5x32xf32>
    %cst_195 = arith.constant 9.99999996E-13 : f32
    %323 = vector.broadcast %cst_195 : f32 to vector<5x1xf32>
    %324 = arith.addf %320, %323 : vector<5x1xf32>
    %325 = math.rsqrt %324 : vector<5x1xf32>
    %326 = vector.broadcast %325 : vector<5x1xf32> to vector<5x32xf32>
    %327 = arith.mulf %322, %326 : vector<5x32xf32>
    %328 = vector.shape_cast %196 : vector<32xf32> to vector<1x32xf32>
    %329 = vector.broadcast %328 : vector<1x32xf32> to vector<5x32xf32>
    %330 = arith.mulf %327, %329 : vector<5x32xf32>
    %331 = vector.shape_cast %198 : vector<32xf32> to vector<1x32xf32>
    %332 = vector.broadcast %331 : vector<1x32xf32> to vector<5x32xf32>
    %333 = arith.addf %330, %332 : vector<5x32xf32>
    %334 = arith.truncf %333 : vector<5x32xf32> to vector<5x32xbf16>
    %c1_196 = arith.constant 1 : index
    %c0_197 = arith.constant 0 : index
    %c0_198 = arith.constant 0 : index
    %335 = vector.load %arg7[%c1_196, %c0_197, %c0_198] : memref<2x32x128xbf16, #tpu.memory_space<vmem>>, vector<1x32x128xbf16>
    %336 = vector.shape_cast %335 : vector<1x32x128xbf16> to vector<32x128xbf16>
    %cst_199 = arith.constant dense<0.000000e+00> : vector<5x128xf32>
    %337 = tpu.matmul %334, %336, %cst_199 {dimension_numbers = #tpu.dot_dimension_numbers<[1], [0], [0], [1], [0, 0, 1, 1], [], []>} : vector<5x32xbf16>, vector<32x128xbf16>, vector<5x128xf32> -> vector<5x128xf32>
    %c1_200 = arith.constant 1 : index
    %c0_201 = arith.constant 0 : index
    %338 = vector.load %arg11[%c1_200, %c0_201] : memref<3x128xf32, #tpu.memory_space<vmem>>, vector<1x128xf32>
    %339 = vector.shape_cast %338 : vector<1x128xf32> to vector<128xf32>
    %340 = vector.shape_cast %339 : vector<128xf32> to vector<1x128xf32>
    %341 = vector.broadcast %340 : vector<1x128xf32> to vector<5x128xf32>
    %342 = arith.addf %337, %341 : vector<5x128xf32>
    %343 = arith.mulf %342, %342 : vector<5x128xf32>
    %344 = arith.mulf %342, %343 : vector<5x128xf32>
    %cst_202 = arith.constant 4.471500e-02 : f32
    %345 = vector.broadcast %cst_202 : f32 to vector<5x128xf32>
    %346 = arith.mulf %345, %344 : vector<5x128xf32>
    %347 = arith.addf %342, %346 : vector<5x128xf32>
    %cst_203 = arith.constant 0.797884583 : f32
    %348 = vector.broadcast %cst_203 : f32 to vector<5x128xf32>
    %349 = arith.mulf %348, %347 : vector<5x128xf32>
    %350 = math.tanh %349 : vector<5x128xf32>
    %cst_204 = arith.constant 1.000000e+00 : f32
    %351 = vector.broadcast %cst_204 : f32 to vector<5x128xf32>
    %352 = arith.addf %351, %350 : vector<5x128xf32>
    %cst_205 = arith.constant 5.000000e-01 : f32
    %353 = vector.broadcast %cst_205 : f32 to vector<5x128xf32>
    %354 = arith.mulf %353, %352 : vector<5x128xf32>
    %355 = arith.mulf %342, %354 : vector<5x128xf32>
    %356 = arith.truncf %355 : vector<5x128xf32> to vector<5x128xbf16>
    %c1_206 = arith.constant 1 : index
    %c0_207 = arith.constant 0 : index
    %c0_208 = arith.constant 0 : index
    %357 = vector.load %arg8[%c1_206, %c0_207, %c0_208] : memref<2x128x32xbf16, #tpu.memory_space<vmem>>, vector<1x128x32xbf16>
    %358 = vector.shape_cast %357 : vector<1x128x32xbf16> to vector<128x32xbf16>
    %cst_209 = arith.constant dense<0.000000e+00> : vector<5x32xf32>
    %359 = tpu.matmul %356, %358, %cst_209 {dimension_numbers = #tpu.dot_dimension_numbers<[1], [0], [0], [1], [0, 0, 1, 1], [], []>} : vector<5x128xbf16>, vector<128x32xbf16>, vector<5x32xf32> -> vector<5x32xf32>
    %360 = vector.shape_cast %200 : vector<32xf32> to vector<1x32xf32>
    %361 = vector.broadcast %360 : vector<1x32xf32> to vector<5x32xf32>
    %362 = arith.addf %359, %361 : vector<5x32xf32>
    %363 = vector.shape_cast %202 : vector<32xf32> to vector<1x32xf32>
    %364 = vector.broadcast %363 : vector<1x32xf32> to vector<5x32xf32>
    %365 = arith.mulf %364, %362 : vector<5x32xf32>
    %366 = arith.addf %307, %365 : vector<5x32xf32>
    %367 = tpu.iota {dimensions = array<i32: 0>} : vector<5x1xi32>
    %c0_i32 = arith.constant 0 : i32
    %368 = vector.broadcast %c0_i32 : i32 to vector<5x1xi32>
    %369 = arith.cmpi eq, %367, %368 : vector<5x1xi32>
    %cst_210 = arith.constant 0.000000e+00 : f32
    %cst_211 = arith.constant 2.500000e-01 : f32
    %370 = vector.broadcast %cst_210 : f32 to vector<5x1xf32>
    %371 = vector.broadcast %cst_211 : f32 to vector<5x1xf32>
    %372 = arith.select %369, %370, %371 : vector<5x1xi1>, vector<5x1xf32>
    %373 = vector.broadcast %372 : vector<5x1xf32> to vector<5x32xf32>
    %374 = arith.mulf %366, %373 : vector<5x32xf32>
    %cst_212 = arith.constant dense<0.000000e+00> : vector<32xf32>
    %375 = vector.multi_reduction <add>, %374, %cst_212 [0] : vector<5x32xf32> to vector<32xf32>
    %376 = vector.shape_cast %375 : vector<32xf32> to vector<1x32xf32>
    %c21 = arith.constant 21 : index
    %c0_213 = arith.constant 0 : index
    %377 = vector.load %arg10[%c21, %c0_213] : memref<23x32xf32, #tpu.memory_space<vmem>>, vector<1x32xf32>
    %378 = vector.shape_cast %377 : vector<1x32xf32> to vector<32xf32>
    %c22 = arith.constant 22 : index
    %c0_214 = arith.constant 0 : index
    %379 = vector.load %arg10[%c22, %c0_214] : memref<23x32xf32, #tpu.memory_space<vmem>>, vector<1x32xf32>
    %380 = vector.shape_cast %379 : vector<1x32xf32> to vector<32xf32>
    %cst_215 = arith.constant dense<0.000000e+00> : vector<1xf32>
    %381 = vector.multi_reduction <add>, %376, %cst_215 [1] : vector<1x32xf32> to vector<1xf32>
    %382 = vector.shape_cast %381 : vector<1xf32> to vector<1x1xf32>
    %cst_216 = arith.constant 3.200000e+01 : f32
    %383 = vector.broadcast %cst_216 : f32 to vector<1x1xf32>
    %384 = arith.divf %382, %383 : vector<1x1xf32>
    %385 = vector.broadcast %384 : vector<1x1xf32> to vector<1x32xf32>
    %386 = arith.subf %376, %385 : vector<1x32xf32>
    %387 = vector.broadcast %384 : vector<1x1xf32> to vector<1x32xf32>
    %388 = arith.subf %376, %387 : vector<1x32xf32>
    %389 = arith.mulf %386, %388 : vector<1x32xf32>
    %cst_217 = arith.constant dense<0.000000e+00> : vector<1xf32>
    %390 = vector.multi_reduction <add>, %389, %cst_217 [1] : vector<1x32xf32> to vector<1xf32>
    %391 = vector.shape_cast %390 : vector<1xf32> to vector<1x1xf32>
    %cst_218 = arith.constant 3.200000e+01 : f32
    %392 = vector.broadcast %cst_218 : f32 to vector<1x1xf32>
    %393 = arith.divf %391, %392 : vector<1x1xf32>
    %394 = vector.broadcast %384 : vector<1x1xf32> to vector<1x32xf32>
    %395 = arith.subf %376, %394 : vector<1x32xf32>
    %cst_219 = arith.constant 9.99999996E-13 : f32
    %396 = vector.broadcast %cst_219 : f32 to vector<1x1xf32>
    %397 = arith.addf %393, %396 : vector<1x1xf32>
    %398 = math.rsqrt %397 : vector<1x1xf32>
    %399 = vector.broadcast %398 : vector<1x1xf32> to vector<1x32xf32>
    %400 = arith.mulf %395, %399 : vector<1x32xf32>
    %401 = vector.shape_cast %378 : vector<32xf32> to vector<1x32xf32>
    %402 = arith.mulf %400, %401 : vector<1x32xf32>
    %403 = vector.shape_cast %380 : vector<32xf32> to vector<1x32xf32>
    %404 = arith.addf %402, %403 : vector<1x32xf32>
    %405 = arith.truncf %404 : vector<1x32xf32> to vector<1x32xbf16>
    %c0_220 = arith.constant 0 : index
    %c0_221 = arith.constant 0 : index
    %406 = vector.load %arg9[%c0_220, %c0_221] : memref<32x128xbf16, #tpu.memory_space<vmem>>, vector<32x128xbf16>
    %cst_222 = arith.constant dense<0.000000e+00> : vector<1x128xf32>
    %407 = tpu.matmul %405, %406, %cst_222 {dimension_numbers = #tpu.dot_dimension_numbers<[1], [0], [0], [1], [0, 0, 1, 1], [], []>} : vector<1x32xbf16>, vector<32x128xbf16>, vector<1x128xf32> -> vector<1x128xf32>
    %c2_223 = arith.constant 2 : index
    %c0_224 = arith.constant 0 : index
    %408 = vector.load %arg11[%c2_223, %c0_224] : memref<3x128xf32, #tpu.memory_space<vmem>>, vector<1x128xf32>
    %409 = vector.shape_cast %408 : vector<1x128xf32> to vector<128xf32>
    %410 = vector.shape_cast %409 : vector<128xf32> to vector<1x128xf32>
    %411 = arith.addf %407, %410 : vector<1x128xf32>
    %c0_225 = arith.constant 0 : index
    %c0_226 = arith.constant 0 : index
    %c0_227 = arith.constant 0 : index
    %412 = vector.load %arg12[%c0_225, %c0_226, %c0_227] : memref<1x1x128xf32, #tpu.memory_space<vmem>>, vector<1x1x128xf32>
    %413 = vector.shape_cast %412 : vector<1x1x128xf32> to vector<1x128xf32>
    %414 = vector.shape_cast %411 : vector<1x128xf32> to vector<1x1x128xf32>
    tpu.vector_store %arg12[%c0_225, %c0_226, %c0_227], %414 {strides = array<i32>} : memref<1x1x128xf32, #tpu.memory_space<vmem>>, vector<1x1x128xf32>,
    return
  }
  func.func @transform_0(%arg0: i32) -> (i32, i32, i32) {
    %c0_i32 = arith.constant 0 : i32
    %c0_i32_0 = arith.constant 0 : i32
    %c0_i32_1 = arith.constant 0 : i32
    return %arg0, %c0_i32, %c0_i32_0 : i32, i32, i32
  }
  func.func @transform_1(%arg0: i32) -> (i32, i32, i32, i32) {
    %c0_i32 = arith.constant 0 : i32
    %c0_i32_0 = arith.constant 0 : i32
    %c0_i32_1 = arith.constant 0 : i32
    %c0_i32_2 = arith.constant 0 : i32
    %c0_i32_3 = arith.constant 0 : i32
    return %c0_i32, %c0_i32_0, %c0_i32_1, %c0_i32_2 : i32, i32, i32, i32
  }
  func.func @transform_2(%arg0: i32) -> (i32, i32) {
    %c0_i32 = arith.constant 0 : i32
    %c0_i32_0 = arith.constant 0 : i32
    %c0_i32_1 = arith.constant 0 : i32
    return %c0_i32, %c0_i32_0 : i32, i32
  }
  func.func @transform_3(%arg0: i32) -> (i32, i32, i32, i32, i32) {
    %c0_i32 = arith.constant 0 : i32
    %c0_i32_0 = arith.constant 0 : i32
    %c0_i32_1 = arith.constant 0 : i32
    %c0_i32_2 = arith.constant 0 : i32
    %c0_i32_3 = arith.constant 0 : i32
    %c0_i32_4 = arith.constant 0 : i32
    return %c0_i32, %c0_i32_0, %c0_i32_1, %c0_i32_2, %c0_i32_3 : i32, i32, i32, i32, i32
  }
  func.func @transform_4(%arg0: i32) -> (i32, i32, i32, i32) {
    %c0_i32 = arith.constant 0 : i32
    %c0_i32_0 = arith.constant 0 : i32
    %c0_i32_1 = arith.constant 0 : i32
    %c0_i32_2 = arith.constant 0 : i32
    %c0_i32_3 = arith.constant 0 : i32
    return %c0_i32, %c0_i32_0, %c0_i32_1, %c0_i32_2 : i32, i32, i32, i32
  }
  func.func @transform_5(%arg0: i32) -> (i32, i32, i32, i32) {
    %c0_i32 = arith.constant 0 : i32
    %c0_i32_0 = arith.constant 0 : i32
    %c0_i32_1 = arith.constant 0 : i32
    %c0_i32_2 = arith.constant 0 : i32
    %c0_i32_3 = arith.constant 0 : i32
    return %c0_i32, %c0_i32_0, %c0_i32_1, %c0_i32_2 : i32, i32, i32, i32
  }
  func.func @transform_6(%arg0: i32) -> (i32, i32, i32) {
    %c0_i32 = arith.constant 0 : i32
    %c0_i32_0 = arith.constant 0 : i32
    %c0_i32_1 = arith.constant 0 : i32
    %c0_i32_2 = arith.constant 0 : i32
    return %c0_i32, %c0_i32_0, %c0_i32_1 : i32, i32, i32
  }
  func.func @transform_7(%arg0: i32) -> (i32, i32, i32) {
    %c0_i32 = arith.constant 0 : i32
    %c0_i32_0 = arith.constant 0 : i32
    %c0_i32_1 = arith.constant 0 : i32
    %c0_i32_2 = arith.constant 0 : i32
    return %c0_i32, %c0_i32_0, %c0_i32_1 : i32, i32, i32
  }
  func.func @transform_8(%arg0: i32) -> (i32, i32) {
    %c0_i32 = arith.constant 0 : i32
    %c0_i32_0 = arith.constant 0 : i32
    %c0_i32_1 = arith.constant 0 : i32
    return %c0_i32, %c0_i32_0 : i32, i32
  }
  func.func @transform_9(%arg0: i32) -> (i32, i32) {
    %c0_i32 = arith.constant 0 : i32
    %c0_i32_0 = arith.constant 0 : i32
    %c0_i32_1 = arith.constant 0 : i32
    return %c0_i32, %c0_i32_0 : i32, i32
  }
  func.func @transform_10(%arg0: i32) -> (i32, i32) {
    %c0_i32 = arith.constant 0 : i32
    %c0_i32_0 = arith.constant 0 : i32
    %c0_i32_1 = arith.constant 0 : i32
    return %c0_i32, %c0_i32_0 : i32, i32
  }
  func.func @transform_11(%arg0: i32) -> (i32, i32, i32) {
    %c0_i32 = arith.constant 0 : i32
    %c0_i32_0 = arith.constant 0 : i32
    %c0_i32_1 = arith.constant 0 : i32
    return %arg0, %c0_i32, %c0_i32_0 : i32, i32, i32
  }
}

</mosaic_0001>

<llo_original>
// kernel: other_model_forward.1
$region0: #{other_model_forward.1}
  #allocation0 [shape = 'u32[]', space=smem, size = 0x4, offset = 0x4, fixed_abs, tag = 'smem constant byte address 0x4 - core index']
  #allocation1 [shape = 'u32[144,128]{1,0:T(1,128)}', space=vmem, size = 0x12000, scoped, tag = 'internal scratch']
  %s0 = inlined_call_operand.vmem [shape: f32[2,5,768], index: 0, kind: input, shape index: {}]
  %s1 = inlined_call_operand.vmem [shape: f32[2,2,5,5], index: 1, kind: input, shape index: {}]
  %s2 = inlined_call_operand.vmem [shape: bf16[768,32], index: 2, kind: input, shape index: {}]
  %s3 = inlined_call_operand.vmem [shape: bf16[2,3,2,32,16], index: 3, kind: input, shape index: {}]
  %s4 = inlined_call_operand.vmem [shape: f32[2,2,1,16], index: 4, kind: input, shape index: {}]
  %s5 = inlined_call_operand.vmem [shape: bf16[2,2,16,32], index: 5, kind: input, shape index: {}]
  %s6 = inlined_call_operand.vmem [shape: bf16[2,32,128], index: 6, kind: input, shape index: {}]
  %s7 = inlined_call_operand.vmem [shape: bf16[2,128,32], index: 7, kind: input, shape index: {}]
  %s8 = inlined_call_operand.vmem [shape: bf16[32,128], index: 8, kind: input, shape index: {}]
  %s9 = inlined_call_operand.vmem [shape: f32[23,32], index: 9, kind: input, shape index: {}]
  %s10 = inlined_call_operand.vmem [shape: f32[3,128], index: 10, kind: input, shape index: {}]
  %s11 = inlined_call_operand.hbm [shape: f32[2,1,128], index: 11, kind: output, shape index: {}]
  %s12 = sld [smem:[#allocation0]]
  $region77: #{other_model_forward.1} parent=0
    _
  %s14 = ssub.s32 1, %s12
  %s15 = scalar_select 0, %s14, %s12
  $region1: #{other_model_forward.1} parent=0
    #allocation2 [shape = 'u8[1024]{0}', space=vmem, size = 0x400, scoped, tag = 'output window, operand 0']
    #allocation3 [shape = 's32[2]{0}', space=sflag, size = 0x8, scoped, tag = 'scoped memory for other_model_forward.1']
    %16 = vsyncpa [#allocation3], 0
    %s17 = scalar_lea.sflag [#allocation3], 1
    %18 = vsyncpa %s17, 0
    loop: start=0, step=1, limit=4
    $region2: #{other_model_forward.1} parent=1 // loop_pre_header
      _
    $region3: #{other_model_forward.1} parent=1 // loop_header
      %s20 = sphi 0, %s24
      %p21 = scmp.ge.s32.totalorder %s20, 4
      %s30 = sphi 0, %s32
      %s33 = sphi 0, %s30
      %s34 = sphi 0, %s33
      %s50 = sphi 0, %s34
      %s54 = sphi 0, %s54
      %s56 = sphi 0, %s54
      %s57 = sphi 0, %s56
      %s71 = sphi 0, %s57
      %s75 = sphi 0, %s75
      %s77 = sphi 0, %s75
      %s78 = sphi 0, %s77
      %s92 = sphi 0, %s78
      %s96 = sphi 0, %s96
      %s98 = sphi 0, %s96
      %s99 = sphi 0, %s98
      %s113 = sphi 0, %s99
      %s117 = sphi 0, %s117
      %s119 = sphi 0, %s117
      %s120 = sphi 0, %s119
      %s134 = sphi 0, %s120
      %s138 = sphi 0, %s138
      %s140 = sphi 0, %s138
      %s141 = sphi 0, %s140
      %s155 = sphi 0, %s141
      %s159 = sphi 0, %s159
      %s161 = sphi 0, %s159
      %s162 = sphi 0, %s161
      %s176 = sphi 0, %s162
      %s180 = sphi 0, %s180
      %s182 = sphi 0, %s180
      %s183 = sphi 0, %s182
      %s197 = sphi 0, %s183
      %s201 = sphi 0, %s201
      %s203 = sphi 0, %s201
      %s204 = sphi 0, %s203
      %s218 = sphi 0, %s204
      %s222 = sphi 0, %s222
      %s224 = sphi 0, %s222
      %s225 = sphi 0, %s224
      %s239 = sphi 0, %s225
      %s243 = sphi 0, %s243
      %s245 = sphi 0, %s243
      %s246 = sphi 0, %s245
      %s260 = sphi 0, %s246
      %s266 = sphi 0, %s268
      %s269 = sphi 0, %s266
      %s270 = sphi 0, %s269
      %s286 = sphi 0, %s270
    $region4: #{other_model_forward.1} parent=1 // loop_header_branch
      %23 = sbr.rel (%p21) target = $region8
    $region5: #{other_model_forward.1} parent=1 // loop_body
      %s25 = ssub.s32 %s20, 1
      %s26 = ssub.s32 %s20, 2
      %s27 = sadd.s32 %s20, 1
      %s28 = ssub.s32 %s20, %s27
      %p29 = scmp.eq.s32.totalorder %s28, 0
      %s31 = sadd.s32 %s30, 1
      %s32 = scalar_select %p29, %s30, %s31
      %p35 = pneg %p29
      %p36 = scmp.eq.s32.totalorder %s20, 1
      %p37 = por %p35, %p36
      %p38 = scmp.ne.s32.totalorder %s30, %s33
      %p39 = scmp.eq.s32.totalorder %s20, 0
      %p40 = por %p38, %p39
      %p41 = scmp.ne.s32.totalorder %s30, %s33
      %p42 = scmp.eq.s32.totalorder %s25, 1
      %p43 = por %p41, %p42
      %p44 = scmp.ne.s32.totalorder %s33, %s34
      %p45 = scmp.eq.s32.totalorder %s25, 0
      %p46 = por %p44, %p45
      %p47 = scmp.ne.s32.totalorder %s33, %s34
      %p48 = scmp.eq.s32.totalorder %s26, 1
      %p49 = por %p47, %p48
      %p51 = scmp.ne.s32.totalorder %s34, %s50
      %p52 = scmp.eq.s32.totalorder %s26, 0
      %p53 = por %p51, %p52
      %s55 = sadd.s32 %s54, 1
      %p58 = scmp.eq.s32.totalorder %s20, 1
      %p59 = scmp.ne.s32.totalorder %s54, %s56
      %p60 = scmp.eq.s32.totalorder %s20, 0
      %p61 = por %p59, %p60
      %p62 = scmp.ne.s32.totalorder %s54, %s56
      %p63 = scmp.eq.s32.totalorder %s25, 1
      %p64 = por %p62, %p63
      %p65 = scmp.ne.s32.totalorder %s56, %s57
      %p66 = scmp.eq.s32.totalorder %s25, 0
      %p67 = por %p65, %p66
      %p68 = scmp.ne.s32.totalorder %s56, %s57
      %p69 = scmp.eq.s32.totalorder %s26, 1
      %p70 = por %p68, %p69
      %p72 = scmp.ne.s32.totalorder %s57, %s71
      %p73 = scmp.eq.s32.totalorder %s26, 0
      %p74 = por %p72, %p73
      %s76 = sadd.s32 %s75, 1
      %p79 = scmp.eq.s32.totalorder %s20, 1
      %p80 = scmp.ne.s32.totalorder %s75, %s77
      %p81 = scmp.eq.s32.totalorder %s20, 0
      %p82 = por %p80, %p81
      %p83 = scmp.ne.s32.totalorder %s75, %s77
      %p84 = scmp.eq.s32.totalorder %s25, 1
      %p85 = por %p83, %p84
      %p86 = scmp.ne.s32.totalorder %s77, %s78
      %p87 = scmp.eq.s32.totalorder %s25, 0
      %p88 = por %p86, %p87
      %p89 = scmp.ne.s32.totalorder %s77, %s78
      %p90 = scmp.eq.s32.totalorder %s26, 1
      %p91 = por %p89, %p90
      %p93 = scmp.ne.s32.totalorder %s78, %s92
      %p94 = scmp.eq.s32.totalorder %s26, 0
      %p95 = por %p93, %p94
      %s97 = sadd.s32 %s96, 1
      %p100 = scmp.eq.s32.totalorder %s20, 1
      %p101 = scmp.ne.s32.totalorder %s96, %s98
      %p102 = scmp.eq.s32.totalorder %s20, 0
      %p103 = por %p101, %p102
      %p104 = scmp.ne.s32.totalorder %s96, %s98
      %p105 = scmp.eq.s32.totalorder %s25, 1
      %p106 = por %p104, %p105
      %p107 = scmp.ne.s32.totalorder %s98, %s99
      %p108 = scmp.eq.s32.totalorder %s25, 0
      %p109 = por %p107, %p108
      %p110 = scmp.ne.s32.totalorder %s98, %s99
      %p111 = scmp.eq.s32.totalorder %s26, 1
      %p112 = por %p110, %p111
      %p114 = scmp.ne.s32.totalorder %s99, %s113
      %p115 = scmp.eq.s32.totalorder %s26, 0
      %p116 = por %p114, %p115
      %s118 = sadd.s32 %s117, 1
      %p121 = scmp.eq.s32.totalorder %s20, 1
      %p122 = scmp.ne.s32.totalorder %s117, %s119
      %p123 = scmp.eq.s32.totalorder %s20, 0
      %p124 = por %p122, %p123
      %p125 = scmp.ne.s32.totalorder %s117, %s119
      %p126 = scmp.eq.s32.totalorder %s25, 1
      %p127 = por %p125, %p126
      %p128 = scmp.ne.s32.totalorder %s119, %s120
      %p129 = scmp.eq.s32.totalorder %s25, 0
      %p130 = por %p128, %p129
      %p131 = scmp.ne.s32.totalorder %s119, %s120
      %p132 = scmp.eq.s32.totalorder %s26, 1
      %p133 = por %p131, %p132
      %p135 = scmp.ne.s32.totalorder %s120, %s134
      %p136 = scmp.eq.s32.totalorder %s26, 0
      %p137 = por %p135, %p136
      %s139 = sadd.s32 %s138, 1
      %p142 = scmp.eq.s32.totalorder %s20, 1
      %p143 = scmp.ne.s32.totalorder %s138, %s140
      %p144 = scmp.eq.s32.totalorder %s20, 0
      %p145 = por %p143, %p144
      %p146 = scmp.ne.s32.totalorder %s138, %s140
      %p147 = scmp.eq.s32.totalorder %s25, 1
      %p148 = por %p146, %p147
      %p149 = scmp.ne.s32.totalorder %s140, %s141
      %p150 = scmp.eq.s32.totalorder %s25, 0
      %p151 = por %p149, %p150
      %p152 = scmp.ne.s32.totalorder %s140, %s141
      %p153 = scmp.eq.s32.totalorder %s26, 1
      %p154 = por %p152, %p153
      %p156 = scmp.ne.s32.totalorder %s141, %s155
      %p157 = scmp.eq.s32.totalorder %s26, 0
      %p158 = por %p156, %p157
      %s160 = sadd.s32 %s159, 1
      %p163 = scmp.eq.s32.totalorder %s20, 1
      %p164 = scmp.ne.s32.totalorder %s159, %s161
      %p165 = scmp.eq.s32.totalorder %s20, 0
      %p166 = por %p164, %p165
      %p167 = scmp.ne.s32.totalorder %s159, %s161
      %p168 = scmp.eq.s32.totalorder %s25, 1
      %p169 = por %p167, %p168
      %p170 = scmp.ne.s32.totalorder %s161, %s162
      %p171 = scmp.eq.s32.totalorder %s25, 0
      %p172 = por %p170, %p171
      %p173 = scmp.ne.s32.totalorder %s161, %s162
      %p174 = scmp.eq.s32.totalorder %s26, 1
      %p175 = por %p173, %p174
      %p177 = scmp.ne.s32.totalorder %s162, %s176
      %p178 = scmp.eq.s32.totalorder %s26, 0
      %p179 = por %p177, %p178
      %s181 = sadd.s32 %s180, 1
      %p184 = scmp.eq.s32.totalorder %s20, 1
      %p185 = scmp.ne.s32.totalorder %s180, %s182
      %p186 = scmp.eq.s32.totalorder %s20, 0
      %p187 = por %p185, %p186
      %p188 = scmp.ne.s32.totalorder %s180, %s182
      %p189 = scmp.eq.s32.totalorder %s25, 1
      %p190 = por %p188, %p189
      %p191 = scmp.ne.s32.totalorder %s182, %s183
      %p192 = scmp.eq.s32.totalorder %s25, 0
      %p193 = por %p191, %p192
      %p194 = scmp.ne.s32.totalorder %s182, %s183
      %p195 = scmp.eq.s32.totalorder %s26, 1
      %p196 = por %p194, %p195
      %p198 = scmp.ne.s32.totalorder %s183, %s197
      %p199 = scmp.eq.s32.totalorder %s26, 0
      %p200 = por %p198, %p199
      %s202 = sadd.s32 %s201, 1
      %p205 = scmp.eq.s32.totalorder %s20, 1
      %p206 = scmp.ne.s32.totalorder %s201, %s203
      %p207 = scmp.eq.s32.totalorder %s20, 0
      %p208 = por %p206, %p207
      %p209 = scmp.ne.s32.totalorder %s201, %s203
      %p210 = scmp.eq.s32.totalorder %s25, 1
      %p211 = por %p209, %p210
      %p212 = scmp.ne.s32.totalorder %s203, %s204
      %p213 = scmp.eq.s32.totalorder %s25, 0
      %p214 = por %p212, %p213
      %p215 = scmp.ne.s32.totalorder %s203, %s204
      %p216 = scmp.eq.s32.totalorder %s26, 1
      %p217 = por %p215, %p216
      %p219 = scmp.ne.s32.totalorder %s204, %s218
      %p220 = scmp.eq.s32.totalorder %s26, 0
      %p221 = por %p219, %p220
      %s223 = sadd.s32 %s222, 1
      %p226 = scmp.eq.s32.totalorder %s20, 1
      %p227 = scmp.ne.s32.totalorder %s222, %s224
      %p228 = scmp.eq.s32.totalorder %s20, 0
      %p229 = por %p227, %p228
      %p230 = scmp.ne.s32.totalorder %s222, %s224
      %p231 = scmp.eq.s32.totalorder %s25, 1
      %p232 = por %p230, %p231
      %p233 = scmp.ne.s32.totalorder %s224, %s225
      %p234 = scmp.eq.s32.totalorder %s25, 0
      %p235 = por %p233, %p234
      %p236 = scmp.ne.s32.totalorder %s224, %s225
      %p237 = scmp.eq.s32.totalorder %s26, 1
      %p238 = por %p236, %p237
      %p240 = scmp.ne.s32.totalorder %s225, %s239
      %p241 = scmp.eq.s32.totalorder %s26, 0
      %p242 = por %p240, %p241
      %s244 = sadd.s32 %s243, 1
      %p247 = scmp.eq.s32.totalorder %s20, 1
      %p248 = scmp.ne.s32.totalorder %s243, %s245
      %p249 = scmp.eq.s32.totalorder %s20, 0
      %p250 = por %p248, %p249
      %p251 = scmp.ne.s32.totalorder %s243, %s245
      %p252 = scmp.eq.s32.totalorder %s25, 1
      %p253 = por %p251, %p252
      %p254 = scmp.ne.s32.totalorder %s245, %s246
      %p255 = scmp.eq.s32.totalorder %s25, 0
      %p256 = por %p254, %p255
      %p257 = scmp.ne.s32.totalorder %s245, %s246
      %p258 = scmp.eq.s32.totalorder %s26, 1
      %p259 = por %p257, %p258
      %p261 = scmp.ne.s32.totalorder %s246, %s260
      %p262 = scmp.eq.s32.totalorder %s26, 0
      %p263 = por %p261, %p262
      %s264 = ssub.s32 %s20, %s27
      %p265 = scmp.eq.s32.totalorder %s264, 0
      %s267 = sadd.s32 %s266, 1
      %s268 = scalar_select %p265, %s266, %s267
      %p271 = pneg %p265
      %p272 = scmp.eq.s32.totalorder %s20, 1
      %p273 = por %p271, %p272
      %p274 = scmp.ne.s32.totalorder %s266, %s269
      %p275 = scmp.eq.s32.totalorder %s20, 0
      %p276 = por %p274, %p275
      %p277 = scmp.ne.s32.totalorder %s266, %s269
      %p278 = scmp.eq.s32.totalorder %s25, 1
      %p279 = por %p277, %p278
      %p280 = scmp.ne.s32.totalorder %s269, %s270
      %p281 = scmp.eq.s32.totalorder %s25, 0
      %p282 = por %p280, %p281
      %p283 = scmp.ne.s32.totalorder %s269, %s270
      %p284 = scmp.eq.s32.totalorder %s26, 1
      %p285 = por %p283, %p284
      %p287 = scmp.ne.s32.totalorder %s270, %s286
      %p288 = scmp.eq.s32.totalorder %s26, 0
      %p289 = por %p287, %p288
      %p290 = scmp.le.s32.totalorder 1, %s20
      %p291 = scmp.lt.s32.totalorder %s20, 3
      %p292 = pnand %p290, %p291
      %p293 = pneg %p292
      // Predicated region
      $region9: #{other_model_forward.1} parent=5 // pred_check
        _
      $region10: #{other_model_forward.1} parent=5 // pred_check_branch
        %295 = sbr.rel (%p292) target = $region12
      $region11: #{other_model_forward.1} parent=5 // pred_region
        %s296 = ssub.s32 %s20, 1
        // Predicated region
        $region13: #{other_model_forward.1} parent=11 // pred_check
          %p297 = pneg %p67
        $region14: #{other_model_forward.1} parent=11 // pred_check_branch
          %299 = sbr.rel (%p297) target = $region16
        $region15: #{other_model_forward.1} parent=11 // pred_region
          _
        $region16: #{other_model_forward.1} parent=11 // pred_fallthru
          _
        // Predicated region
        $region17: #{other_model_forward.1} parent=11 // pred_check
          %p300 = pneg %p88
        $region18: #{other_model_forward.1} parent=11 // pred_check_branch
          %302 = sbr.rel (%p300) target = $region20
        $region19: #{other_model_forward.1} parent=11 // pred_region
          _
        $region20: #{other_model_forward.1} parent=11 // pred_fallthru
          _
        // Predicated region
        $region21: #{other_model_forward.1} parent=11 // pred_check
          %p303 = pneg %p109
        $region22: #{other_model_forward.1} parent=11 // pred_check_branch
          %305 = sbr.rel (%p303) target = $region24
        $region23: #{other_model_forward.1} parent=11 // pred_region
          _
        $region24: #{other_model_forward.1} parent=11 // pred_fallthru
          _
        // Predicated region
        $region25: #{other_model_forward.1} parent=11 // pred_check
          %p306 = pneg %p130
        $region26: #{other_model_forward.1} parent=11 // pred_check_branch
          %308 = sbr.rel (%p306) target = $region28
        $region27: #{other_model_forward.1} parent=11 // pred_region
          _
        $region28: #{other_model_forward.1} parent=11 // pred_fallthru
          _
        // Predicated region
        $region29: #{other_model_forward.1} parent=11 // pred_check
          %p309 = pneg %p151
        $region30: #{other_model_forward.1} parent=11 // pred_check_branch
          %311 = sbr.rel (%p309) target = $region32
        $region31: #{other_model_forward.1} parent=11 // pred_region
          _
        $region32: #{other_model_forward.1} parent=11 // pred_fallthru
          _
        // Predicated region
        $region33: #{other_model_forward.1} parent=11 // pred_check
          %p312 = pneg %p172
        $region34: #{other_model_forward.1} parent=11 // pred_check_branch
          %314 = sbr.rel (%p312) target = $region36
        $region35: #{other_model_forward.1} parent=11 // pred_region
          _
        $region36: #{other_model_forward.1} parent=11 // pred_fallthru
          _
        // Predicated region
        $region37: #{other_model_forward.1} parent=11 // pred_check
          %p315 = pneg %p193
        $region38: #{other_model_forward.1} parent=11 // pred_check_branch
          %317 = sbr.rel (%p315) target = $region40
        $region39: #{other_model_forward.1} parent=11 // pred_region
          _
        $region40: #{other_model_forward.1} parent=11 // pred_fallthru
          _
        // Predicated region
        $region41: #{other_model_forward.1} parent=11 // pred_check
          %p318 = pneg %p214
        $region42: #{other_model_forward.1} parent=11 // pred_check_branch
          %320 = sbr.rel (%p318) target = $region44
        $region43: #{other_model_forward.1} parent=11 // pred_region
          _
        $region44: #{other_model_forward.1} parent=11 // pred_fallthru
          _
        // Predicated region
        $region45: #{other_model_forward.1} parent=11 // pred_check
          %p321 = pneg %p235
        $region46: #{other_model_forward.1} parent=11 // pred_check_branch
          %323 = sbr.rel (%p321) target = $region48
        $region47: #{other_model_forward.1} parent=11 // pred_region
          _
        $region48: #{other_model_forward.1} parent=11 // pred_fallthru
          _
        // Predicated region
        $region49: #{other_model_forward.1} parent=11 // pred_check
          %p324 = pneg %p256
        $region50: #{other_model_forward.1} parent=11 // pred_check_branch
          %326 = sbr.rel (%p324) target = $region52
        $region51: #{other_model_forward.1} parent=11 // pred_region
          _
        $region52: #{other_model_forward.1} parent=11 // pred_fallthru
          _
      $region12: #{other_model_forward.1} parent=5 // pred_fallthru
        _
      %p327 = scmp.lt.s32.totalorder %s20, 2
      // Predicated region
      $region53: #{other_model_forward.1} parent=5 // pred_check
        %p328 = pneg %p327
      $region54: #{other_model_forward.1} parent=5 // pred_check_branch
        %330 = sbr.rel (%p328) target = $region56
      $region55: #{other_model_forward.1} parent=5 // pred_region
        // Predicated region
        $region57: #{other_model_forward.1} parent=55 // pred_check
          %p331 = pneg %p40
        $region58: #{other_model_forward.1} parent=55 // pred_check_branch
          %333 = sbr.rel (%p331) target = $region60
        $region59: #{other_model_forward.1} parent=55 // pred_region
          %p334 = scmp.lt.s32.totalorder %s20, 1
          %s335 = scalar_select %p334, %s20, 1
          %s336 = smul.addr %s335, 6
          %s337 = smul.addr %s336, 8
          %s338 = scalar_lea.vmem %s0, %s337
        $region60: #{other_model_forward.1} parent=55 // pred_fallthru
          _
      $region56: #{other_model_forward.1} parent=5 // pred_fallthru
        _
      %p339 = scmp.le.s32.totalorder 1, %s20
      %p340 = scmp.lt.s32.totalorder %s20, 3
      %p341 = pnand %p339, %p340
      %p342 = pneg %p341
      // Predicated region
      $region61: #{other_model_forward.1} parent=5 // pred_check
        _
      $region62: #{other_model_forward.1} parent=5 // pred_check_branch
        %344 = sbr.rel (%p341) target = $region64
      $region63: #{other_model_forward.1} parent=5 // pred_region
        %s345 = ssub.s32 %s20, 1
        %p346 = scmp.lt.s32.totalorder %s25, 1
        %s347 = scalar_select %p346, %s25, 1
        %s348 = smul.addr %s347, 6
        %s349 = smul.addr %s348, 8
        %s350 = scalar_lea.vmem %s0, %s349
        %p351 = pneg %p46
        %p352 = pneg %p43
        %p353 = pneg %p67
        %p354 = pneg %p64
        %p355 = pneg %p88
        %p356 = pneg %p85
        %p357 = pneg %p109
        %p358 = pneg %p106
        %p359 = pneg %p130
        %p360 = pneg %p127
        %p361 = pneg %p151
        %p362 = pneg %p148
        %p363 = pneg %p172
        %p364 = pneg %p169
        %p365 = pneg %p193
        %p366 = pneg %p190
        %p367 = pneg %p214
        %p368 = pneg %p211
        %p369 = pneg %p235
        %p370 = pneg %p232
        %p371 = pneg %p256
        %p372 = pneg %p253
        %p373 = pneg %p282
        %p374 = pneg %p279
        %s375 = sand.u32 %s269, 1
        %s376 = scalar_lea.sflag [#allocation3], %s375
        %s377 = sand.u32 %s269, 1
        %s378 = scalar_lea.vmem [#allocation2], %s377
        %p379 = scmp.lt.s32.totalorder %s25, 1
        %s380 = scalar_select %p379, %s25, 1
        %s381 = smul.addr %s380, 6
        %s382 = smul.addr %s381, 8
        %s383 = scalar_lea.vmem %s0, %s382
        %v385 = vld [vmem:[%s383] sm:$0x1f]
        %v386 = vld [vmem:[%s383 + $0x8] sm:$0x1f]
        %v387 = vld [vmem:[%s383 + $0x10] sm:$0x1f]
        %v388 = vld [vmem:[%s383 + $0x18] sm:$0x1f]
        %v389 = vld [vmem:[%s383 + $0x20] sm:$0x1f]
        %v390 = vld [vmem:[%s383 + $0x28] sm:$0x1f]
        %v391 = vpack.c.bf16 %v385, %v385
        %v392 = vpack.c.bf16 %v386, %v386
        %v393 = vpack.c.bf16 %v387, %v387
        %v394 = vpack.c.bf16 %v388, %v388
        %v395 = vpack.c.bf16 %v389, %v389
        %v396 = vpack.c.bf16 %v390, %v390
        %v397 = vld [vmem:[%s2] sm:$0xf]
        %v398 = vld [vmem:[%s2 + $0x4] sm:$0xf]
        %v399 = vld [vmem:[%s2 + $0x8] sm:$0xf]
        %v400 = vld [vmem:[%s2 + $0xc] sm:$0xf]
        %v401 = vld [vmem:[%s2 + $0x10] sm:$0xf]
        %v402 = vld [vmem:[%s2 + $0x14] sm:$0xf]
        %v403 = vld [vmem:[%s2 + $0x18] sm:$0xf]
        %v404 = vld [vmem:[%s2 + $0x1c] sm:$0xf]
        %v405 = vld [vmem:[%s2 + $0x20] sm:$0xf]
        %v406 = vld [vmem:[%s2 + $0x24] sm:$0xf]
        %v407 = vld [vmem:[%s2 + $0x28] sm:$0xf]
        %v408 = vld [vmem:[%s2 + $0x2c] sm:$0xf]
        %v409 = vld [vmem:[%s2 + $0x30] sm:$0xf]
        %v410 = vld [vmem:[%s2 + $0x34] sm:$0xf]
        %v411 = vld [vmem:[%s2 + $0x38] sm:$0xf]
        %v412 = vld [vmem:[%s2 + $0x3c] sm:$0xf]
        %v413 = vld [vmem:[%s2 + $0x40] sm:$0xf]
        %v414 = vld [vmem:[%s2 + $0x44] sm:$0xf]
        %v415 = vld [vmem:[%s2 + $0x48] sm:$0xf]
        %v416 = vld [vmem:[%s2 + $0x4c] sm:$0xf]
        %v417 = vld [vmem:[%s2 + $0x50] sm:$0xf]
        %v418 = vld [vmem:[%s2 + $0x54] sm:$0xf]
        %v419 = vld [vmem:[%s2 + $0x58] sm:$0xf]
        %v420 = vld [vmem:[%s2 + $0x5c] sm:$0xf]
        %v421 = vld [vmem:[%s2 + $0x60] sm:$0xf]
        %v422 = vld [vmem:[%s2 + $0x64] sm:$0xf]
        %v423 = vld [vmem:[%s2 + $0x68] sm:$0xf]
        %v424 = vld [vmem:[%s2 + $0x6c] sm:$0xf]
        %v425 = vld [vmem:[%s2 + $0x70] sm:$0xf]
        %v426 = vld [vmem:[%s2 + $0x74] sm:$0xf]
        %v427 = vld [vmem:[%s2 + $0x78] sm:$0xf]
        %v428 = vld [vmem:[%s2 + $0x7c] sm:$0xf]
        %v429 = vld [vmem:[%s2 + $0x80] sm:$0xf]
        %v430 = vld [vmem:[%s2 + $0x84] sm:$0xf]
        %v431 = vld [vmem:[%s2 + $0x88] sm:$0xf]
        %v432 = vld [vmem:[%s2 + $0x8c] sm:$0xf]
        %v433 = vld [vmem:[%s2 + $0x90] sm:$0xf]
        %v434 = vld [vmem:[%s2 + $0x94] sm:$0xf]
        %v435 = vld [vmem:[%s2 + $0x98] sm:$0xf]
        %v436 = vld [vmem:[%s2 + $0x9c] sm:$0xf]
        %v437 = vld [vmem:[%s2 + $0xa0] sm:$0xf]
        %v438 = vld [vmem:[%s2 + $0xa4] sm:$0xf]
        %v439 = vld [vmem:[%s2 + $0xa8] sm:$0xf]
        %v440 = vld [vmem:[%s2 + $0xac] sm:$0xf]
        %v441 = vld [vmem:[%s2 + $0xb0] sm:$0xf]
        %v442 = vld [vmem:[%s2 + $0xb4] sm:$0xf]
        %v443 = vld [vmem:[%s2 + $0xb8] sm:$0xf]
        %v444 = vld [vmem:[%s2 + $0xbc] sm:$0xf]
        %v445 = vld [vmem:[%s2 + $0xc0] sm:$0xf]
        %v446 = vld [vmem:[%s2 + $0xc4] sm:$0xf]
        %v447 = vld [vmem:[%s2 + $0xc8] sm:$0xf]
        %v448 = vld [vmem:[%s2 + $0xcc] sm:$0xf]
        %v449 = vld [vmem:[%s2 + $0xd0] sm:$0xf]
        %v450 = vld [vmem:[%s2 + $0xd4] sm:$0xf]
        %v451 = vld [vmem:[%s2 + $0xd8] sm:$0xf]
        %v452 = vld [vmem:[%s2 + $0xdc] sm:$0xf]
        %v453 = vld [vmem:[%s2 + $0xe0] sm:$0xf]
        %v454 = vld [vmem:[%s2 + $0xe4] sm:$0xf]
        %v455 = vld [vmem:[%s2 + $0xe8] sm:$0xf]
        %v456 = vld [vmem:[%s2 + $0xec] sm:$0xf]
        %v457 = vld [vmem:[%s2 + $0xf0] sm:$0xf]
        %v458 = vld [vmem:[%s2 + $0xf4] sm:$0xf]
        %v459 = vld [vmem:[%s2 + $0xf8] sm:$0xf]
        %v460 = vld [vmem:[%s2 + $0xfc] sm:$0xf]
        %v461 = vld [vmem:[%s2 + $0x100] sm:$0xf]
        %v462 = vld [vmem:[%s2 + $0x104] sm:$0xf]
        %v463 = vld [vmem:[%s2 + $0x108] sm:$0xf]
        %v464 = vld [vmem:[%s2 + $0x10c] sm:$0xf]
        %v465 = vld [vmem:[%s2 + $0x110] sm:$0xf]
        %v466 = vld [vmem:[%s2 + $0x114] sm:$0xf]
        %v467 = vld [vmem:[%s2 + $0x118] sm:$0xf]
        %v468 = vld [vmem:[%s2 + $0x11c] sm:$0xf]
        %v469 = vld [vmem:[%s2 + $0x120] sm:$0xf]
        %v470 = vld [vmem:[%s2 + $0x124] sm:$0xf]
        %v471 = vld [vmem:[%s2 + $0x128] sm:$0xf]
        %v472 = vld [vmem:[%s2 + $0x12c] sm:$0xf]
        %v473 = vld [vmem:[%s2 + $0x130] sm:$0xf]
        %v474 = vld [vmem:[%s2 + $0x134] sm:$0xf]
        %v475 = vld [vmem:[%s2 + $0x138] sm:$0xf]
        %v476 = vld [vmem:[%s2 + $0x13c] sm:$0xf]
        %v477 = vld [vmem:[%s2 + $0x140] sm:$0xf]
        %v478 = vld [vmem:[%s2 + $0x144] sm:$0xf]
        %v479 = vld [vmem:[%s2 + $0x148] sm:$0xf]
        %v480 = vld [vmem:[%s2 + $0x14c] sm:$0xf]
        %v481 = vld [vmem:[%s2 + $0x150] sm:$0xf]
        %v482 = vld [vmem:[%s2 + $0x154] sm:$0xf]
        %v483 = vld [vmem:[%s2 + $0x158] sm:$0xf]
        %v484 = vld [vmem:[%s2 + $0x15c] sm:$0xf]
        %v485 = vld [vmem:[%s2 + $0x160] sm:$0xf]
        %v486 = vld [vmem:[%s2 + $0x164] sm:$0xf]
        %v487 = vld [vmem:[%s2 + $0x168] sm:$0xf]
        %v488 = vld [vmem:[%s2 + $0x16c] sm:$0xf]
        %v489 = vld [vmem:[%s2 + $0x170] sm:$0xf]
        %v490 = vld [vmem:[%s2 + $0x174] sm:$0xf]
        %v491 = vld [vmem:[%s2 + $0x178] sm:$0xf]
        %v492 = vld [vmem:[%s2 + $0x17c] sm:$0xf]
        %v493 = vld [vmem:[%s9] sm:$0x1f]
        %v590 = vunpack.c.l.b16 %v397
        %v591 = vunpack.c.l.b16 %v398
        %v592 = vunpack.c.l.b16 %v399
        %v593 = vunpack.c.l.b16 %v400
        %v594 = vunpack.c.l.b16 %v401
        %v595 = vunpack.c.l.b16 %v402
        %v596 = vunpack.c.l.b16 %v403
        %v597 = vunpack.c.l.b16 %v404
        %v598 = vunpack.c.l.b16 %v405
        %v599 = vunpack.c.l.b16 %v406
        %v600 = vunpack.c.l.b16 %v407
        %v601 = vunpack.c.l.b16 %v408
        %v602 = vunpack.c.l.b16 %v409
        %v603 = vunpack.c.l.b16 %v410
        %v604 = vunpack.c.l.b16 %v411
        %v605 = vunpack.c.l.b16 %v412
        %v606 = vunpack.c.l.b16 %v413
        %v607 = vunpack.c.l.b16 %v414
        %v608 = vunpack.c.l.b16 %v415
        %v609 = vunpack.c.l.b16 %v416
        %v610 = vunpack.c.l.b16 %v417
        %v611 = vunpack.c.l.b16 %v418
        %v612 = vunpack.c.l.b16 %v419
        %v613 = vunpack.c.l.b16 %v420
        %v614 = vunpack.c.l.b16 %v421
        %v615 = vunpack.c.l.b16 %v422
        %v616 = vunpack.c.l.b16 %v423
        %v617 = vunpack.c.l.b16 %v424
        %v618 = vunpack.c.l.b16 %v425
        %v619 = vunpack.c.l.b16 %v426
        %v620 = vunpack.c.l.b16 %v427
        %v621 = vunpack.c.l.b16 %v428
        %v622 = vunpack.c.l.b16 %v429
        %v623 = vunpack.c.l.b16 %v430
        %v624 = vunpack.c.l.b16 %v431
        %v625 = vunpack.c.l.b16 %v432
        %v626 = vunpack.c.l.b16 %v433
        %v627 = vunpack.c.l.b16 %v434
        %v628 = vunpack.c.l.b16 %v435
        %v629 = vunpack.c.l.b16 %v436
        %v630 = vunpack.c.l.b16 %v437
        %v631 = vunpack.c.l.b16 %v438
        %v632 = vunpack.c.l.b16 %v439
        %v633 = vunpack.c.l.b16 %v440
        %v634 = vunpack.c.l.b16 %v441
        %v635 = vunpack.c.l.b16 %v442
        %v636 = vunpack.c.l.b16 %v443
        %v637 = vunpack.c.l.b16 %v444
        %v638 = vunpack.c.l.b16 %v445
        %v639 = vunpack.c.l.b16 %v446
        %v640 = vunpack.c.l.b16 %v447
        %v641 = vunpack.c.l.b16 %v448
        %v642 = vunpack.c.l.b16 %v449
        %v643 = vunpack.c.l.b16 %v450
        %v644 = vunpack.c.l.b16 %v451
        %v645 = vunpack.c.l.b16 %v452
        %v646 = vunpack.c.l.b16 %v453
        %v647 = vunpack.c.l.b16 %v454
        %v648 = vunpack.c.l.b16 %v455
        %v649 = vunpack.c.l.b16 %v456
        %v650 = vunpack.c.l.b16 %v457
        %v651 = vunpack.c.l.b16 %v458
        %v652 = vunpack.c.l.b16 %v459
        %v653 = vunpack.c.l.b16 %v460
        %v654 = vunpack.c.l.b16 %v461
        %v655 = vunpack.c.l.b16 %v462
        %v656 = vunpack.c.l.b16 %v463
        %v657 = vunpack.c.l.b16 %v464
        %v658 = vunpack.c.l.b16 %v465
        %v659 = vunpack.c.l.b16 %v466
        %v660 = vunpack.c.l.b16 %v467
        %v661 = vunpack.c.l.b16 %v468
        %v662 = vunpack.c.l.b16 %v469
        %v663 = vunpack.c.l.b16 %v470
        %v664 = vunpack.c.l.b16 %v471
        %v665 = vunpack.c.l.b16 %v472
        %v666 = vunpack.c.l.b16 %v473
        %v667 = vunpack.c.l.b16 %v474
        %v668 = vunpack.c.l.b16 %v475
        %v669 = vunpack.c.l.b16 %v476
        %v670 = vunpack.c.l.b16 %v477
        %v671 = vunpack.c.l.b16 %v478
        %v672 = vunpack.c.l.b16 %v479
        %v673 = vunpack.c.l.b16 %v480
        %v674 = vunpack.c.l.b16 %v481
        %v675 = vunpack.c.l.b16 %v482
        %v676 = vunpack.c.l.b16 %v483
        %v677 = vunpack.c.l.b16 %v484
        %v678 = vunpack.c.l.b16 %v485
        %v679 = vunpack.c.l.b16 %v486
        %v680 = vunpack.c.l.b16 %v487
        %v681 = vunpack.c.l.b16 %v488
        %v682 = vunpack.c.l.b16 %v489
        %v683 = vunpack.c.l.b16 %v490
        %v684 = vunpack.c.l.b16 %v491
        %v685 = vunpack.c.l.b16 %v492
        %v686 = vpack.c.b16 %v591, %v590
        %v687 = vpack.c.b16 %v593, %v592
        %v688 = vpack.c.b16 %v595, %v594
        %v689 = vpack.c.b16 %v597, %v596
        %v690 = vpack.c.b16 %v599, %v598
        %v691 = vpack.c.b16 %v601, %v600
        %v692 = vpack.c.b16 %v603, %v602
        %v693 = vpack.c.b16 %v605, %v604
        %v694 = vpack.c.b16 %v607, %v606
        %v695 = vpack.c.b16 %v609, %v608
        %v696 = vpack.c.b16 %v611, %v610
        %v697 = vpack.c.b16 %v613, %v612
        %v698 = vpack.c.b16 %v615, %v614
        %v699 = vpack.c.b16 %v617, %v616
        %v700 = vpack.c.b16 %v619, %v618
        %v701 = vpack.c.b16 %v621, %v620
        %v702 = vpack.c.b16 %v623, %v622
        %v703 = vpack.c.b16 %v625, %v624
        %v704 = vpack.c.b16 %v627, %v626
        %v705 = vpack.c.b16 %v629, %v628
        %v706 = vpack.c.b16 %v631, %v630
        %v707 = vpack.c.b16 %v633, %v632
        %v708 = vpack.c.b16 %v635, %v634
        %v709 = vpack.c.b16 %v637, %v636
        %v710 = vpack.c.b16 %v639, %v638
        %v711 = vpack.c.b16 %v641, %v640
        %v712 = vpack.c.b16 %v643, %v642
        %v713 = vpack.c.b16 %v645, %v644
        %v714 = vpack.c.b16 %v647, %v646
        %v715 = vpack.c.b16 %v649, %v648
        %v716 = vpack.c.b16 %v651, %v650
        %v717 = vpack.c.b16 %v653, %v652
        %v718 = vpack.c.b16 %v655, %v654
        %v719 = vpack.c.b16 %v657, %v656
        %v720 = vpack.c.b16 %v659, %v658
        %v721 = vpack.c.b16 %v661, %v660
        %v722 = vpack.c.b16 %v663, %v662
        %v723 = vpack.c.b16 %v665, %v664
        %v724 = vpack.c.b16 %v667, %v666
        %v725 = vpack.c.b16 %v669, %v668
        %v726 = vpack.c.b16 %v671, %v670
        %v727 = vpack.c.b16 %v673, %v672
        %v728 = vpack.c.b16 %v675, %v674
        %v729 = vpack.c.b16 %v677, %v676
        %v730 = vpack.c.b16 %v679, %v678
        %v731 = vpack.c.b16 %v681, %v680
        %v732 = vpack.c.b16 %v683, %v682
        %v733 = vpack.c.b16 %v685, %v684
        %782 = vmatprep.subr.bf16.mxu0 0
        %783 = vmatpush1.bf16.msra.mxu0 %v686
        %784 = vmatprep.subr.bf16.mxu0 0
        %785 = vmatpush1.bf16.msra.mxu0 %v687
        %786 = vmatprep.subr.bf16.mxu0 0
        %787 = vmatpush1.bf16.msra.mxu0 %v688
        %788 = vmatprep.subr.bf16.mxu0 0
        %789 = vmatpush1.bf16.msra.mxu0 %v689
        %790 = vmatprep.subr.bf16.mxu0 0
        %791 = vmatpush1.bf16.msra.mxu0 %v690
        %792 = vmatprep.subr.bf16.mxu0 0
        %793 = vmatpush1.bf16.msra.mxu0 %v691
        %794 = vmatprep.subr.bf16.mxu0 0
        %795 = vmatpush1.bf16.msra.mxu0 %v692
        %796 = vmatprep.subr.bf16.mxu0 0
        %797 = vmatpush1.bf16.msra.mxu0 %v693
        %798 = vmatprep.subr.bf16.mxu0 0
        %799 = vmatpush1.bf16.msra.mxu0 %v694
        %800 = vmatprep.subr.bf16.mxu0 0
        %801 = vmatpush1.bf16.msra.mxu0 %v695
        %802 = vmatprep.subr.bf16.mxu0 0
        %803 = vmatpush1.bf16.msra.mxu0 %v696
        %804 = vmatprep.subr.bf16.mxu0 0
        %805 = vmatpush1.bf16.msra.mxu0 %v697
        %806 = vmatprep.subr.bf16.mxu0 0
        %807 = vmatpush1.bf16.msra.mxu0 %v698
        %808 = vmatprep.subr.bf16.mxu0 0
        %809 = vmatpush1.bf16.msra.mxu0 %v699
        %810 = vmatprep.subr.bf16.mxu0 0
        %811 = vmatpush1.bf16.msra.mxu0 %v700
        %812 = vmatprep.subr.bf16.mxu0 0
        %813 = vmatpush1.bf16.msra.mxu0 %v701
        %814 = vmatprep.mubr.bf16.mxu0 %v392
        %815 = vmatmul.mubr.bf16.gmra.mrb[0].mxu0 %v391
        %v816 = vpop.f32.mrb[0].mxu0
        %v817 = vadd.f32 %v493, %v816
        %v818 = vpop.f32.mrb[0].mxu0
        %v819 = vpop.f32.mrb[0].mxu0
        %v820 = vpop.f32.mrb[0].mxu0
        %821 = vdwg.mxu0
        %822 = vmatprep.subr.bf16.mxu0 0
        %823 = vmatpush1.bf16.msra.mxu0 %v702
        %824 = vmatprep.subr.bf16.mxu0 0
        %825 = vmatpush1.bf16.msra.mxu0 %v703
        %826 = vmatprep.subr.bf16.mxu0 0
        %827 = vmatpush1.bf16.msra.mxu0 %v704
        %828 = vmatprep.subr.bf16.mxu0 0
        %829 = vmatpush1.bf16.msra.mxu0 %v705
        %830 = vmatprep.subr.bf16.mxu0 0
        %831 = vmatpush1.bf16.msra.mxu0 %v706
        %832 = vmatprep.subr.bf16.mxu0 0
        %833 = vmatpush1.bf16.msra.mxu0 %v707
        %834 = vmatprep.subr.bf16.mxu0 0
        %835 = vmatpush1.bf16.msra.mxu0 %v708
        %836 = vmatprep.subr.bf16.mxu0 0
        %837 = vmatpush1.bf16.msra.mxu0 %v709
        %838 = vmatprep.subr.bf16.mxu0 0
        %839 = vmatpush1.bf16.msra.mxu0 %v710
        %840 = vmatprep.subr.bf16.mxu0 0
        %841 = vmatpush1.bf16.msra.mxu0 %v711
        %842 = vmatprep.subr.bf16.mxu0 0
        %843 = vmatpush1.bf16.msra.mxu0 %v712
        %844 = vmatprep.subr.bf16.mxu0 0
        %845 = vmatpush1.bf16.msra.mxu0 %v713
        %846 = vmatprep.subr.bf16.mxu0 0
        %847 = vmatpush1.bf16.msra.mxu0 %v714
        %848 = vmatprep.subr.bf16.mxu0 0
        %849 = vmatpush1.bf16.msra.mxu0 %v715
        %850 = vmatprep.subr.bf16.mxu0 0
        %851 = vmatpush1.bf16.msra.mxu0 %v716
        %852 = vmatprep.subr.bf16.mxu0 0
        %853 = vmatpush1.bf16.msra.mxu0 %v717
        %854 = vmatprep.mubr.bf16.mxu0 %v394
        %855 = vmatmul.mubr.bf16.gmra.mrb[0].mxu0 %v393
        %v856 = vpop.f32.mrb[0].mxu0
        %v857 = vadd.f32 %v817, %v856
        %v858 = vpop.f32.mrb[0].mxu0
        %v859 = vpop.f32.mrb[0].mxu0
        %v860 = vpop.f32.mrb[0].mxu0
        %861 = vdwg.mxu0
        %862 = vmatprep.subr.bf16.mxu0 0
        %863 = vmatpush1.bf16.msra.mxu0 %v718
        %864 = vmatprep.subr.bf16.mxu0 0
        %865 = vmatpush1.bf16.msra.mxu0 %v719
        %866 = vmatprep.subr.bf16.mxu0 0
        %867 = vmatpush1.bf16.msra.mxu0 %v720
        %868 = vmatprep.subr.bf16.mxu0 0
        %869 = vmatpush1.bf16.msra.mxu0 %v721
        %870 = vmatprep.subr.bf16.mxu0 0
        %871 = vmatpush1.bf16.msra.mxu0 %v722
        %872 = vmatprep.subr.bf16.mxu0 0
        %873 = vmatpush1.bf16.msra.mxu0 %v723
        %874 = vmatprep.subr.bf16.mxu0 0
        %875 = vmatpush1.bf16.msra.mxu0 %v724
        %876 = vmatprep.subr.bf16.mxu0 0
        %877 = vmatpush1.bf16.msra.mxu0 %v725
        %878 = vmatprep.subr.bf16.mxu0 0
        %879 = vmatpush1.bf16.msra.mxu0 %v726
        %880 = vmatprep.subr.bf16.mxu0 0
        %881 = vmatpush1.bf16.msra.mxu0 %v727
        %882 = vmatprep.subr.bf16.mxu0 0
        %883 = vmatpush1.bf16.msra.mxu0 %v728
        %884 = vmatprep.subr.bf16.mxu0 0
        %885 = vmatpush1.bf16.msra.mxu0 %v729
        %886 = vmatprep.subr.bf16.mxu0 0
        %887 = vmatpush1.bf16.msra.mxu0 %v730
        %888 = vmatprep.subr.bf16.mxu0 0
        %889 = vmatpush1.bf16.msra.mxu0 %v731
        %890 = vmatprep.subr.bf16.mxu0 0
        %891 = vmatpush1.bf16.msra.mxu0 %v732
        %892 = vmatprep.subr.bf16.mxu0 0
        %893 = vmatpush1.bf16.msra.mxu0 %v733
        %894 = vmatprep.mubr.bf16.mxu0 %v396
        %895 = vmatmul.mubr.bf16.gmra.mrb[0].mxu0 %v395
        %v896 = vpop.f32.mrb[0].mxu0
        %v897 = vadd.f32 %v857, %v896
        %v898 = vpop.f32.mrb[0].mxu0
        %v899 = vpop.f32.mrb[0].mxu0
        %v900 = vpop.f32.mrb[0].mxu0
        %901 = vdwg.mxu0
        %v902 = vld [vmem:[%s9 + $0x5] sm:$0x1]
        %v903 = vld [vmem:[%s9 + $0x6] sm:$0x1]
        %v904 = vld [vmem:[%s9 + $0x7] sm:$0x1]
        %v905 = vld [vmem:[%s9 + $0x8] sm:$0x1]
        %v906 = vld [vmem:[%s9 + $0x9] sm:$0x1]
        %v907 = vld [vmem:[%s9 + $0xa] sm:$0x1]
        %v908 = vld [vmem:[%s9 + $0xb] sm:$0x1]
        %v909 = vld [vmem:[%s9 + $0xc] sm:$0x1]
        %vm910 = vcmask 258048
        %v911 = vsel %vm910, %v897, 0.0
        %912 = vadd.xlane.f32.xlu0 %v911
        %v913 = vpop.xlane.xlu0 %912
        %v914 = vrcp.pop 32.0
        %v915 = vmul.f32 %v913, %v914
        %v916 = vsub.f32 %v897, %v915
        %v917 = vmul.f32 %v916, %v916
        %v918 = vsel %vm910, %v917, 0.0
        %919 = vadd.xlane.f32.xlu0 %v918
        %v920 = vpop.xlane.xlu0 %919
        %v921 = vmul.f32 %v920, %v914
        %v922 = vadd.f32 %v921, 1e-12
        %v923 = vrsqrt.pop %v922
        %v924 = vmul.f32 %v916, %v923
        %v925 = vlaneseq
        %v926 = vshrl.u32 %v925, 7
        %v927 = vsub.s32 0, %v926
        %v928 = vrot.slane %v902, %v927
        %v929 = vmul.f32 %v924, %v928
        %v930 = vlaneseq
        %v931 = vshrl.u32 %v930, 7
        %v932 = vsub.s32 0, %v931
        %v933 = vrot.slane %v903, %v932
        %v934 = vadd.f32 %v929, %v933
        %v935 = vpack.c.bf16 %v934, %v934
        %v936 = vld [vmem:[%s3] sm:$0xf]
        %v937 = vld [vmem:[%s3 + $0x4] sm:$0xf]
        %v938 = vld [vmem:[%s3 + $0x8] sm:$0xf]
        %v939 = vld [vmem:[%s3 + $0xc] sm:$0xf]
        %v940 = vld [vmem:[%s4] sm:$0x1]
        %v942 = vlaneseq
        %v943 = vshrl.u32 %v942, 7
        %v944 = vsub.s32 0, %v943
        %v945 = vrot.slane %v940, %v944
        %v951 = vunpack.c.l.b16 %v936
        %v952 = vunpack.c.l.b16 %v937
        %v953 = vunpack.c.l.b16 %v938
        %v954 = vunpack.c.l.b16 %v939
        %v955 = vpack.c.b16 %v952, %v951
        %v956 = vpack.c.b16 %v954, %v953
        %vm959 = vcmask 261120
        %v961 = vsel %vm959, %v935, 0
        %963 = vmatprep.subr.bf16.mxu0 0
        %964 = vmatpush1.bf16.msra.mxu0 %v955
        %965 = vmatprep.subr.bf16.mxu0 0
        %966 = vmatpush1.bf16.msra.mxu0 %v956
        %967 = vmatprep.subr.bf16.mxu0 0
        %968 = vmatpush1.bf16.msra.mxu0 0
        %969 = vmatprep.subr.bf16.mxu0 0
        %970 = vmatpush1.bf16.msra.mxu0 0
        %971 = vmatprep.subr.bf16.mxu0 0
        %972 = vmatpush1.bf16.msra.mxu0 0
        %973 = vmatprep.subr.bf16.mxu0 0
        %974 = vmatpush1.bf16.msra.mxu0 0
        %975 = vmatprep.subr.bf16.mxu0 0
        %976 = vmatpush1.bf16.msra.mxu0 0
        %977 = vmatprep.subr.bf16.mxu0 0
        %978 = vmatpush1.bf16.msra.mxu0 0
        %979 = vmatprep.subr.bf16.mxu0 0
        %980 = vmatpush1.bf16.msra.mxu0 0
        %981 = vmatprep.subr.bf16.mxu0 0
        %982 = vmatpush1.bf16.msra.mxu0 0
        %983 = vmatprep.subr.bf16.mxu0 0
        %984 = vmatpush1.bf16.msra.mxu0 0
        %985 = vmatprep.subr.bf16.mxu0 0
        %986 = vmatpush1.bf16.msra.mxu0 0
        %987 = vmatprep.subr.bf16.mxu0 0
        %988 = vmatpush1.bf16.msra.mxu0 0
        %989 = vmatprep.subr.bf16.mxu0 0
        %990 = vmatpush1.bf16.msra.mxu0 0
        %991 = vmatprep.subr.bf16.mxu0 0
        %992 = vmatpush1.bf16.msra.mxu0 0
        %993 = vmatprep.subr.bf16.mxu0 0
        %994 = vmatpush1.bf16.msra.mxu0 0
        %995 = vmatprep.mubr.bf16.mxu0 0
        %996 = vmatmul.mubr.bf16.gmra.mrb[0].mxu0 %v961
        %v997 = vpop.f32.mrb[0].mxu0
        %v998 = vadd.f32 %v945, %v997
        %v999 = vpop.f32.mrb[0].mxu0
        %v1000 = vpop.f32.mrb[0].mxu0
        %v1001 = vpop.f32.mrb[0].mxu0
        %1002 = vdwg.mxu0
        %s1003 = scalar_lea.vmem %s3, 32
        %v1004 = vld [vmem:[%s1003] sm:$0xf]
        %v1005 = vld [vmem:[%s1003 + $0x4] sm:$0xf]
        %v1006 = vld [vmem:[%s1003 + $0x8] sm:$0xf]
        %v1007 = vld [vmem:[%s1003 + $0xc] sm:$0xf]
        %v1012 = vunpack.c.l.b16 %v1004
        %v1013 = vunpack.c.l.b16 %v1005
        %v1014 = vunpack.c.l.b16 %v1006
        %v1015 = vunpack.c.l.b16 %v1007
        %v1016 = vpack.c.b16 %v1013, %v1012
        %v1017 = vpack.c.b16 %v1015, %v1014
        %1020 = vmatprep.subr.bf16.mxu0 0
        %1021 = vmatpush1.bf16.msra.mxu0 %v1016
        %1022 = vmatprep.subr.bf16.mxu0 0
        %1023 = vmatpush1.bf16.msra.mxu0 %v1017
        %1024 = vmatprep.subr.bf16.mxu0 0
        %1025 = vmatpush1.bf16.msra.mxu0 0
        %1026 = vmatprep.subr.bf16.mxu0 0
        %1027 = vmatpush1.bf16.msra.mxu0 0
        %1028 = vmatprep.subr.bf16.mxu0 0
        %1029 = vmatpush1.bf16.msra.mxu0 0
        %1030 = vmatprep.subr.bf16.mxu0 0
        %1031 = vmatpush1.bf16.msra.mxu0 0
        %1032 = vmatprep.subr.bf16.mxu0 0
        %1033 = vmatpush1.bf16.msra.mxu0 0
        %1034 = vmatprep.subr.bf16.mxu0 0
        %1035 = vmatpush1.bf16.msra.mxu0 0
        %1036 = vmatprep.subr.bf16.mxu0 0
        %1037 = vmatpush1.bf16.msra.mxu0 0
        %1038 = vmatprep.subr.bf16.mxu0 0
        %1039 = vmatpush1.bf16.msra.mxu0 0
        %1040 = vmatprep.subr.bf16.mxu0 0
        %1041 = vmatpush1.bf16.msra.mxu0 0
        %1042 = vmatprep.subr.bf16.mxu0 0
        %1043 = vmatpush1.bf16.msra.mxu0 0
        %1044 = vmatprep.subr.bf16.mxu0 0
        %1045 = vmatpush1.bf16.msra.mxu0 0
        %1046 = vmatprep.subr.bf16.mxu0 0
        %1047 = vmatpush1.bf16.msra.mxu0 0
        %1048 = vmatprep.subr.bf16.mxu0 0
        %1049 = vmatpush1.bf16.msra.mxu0 0
        %1050 = vmatprep.subr.bf16.mxu0 0
        %1051 = vmatpush1.bf16.msra.mxu0 0
        %1052 = vmatprep.mubr.bf16.mxu0 0
        %1053 = vmatmul.mubr.bf16.gmra.mrb[0].mxu0 %v961
        %v1054 = vpop.f32.mrb[0].mxu0
        %v1055 = vadd.f32 0.0, %v1054
        %v1056 = vpop.f32.mrb[0].mxu0
        %v1057 = vpop.f32.mrb[0].mxu0
        %v1058 = vpop.f32.mrb[0].mxu0
        %1059 = vdwg.mxu0
        %s1060 = scalar_lea.vmem %s3, 64
        %v1061 = vld [vmem:[%s1060] sm:$0xf]
        %v1062 = vld [vmem:[%s1060 + $0x4] sm:$0xf]
        %v1063 = vld [vmem:[%s1060 + $0x8] sm:$0xf]
        %v1064 = vld [vmem:[%s1060 + $0xc] sm:$0xf]
        %v1069 = vunpack.c.l.b16 %v1061
        %v1070 = vunpack.c.l.b16 %v1062
        %v1071 = vunpack.c.l.b16 %v1063
        %v1072 = vunpack.c.l.b16 %v1064
        %v1073 = vpack.c.b16 %v1070, %v1069
        %v1074 = vpack.c.b16 %v1072, %v1071
        %1077 = vmatprep.subr.bf16.mxu0 0
        %1078 = vmatpush1.bf16.msra.mxu0 %v1073
        %1079 = vmatprep.subr.bf16.mxu0 0
        %1080 = vmatpush1.bf16.msra.mxu0 %v1074
        %1081 = vmatprep.subr.bf16.mxu0 0
        %1082 = vmatpush1.bf16.msra.mxu0 0
        %1083 = vmatprep.subr.bf16.mxu0 0
        %1084 = vmatpush1.bf16.msra.mxu0 0
        %1085 = vmatprep.subr.bf16.mxu0 0
        %1086 = vmatpush1.bf16.msra.mxu0 0
        %1087 = vmatprep.subr.bf16.mxu0 0
        %1088 = vmatpush1.bf16.msra.mxu0 0
        %1089 = vmatprep.subr.bf16.mxu0 0
        %1090 = vmatpush1.bf16.msra.mxu0 0
        %1091 = vmatprep.subr.bf16.mxu0 0
        %1092 = vmatpush1.bf16.msra.mxu0 0
        %1093 = vmatprep.subr.bf16.mxu0 0
        %1094 = vmatpush1.bf16.msra.mxu0 0
        %1095 = vmatprep.subr.bf16.mxu0 0
        %1096 = vmatpush1.bf16.msra.mxu0 0
        %1097 = vmatprep.subr.bf16.mxu0 0
        %1098 = vmatpush1.bf16.msra.mxu0 0
        %1099 = vmatprep.subr.bf16.mxu0 0
        %1100 = vmatpush1.bf16.msra.mxu0 0
        %1101 = vmatprep.subr.bf16.mxu0 0
        %1102 = vmatpush1.bf16.msra.mxu0 0
        %1103 = vmatprep.subr.bf16.mxu0 0
        %1104 = vmatpush1.bf16.msra.mxu0 0
        %1105 = vmatprep.subr.bf16.mxu0 0
        %1106 = vmatpush1.bf16.msra.mxu0 0
        %1107 = vmatprep.subr.bf16.mxu0 0
        %1108 = vmatpush1.bf16.msra.mxu0 0
        %1109 = vmatprep.mubr.bf16.mxu0 0
        %1110 = vmatmul.mubr.bf16.gmra.mrb[0].mxu0 %v961
        %v1111 = vpop.f32.mrb[0].mxu0
        %v1112 = vadd.f32 0.0, %v1111
        %v1113 = vpop.f32.mrb[0].mxu0
        %v1114 = vpop.f32.mrb[0].mxu0
        %v1115 = vpop.f32.mrb[0].mxu0
        %1116 = vdwg.mxu0
        %v1117 = vld [vmem:[%s1] sm:$0x1f]
        %vm1118 = vcmask 130048
        %v1120 = vsel %vm1118, %v998, 0
        %v1123 = vsel %vm1118, %v1055, 0
        %1125 = vmatprep.subr.mxu0 0.0
        %1126 = vmatpush1.xpose.msra.mxu0 %v1123
        %1127 = vmatprep.subr.mxu0 0.0
        %1128 = vmatpush1.xpose.msra.mxu0 0.0
        %1129 = vmatprep.subr.mxu0 0.0
        %1130 = vmatpush1.xpose.msra.mxu0 0.0
        %1131 = vmatprep.subr.mxu0 0.0
        %1132 = vmatpush1.xpose.msra.mxu0 0.0
        %1133 = vmatprep.subr.mxu0 0.0
        %1134 = vmatpush1.xpose.msra.mxu0 0.0
        %1135 = vmatprep.subr.mxu0 0.0
        %1136 = vmatpush1.xpose.msra.mxu0 0.0
        %1137 = vmatprep.subr.mxu0 0.0
        %1138 = vmatpush1.xpose.msra.mxu0 0.0
        %1139 = vmatprep.subr.mxu0 0.0
        %1140 = vmatpush1.xpose.msra.mxu0 0.0
        %1141 = vmatprep.subr.mxu0 0.0
        %1142 = vmatpush1.xpose.msra.mxu0 0.0
        %1143 = vmatprep.subr.mxu0 0.0
        %1144 = vmatpush1.xpose.msra.mxu0 0.0
        %1145 = vmatprep.subr.mxu0 0.0
        %1146 = vmatpush1.xpose.msra.mxu0 0.0
        %1147 = vmatprep.subr.mxu0 0.0
        %1148 = vmatpush1.xpose.msra.mxu0 0.0
        %1149 = vmatprep.subr.mxu0 0.0
        %1150 = vmatpush1.xpose.msra.mxu0 0.0
        %1151 = vmatprep.subr.mxu0 0.0
        %1152 = vmatpush1.xpose.msra.mxu0 0.0
        %1153 = vmatprep.subr.mxu0 0.0
        %1154 = vmatpush1.xpose.msra.mxu0 0.0
        %1155 = vmatprep.subr.mxu0 0.0
        %1156 = vmatpush1.xpose.msra.mxu0 0.0
        %1157 = vmatprep.subr.mxu0 0.0
        %1158 = vmatpush1.xpose.msra.mxu0 0.0
        %1159 = vmatprep.subr.mxu0 0.0
        %1160 = vmatpush1.xpose.msra.mxu0 0.0
        %1161 = vmatprep.subr.mxu0 0.0
        %1162 = vmatpush1.xpose.msra.mxu0 0.0
        %1163 = vmatprep.subr.mxu0 0.0
        %1164 = vmatpush1.xpose.msra.mxu0 0.0
        %1165 = vmatprep.subr.mxu0 0.0
        %1166 = vmatpush1.xpose.msra.mxu0 0.0
        %1167 = vmatprep.subr.mxu0 0.0
        %1168 = vmatpush1.xpose.msra.mxu0 0.0
        %1169 = vmatprep.subr.mxu0 0.0
        %1170 = vmatpush1.xpose.msra.mxu0 0.0
        %1171 = vmatprep.subr.mxu0 0.0
        %1172 = vmatpush1.xpose.msra.mxu0 0.0
        %1173 = vmatprep.subr.mxu0 0.0
        %1174 = vmatpush1.xpose.msra.mxu0 0.0
        %1175 = vmatprep.subr.mxu0 0.0
        %1176 = vmatpush1.xpose.msra.mxu0 0.0
        %1177 = vmatprep.subr.mxu0 0.0
        %1178 = vmatpush1.xpose.msra.mxu0 0.0
        %1179 = vmatprep.subr.mxu0 0.0
        %1180 = vmatpush1.xpose.msra.mxu0 0.0
        %1181 = vmatprep.subr.mxu0 0.0
        %1182 = vmatpush1.xpose.msra.mxu0 0.0
        %1183 = vmatprep.subr.mxu0 0.0
        %1184 = vmatpush1.xpose.msra.mxu0 0.0
        %1185 = vmatprep.subr.mxu0 0.0
        %1186 = vmatpush1.xpose.msra.mxu0 0.0
        %1187 = vmatprep.subr.mxu0 0.0
        %1188 = vmatpush1.xpose.msra.mxu0 0.0
        %1189 = vmatprep.mubr.f32.mxu0 0.0
        %1190 = vmatmul.mubr.f32.gmra.mrb[0].mxu0 %v1120
        %v1191 = vpop.f32.mrb[0].mxu0
        %v1192 = vadd.f32 %v1117, %v1191
        %v1193 = vpop.f32.mrb[0].mxu0
        %1194 = vdwg.mxu0
        %vm1195 = vcmask 36864
        %v1196 = vsel %vm1195, %v1192, -inf
        %1197 = vmax.xlane.f32.xlu0 %v1196
        %v1198 = vpop.xlane.xlu0 %1197
        %v1199 = vsub.f32 %v1192, %v1198
        %v1200 = vmul.f32 %v1199, 1.442695
        %v1201 = vpow.pop %v1200
        %v1202 = vsel %vm1195, %v1201, 0.0
        %1203 = vadd.xlane.f32.xlu0 %v1202
        %v1204 = vpop.xlane.xlu0 %1203
        %v1205 = vrcp.pop %v1204
        %v1206 = vmul.f32 %v1201, %v1205
        %v1207 = vpack.c.bf16 %v1206, %v1206
        %v1208 = vpack.c.bf16 %v1112, %v1112
        %vm1209 = vcmask 39936
        %v1211 = vsel %vm1209, %v1207, 0
        %vm1213 = vcmask 1041408
        %vm1214 = vcmask 1042432
        %v1215 = vsel %vm1213, 4294967295, 65535
        %v1216 = vsel %vm1214, %v1215, 0
        %v1218 = vand.u32 %v1208, %v1216
        %1220 = vmatprep.subr.bf16.mxu0 0
        %1221 = vmatpush1.bf16.msra.mxu0 %v1218
        %1222 = vmatprep.subr.bf16.mxu0 0
        %1223 = vmatpush1.bf16.msra.mxu0 0
        %1224 = vmatprep.subr.bf16.mxu0 0
        %1225 = vmatpush1.bf16.msra.mxu0 0
        %1226 = vmatprep.subr.bf16.mxu0 0
        %1227 = vmatpush1.bf16.msra.mxu0 0
        %1228 = vmatprep.subr.bf16.mxu0 0
        %1229 = vmatpush1.bf16.msra.mxu0 0
        %1230 = vmatprep.subr.bf16.mxu0 0
        %1231 = vmatpush1.bf16.msra.mxu0 0
        %1232 = vmatprep.subr.bf16.mxu0 0
        %1233 = vmatpush1.bf16.msra.mxu0 0
        %1234 = vmatprep.subr.bf16.mxu0 0
        %1235 = vmatpush1.bf16.msra.mxu0 0
        %1236 = vmatprep.subr.bf16.mxu0 0
        %1237 = vmatpush1.bf16.msra.mxu0 0
        %1238 = vmatprep.subr.bf16.mxu0 0
        %1239 = vmatpush1.bf16.msra.mxu0 0
        %1240 = vmatprep.subr.bf16.mxu0 0
        %1241 = vmatpush1.bf16.msra.mxu0 0
        %1242 = vmatprep.subr.bf16.mxu0 0
        %1243 = vmatpush1.bf16.msra.mxu0 0
        %1244 = vmatprep.subr.bf16.mxu0 0
        %1245 = vmatpush1.bf16.msra.mxu0 0
        %1246 = vmatprep.subr.bf16.mxu0 0
        %1247 = vmatpush1.bf16.msra.mxu0 0
        %1248 = vmatprep.subr.bf16.mxu0 0
        %1249 = vmatpush1.bf16.msra.mxu0 0
        %1250 = vmatprep.subr.bf16.mxu0 0
        %1251 = vmatpush1.bf16.msra.mxu0 0
        %1252 = vmatprep.mubr.bf16.mxu0 0
        %1253 = vmatmul.mubr.bf16.gmra.mrb[0].mxu0 %v1211
        %v1254 = vpop.f32.mrb[0].mxu0
        %v1255 = vadd.f32 0.0, %v1254
        %v1256 = vpop.f32.mrb[0].mxu0
        %v1257 = vpop.f32.mrb[0].mxu0
        %v1258 = vpop.f32.mrb[0].mxu0
        %1259 = vdwg.mxu0
        %v1260 = vpack.c.bf16 %v1255, %v1255
        %v1261 = vld [vmem:[%s5] sm:$0xf]
        %v1262 = vld [vmem:[%s5 + $0x4] sm:$0xf]
        %s1263 = scalar_lea.vmem %s3, 16
        %v1264 = vld [vmem:[%s1263] sm:$0xf]
        %v1265 = vld [vmem:[%s1263 + $0x4] sm:$0xf]
        %v1266 = vld [vmem:[%s1263 + $0x8] sm:$0xf]
        %v1267 = vld [vmem:[%s1263 + $0xc] sm:$0xf]
        %s1268 = scalar_lea.vmem %s4, 1
        %v1269 = vld [vmem:[%s1268] sm:$0x1]
        %v1271 = vlaneseq
        %v1272 = vshrl.u32 %v1271, 7
        %v1273 = vsub.s32 0, %v1272
        %v1274 = vrot.slane %v1269, %v1273
        %v1280 = vunpack.c.l.b16 %v1264
        %v1281 = vunpack.c.l.b16 %v1265
        %v1282 = vunpack.c.l.b16 %v1266
        %v1283 = vunpack.c.l.b16 %v1267
        %v1284 = vpack.c.b16 %v1281, %v1280
        %v1285 = vpack.c.b16 %v1283, %v1282
        %1288 = vmatprep.subr.bf16.mxu0 0
        %1289 = vmatpush1.bf16.msra.mxu0 %v1284
        %1290 = vmatprep.subr.bf16.mxu0 0
        %1291 = vmatpush1.bf16.msra.mxu0 %v1285
        %1292 = vmatprep.subr.bf16.mxu0 0
        %1293 = vmatpush1.bf16.msra.mxu0 0
        %1294 = vmatprep.subr.bf16.mxu0 0
        %1295 = vmatpush1.bf16.msra.mxu0 0
        %1296 = vmatprep.subr.bf16.mxu0 0
        %1297 = vmatpush1.bf16.msra.mxu0 0
        %1298 = vmatprep.subr.bf16.mxu0 0
        %1299 = vmatpush1.bf16.msra.mxu0 0
        %1300 = vmatprep.subr.bf16.mxu0 0
        %1301 = vmatpush1.bf16.msra.mxu0 0
        %1302 = vmatprep.subr.bf16.mxu0 0
        %1303 = vmatpush1.bf16.msra.mxu0 0
        %1304 = vmatprep.subr.bf16.mxu0 0
        %1305 = vmatpush1.bf16.msra.mxu0 0
        %1306 = vmatprep.subr.bf16.mxu0 0
        %1307 = vmatpush1.bf16.msra.mxu0 0
        %1308 = vmatprep.subr.bf16.mxu0 0
        %1309 = vmatpush1.bf16.msra.mxu0 0
        %1310 = vmatprep.subr.bf16.mxu0 0
        %1311 = vmatpush1.bf16.msra.mxu0 0
        %1312 = vmatprep.subr.bf16.mxu0 0
        %1313 = vmatpush1.bf16.msra.mxu0 0
        %1314 = vmatprep.subr.bf16.mxu0 0
        %1315 = vmatpush1.bf16.msra.mxu0 0
        %1316 = vmatprep.subr.bf16.mxu0 0
        %1317 = vmatpush1.bf16.msra.mxu0 0
        %1318 = vmatprep.subr.bf16.mxu0 0
        %1319 = vmatpush1.bf16.msra.mxu0 0
        %1320 = vmatprep.mubr.bf16.mxu0 0
        %1321 = vmatmul.mubr.bf16.gmra.mrb[0].mxu0 %v961
        %v1322 = vpop.f32.mrb[0].mxu0
        %v1323 = vadd.f32 %v1274, %v1322
        %v1324 = vpop.f32.mrb[0].mxu0
        %v1325 = vpop.f32.mrb[0].mxu0
        %v1326 = vpop.f32.mrb[0].mxu0
        %1327 = vdwg.mxu0
        %s1328 = scalar_lea.vmem %s3, 48
        %v1329 = vld [vmem:[%s1328] sm:$0xf]
        %v1330 = vld [vmem:[%s1328 + $0x4] sm:$0xf]
        %v1331 = vld [vmem:[%s1328 + $0x8] sm:$0xf]
        %v1332 = vld [vmem:[%s1328 + $0xc] sm:$0xf]
        %v1337 = vunpack.c.l.b16 %v1329
        %v1338 = vunpack.c.l.b16 %v1330
        %v1339 = vunpack.c.l.b16 %v1331
        %v1340 = vunpack.c.l.b16 %v1332
        %v1341 = vpack.c.b16 %v1338, %v1337
        %v1342 = vpack.c.b16 %v1340, %v1339
        %1345 = vmatprep.subr.bf16.mxu0 0
        %1346 = vmatpush1.bf16.msra.mxu0 %v1341
        %1347 = vmatprep.subr.bf16.mxu0 0
        %1348 = vmatpush1.bf16.msra.mxu0 %v1342
        %1349 = vmatprep.subr.bf16.mxu0 0
        %1350 = vmatpush1.bf16.msra.mxu0 0
        %1351 = vmatprep.subr.bf16.mxu0 0
        %1352 = vmatpush1.bf16.msra.mxu0 0
        %1353 = vmatprep.subr.bf16.mxu0 0
        %1354 = vmatpush1.bf16.msra.mxu0 0
        %1355 = vmatprep.subr.bf16.mxu0 0
        %1356 = vmatpush1.bf16.msra.mxu0 0
        %1357 = vmatprep.subr.bf16.mxu0 0
        %1358 = vmatpush1.bf16.msra.mxu0 0
        %1359 = vmatprep.subr.bf16.mxu0 0
        %1360 = vmatpush1.bf16.msra.mxu0 0
        %1361 = vmatprep.subr.bf16.mxu0 0
        %1362 = vmatpush1.bf16.msra.mxu0 0
        %1363 = vmatprep.subr.bf16.mxu0 0
        %1364 = vmatpush1.bf16.msra.mxu0 0
        %1365 = vmatprep.subr.bf16.mxu0 0
        %1366 = vmatpush1.bf16.msra.mxu0 0
        %1367 = vmatprep.subr.bf16.mxu0 0
        %1368 = vmatpush1.bf16.msra.mxu0 0
        %1369 = vmatprep.subr.bf16.mxu0 0
        %1370 = vmatpush1.bf16.msra.mxu0 0
        %1371 = vmatprep.subr.bf16.mxu0 0
        %1372 = vmatpush1.bf16.msra.mxu0 0
        %1373 = vmatprep.subr.bf16.mxu0 0
        %1374 = vmatpush1.bf16.msra.mxu0 0
        %1375 = vmatprep.subr.bf16.mxu0 0
        %1376 = vmatpush1.bf16.msra.mxu0 0
        %1377 = vmatprep.mubr.bf16.mxu0 0
        %1378 = vmatmul.mubr.bf16.gmra.mrb[0].mxu0 %v961
        %v1379 = vpop.f32.mrb[0].mxu0
        %v1380 = vadd.f32 0.0, %v1379
        %v1381 = vpop.f32.mrb[0].mxu0
        %v1382 = vpop.f32.mrb[0].mxu0
        %v1383 = vpop.f32.mrb[0].mxu0
        %1384 = vdwg.mxu0
        %s1385 = scalar_lea.vmem %s3, 80
        %v1386 = vld [vmem:[%s1385] sm:$0xf]
        %v1387 = vld [vmem:[%s1385 + $0x4] sm:$0xf]
        %v1388 = vld [vmem:[%s1385 + $0x8] sm:$0xf]
        %v1389 = vld [vmem:[%s1385 + $0xc] sm:$0xf]
        %v1394 = vunpack.c.l.b16 %v1386
        %v1395 = vunpack.c.l.b16 %v1387
        %v1396 = vunpack.c.l.b16 %v1388
        %v1397 = vunpack.c.l.b16 %v1389
        %v1398 = vpack.c.b16 %v1395, %v1394
        %v1399 = vpack.c.b16 %v1397, %v1396
        %1402 = vmatprep.subr.bf16.mxu0 0
        %1403 = vmatpush1.bf16.msra.mxu0 %v1398
        %1404 = vmatprep.subr.bf16.mxu0 0
        %1405 = vmatpush1.bf16.msra.mxu0 %v1399
        %1406 = vmatprep.subr.bf16.mxu0 0
        %1407 = vmatpush1.bf16.msra.mxu0 0
        %1408 = vmatprep.subr.bf16.mxu0 0
        %1409 = vmatpush1.bf16.msra.mxu0 0
        %1410 = vmatprep.subr.bf16.mxu0 0
        %1411 = vmatpush1.bf16.msra.mxu0 0
        %1412 = vmatprep.subr.bf16.mxu0 0
        %1413 = vmatpush1.bf16.msra.mxu0 0
        %1414 = vmatprep.subr.bf16.mxu0 0
        %1415 = vmatpush1.bf16.msra.mxu0 0
        %1416 = vmatprep.subr.bf16.mxu0 0
        %1417 = vmatpush1.bf16.msra.mxu0 0
        %1418 = vmatprep.subr.bf16.mxu0 0
        %1419 = vmatpush1.bf16.msra.mxu0 0
        %1420 = vmatprep.subr.bf16.mxu0 0
        %1421 = vmatpush1.bf16.msra.mxu0 0
        %1422 = vmatprep.subr.bf16.mxu0 0
        %1423 = vmatpush1.bf16.msra.mxu0 0
        %1424 = vmatprep.subr.bf16.mxu0 0
        %1425 = vmatpush1.bf16.msra.mxu0 0
        %1426 = vmatprep.subr.bf16.mxu0 0
        %1427 = vmatpush1.bf16.msra.mxu0 0
        %1428 = vmatprep.subr.bf16.mxu0 0
        %1429 = vmatpush1.bf16.msra.mxu0 0
        %1430 = vmatprep.subr.bf16.mxu0 0
        %1431 = vmatpush1.bf16.msra.mxu0 0
        %1432 = vmatprep.subr.bf16.mxu0 0
        %1433 = vmatpush1.bf16.msra.mxu0 0
        %1434 = vmatprep.mubr.bf16.mxu0 0
        %1435 = vmatmul.mubr.bf16.gmra.mrb[0].mxu0 %v961
        %v1436 = vpop.f32.mrb[0].mxu0
        %v1437 = vadd.f32 0.0, %v1436
        %v1438 = vpop.f32.mrb[0].mxu0
        %v1439 = vpop.f32.mrb[0].mxu0
        %v1440 = vpop.f32.mrb[0].mxu0
        %1441 = vdwg.mxu0
        %s1442 = scalar_lea.vmem %s1, 8
        %v1443 = vld [vmem:[%s1442] sm:$0x1f]
        %v1445 = vsel %vm1118, %v1323, 0
        %v1448 = vsel %vm1118, %v1380, 0
        %1450 = vmatprep.subr.mxu0 0.0
        %1451 = vmatpush1.xpose.msra.mxu0 %v1448
        %1452 = vmatprep.subr.mxu0 0.0
        %1453 = vmatpush1.xpose.msra.mxu0 0.0
        %1454 = vmatprep.subr.mxu0 0.0
        %1455 = vmatpush1.xpose.msra.mxu0 0.0
        %1456 = vmatprep.subr.mxu0 0.0
        %1457 = vmatpush1.xpose.msra.mxu0 0.0
        %1458 = vmatprep.subr.mxu0 0.0
        %1459 = vmatpush1.xpose.msra.mxu0 0.0
        %1460 = vmatprep.subr.mxu0 0.0
        %1461 = vmatpush1.xpose.msra.mxu0 0.0
        %1462 = vmatprep.subr.mxu0 0.0
        %1463 = vmatpush1.xpose.msra.mxu0 0.0
        %1464 = vmatprep.subr.mxu0 0.0
        %1465 = vmatpush1.xpose.msra.mxu0 0.0
        %1466 = vmatprep.subr.mxu0 0.0
        %1467 = vmatpush1.xpose.msra.mxu0 0.0
        %1468 = vmatprep.subr.mxu0 0.0
        %1469 = vmatpush1.xpose.msra.mxu0 0.0
        %1470 = vmatprep.subr.mxu0 0.0
        %1471 = vmatpush1.xpose.msra.mxu0 0.0
        %1472 = vmatprep.subr.mxu0 0.0
        %1473 = vmatpush1.xpose.msra.mxu0 0.0
        %1474 = vmatprep.subr.mxu0 0.0
        %1475 = vmatpush1.xpose.msra.mxu0 0.0
        %1476 = vmatprep.subr.mxu0 0.0
        %1477 = vmatpush1.xpose.msra.mxu0 0.0
        %1478 = vmatprep.subr.mxu0 0.0
        %1479 = vmatpush1.xpose.msra.mxu0 0.0
        %1480 = vmatprep.subr.mxu0 0.0
        %1481 = vmatpush1.xpose.msra.mxu0 0.0
        %1482 = vmatprep.subr.mxu0 0.0
        %1483 = vmatpush1.xpose.msra.mxu0 0.0
        %1484 = vmatprep.subr.mxu0 0.0
        %1485 = vmatpush1.xpose.msra.mxu0 0.0
        %1486 = vmatprep.subr.mxu0 0.0
        %1487 = vmatpush1.xpose.msra.mxu0 0.0
        %1488 = vmatprep.subr.mxu0 0.0
        %1489 = vmatpush1.xpose.msra.mxu0 0.0
        %1490 = vmatprep.subr.mxu0 0.0
        %1491 = vmatpush1.xpose.msra.mxu0 0.0
        %1492 = vmatprep.subr.mxu0 0.0
        %1493 = vmatpush1.xpose.msra.mxu0 0.0
        %1494 = vmatprep.subr.mxu0 0.0
        %1495 = vmatpush1.xpose.msra.mxu0 0.0
        %1496 = vmatprep.subr.mxu0 0.0
        %1497 = vmatpush1.xpose.msra.mxu0 0.0
        %1498 = vmatprep.subr.mxu0 0.0
        %1499 = vmatpush1.xpose.msra.mxu0 0.0
        %1500 = vmatprep.subr.mxu0 0.0
        %1501 = vmatpush1.xpose.msra.mxu0 0.0
        %1502 = vmatprep.subr.mxu0 0.0
        %1503 = vmatpush1.xpose.msra.mxu0 0.0
        %1504 = vmatprep.subr.mxu0 0.0
        %1505 = vmatpush1.xpose.msra.mxu0 0.0
        %1506 = vmatprep.subr.mxu0 0.0
        %1507 = vmatpush1.xpose.msra.mxu0 0.0
        %1508 = vmatprep.subr.mxu0 0.0
        %1509 = vmatpush1.xpose.msra.mxu0 0.0
        %1510 = vmatprep.subr.mxu0 0.0
        %1511 = vmatpush1.xpose.msra.mxu0 0.0
        %1512 = vmatprep.subr.mxu0 0.0
        %1513 = vmatpush1.xpose.msra.mxu0 0.0
        %1514 = vmatprep.mubr.f32.mxu0 0.0
        %1515 = vmatmul.mubr.f32.gmra.mrb[0].mxu0 %v1445
        %v1516 = vpop.f32.mrb[0].mxu0
        %v1517 = vadd.f32 %v1443, %v1516
        %v1518 = vpop.f32.mrb[0].mxu0
        %1519 = vdwg.mxu0
        %v1520 = vsel %vm1195, %v1517, -inf
        %1521 = vmax.xlane.f32.xlu0 %v1520
        %v1522 = vpop.xlane.xlu0 %1521
        %v1523 = vsub.f32 %v1517, %v1522
        %v1524 = vmul.f32 %v1523, 1.442695
        %v1525 = vpow.pop %v1524
        %v1526 = vsel %vm1195, %v1525, 0.0
        %1527 = vadd.xlane.f32.xlu0 %v1526
        %v1528 = vpop.xlane.xlu0 %1527
        %v1529 = vrcp.pop %v1528
        %v1530 = vmul.f32 %v1525, %v1529
        %v1531 = vpack.c.bf16 %v1530, %v1530
        %v1532 = vpack.c.bf16 %v1437, %v1437
        %v1534 = vsel %vm1209, %v1531, 0
        %v1537 = vand.u32 %v1532, %v1216
        %1539 = vmatprep.subr.bf16.mxu0 0
        %1540 = vmatpush1.bf16.msra.mxu0 %v1537
        %1541 = vmatprep.subr.bf16.mxu0 0
        %1542 = vmatpush1.bf16.msra.mxu0 0
        %1543 = vmatprep.subr.bf16.mxu0 0
        %1544 = vmatpush1.bf16.msra.mxu0 0
        %1545 = vmatprep.subr.bf16.mxu0 0
        %1546 = vmatpush1.bf16.msra.mxu0 0
        %1547 = vmatprep.subr.bf16.mxu0 0
        %1548 = vmatpush1.bf16.msra.mxu0 0
        %1549 = vmatprep.subr.bf16.mxu0 0
        %1550 = vmatpush1.bf16.msra.mxu0 0
        %1551 = vmatprep.subr.bf16.mxu0 0
        %1552 = vmatpush1.bf16.msra.mxu0 0
        %1553 = vmatprep.subr.bf16.mxu0 0
        %1554 = vmatpush1.bf16.msra.mxu0 0
        %1555 = vmatprep.subr.bf16.mxu0 0
        %1556 = vmatpush1.bf16.msra.mxu0 0
        %1557 = vmatprep.subr.bf16.mxu0 0
        %1558 = vmatpush1.bf16.msra.mxu0 0
        %1559 = vmatprep.subr.bf16.mxu0 0
        %1560 = vmatpush1.bf16.msra.mxu0 0
        %1561 = vmatprep.subr.bf16.mxu0 0
        %1562 = vmatpush1.bf16.msra.mxu0 0
        %1563 = vmatprep.subr.bf16.mxu0 0
        %1564 = vmatpush1.bf16.msra.mxu0 0
        %1565 = vmatprep.subr.bf16.mxu0 0
        %1566 = vmatpush1.bf16.msra.mxu0 0
        %1567 = vmatprep.subr.bf16.mxu0 0
        %1568 = vmatpush1.bf16.msra.mxu0 0
        %1569 = vmatprep.subr.bf16.mxu0 0
        %1570 = vmatpush1.bf16.msra.mxu0 0
        %1571 = vmatprep.mubr.bf16.mxu0 0
        %1572 = vmatmul.mubr.bf16.gmra.mrb[0].mxu0 %v1534
        %v1573 = vpop.f32.mrb[0].mxu0
        %v1574 = vadd.f32 0.0, %v1573
        %v1575 = vpop.f32.mrb[0].mxu0
        %v1576 = vpop.f32.mrb[0].mxu0
        %v1577 = vpop.f32.mrb[0].mxu0
        %1578 = vdwg.mxu0
        %v1579 = vpack.c.bf16 %v1574, %v1574
        %s1580 = scalar_lea.vmem %s5, 8
        %v1581 = vld [vmem:[%s1580] sm:$0xf]
        %v1582 = vld [vmem:[%s1580 + $0x4] sm:$0xf]
        %v1585 = vunpack.c.l.b16 %v1581
        %v1586 = vunpack.c.l.b16 %v1582
        %v1587 = vpack.c.b16 %v1586, %v1585
        %v1590 = vsel %vm1118, %v1579, 0
        %1592 = vmatprep.subr.bf16.mxu0 0
        %1593 = vmatpush1.bf16.msra.mxu0 %v1587
        %1594 = vmatprep.subr.bf16.mxu0 0
        %1595 = vmatpush1.bf16.msra.mxu0 0
        %1596 = vmatprep.subr.bf16.mxu0 0
        %1597 = vmatpush1.bf16.msra.mxu0 0
        %1598 = vmatprep.subr.bf16.mxu0 0
        %1599 = vmatpush1.bf16.msra.mxu0 0
        %1600 = vmatprep.subr.bf16.mxu0 0
        %1601 = vmatpush1.bf16.msra.mxu0 0
        %1602 = vmatprep.subr.bf16.mxu0 0
        %1603 = vmatpush1.bf16.msra.mxu0 0
        %1604 = vmatprep.subr.bf16.mxu0 0
        %1605 = vmatpush1.bf16.msra.mxu0 0
        %1606 = vmatprep.subr.bf16.mxu0 0
        %1607 = vmatpush1.bf16.msra.mxu0 0
        %1608 = vmatprep.subr.bf16.mxu0 0
        %1609 = vmatpush1.bf16.msra.mxu0 0
        %1610 = vmatprep.subr.bf16.mxu0 0
        %1611 = vmatpush1.bf16.msra.mxu0 0
        %1612 = vmatprep.subr.bf16.mxu0 0
        %1613 = vmatpush1.bf16.msra.mxu0 0
        %1614 = vmatprep.subr.bf16.mxu0 0
        %1615 = vmatpush1.bf16.msra.mxu0 0
        %1616 = vmatprep.subr.bf16.mxu0 0
        %1617 = vmatpush1.bf16.msra.mxu0 0
        %1618 = vmatprep.subr.bf16.mxu0 0
        %1619 = vmatpush1.bf16.msra.mxu0 0
        %1620 = vmatprep.subr.bf16.mxu0 0
        %1621 = vmatpush1.bf16.msra.mxu0 0
        %1622 = vmatprep.subr.bf16.mxu0 0
        %1623 = vmatpush1.bf16.msra.mxu0 0
        %1624 = vmatprep.mubr.bf16.mxu0 0
        %1625 = vmatmul.mubr.bf16.gmra.mrb[0].mxu0 %v1590
        %v1626 = vpop.f32.mrb[0].mxu0
        %v1627 = vadd.f32 0.0, %v1626
        %v1628 = vpop.f32.mrb[0].mxu0
        %v1629 = vpop.f32.mrb[0].mxu0
        %v1630 = vpop.f32.mrb[0].mxu0
        %1631 = vdwg.mxu0
        %v1634 = vunpack.c.l.b16 %v1261
        %v1635 = vunpack.c.l.b16 %v1262
        %v1636 = vpack.c.b16 %v1635, %v1634
        %v1639 = vsel %vm1118, %v1260, 0
        %1641 = vmatprep.subr.bf16.mxu0 0
        %1642 = vmatpush1.bf16.msra.mxu0 %v1636
        %1643 = vmatprep.subr.bf16.mxu0 0
        %1644 = vmatpush1.bf16.msra.mxu0 0
        %1645 = vmatprep.subr.bf16.mxu0 0
        %1646 = vmatpush1.bf16.msra.mxu0 0
        %1647 = vmatprep.subr.bf16.mxu0 0
        %1648 = vmatpush1.bf16.msra.mxu0 0
        %1649 = vmatprep.subr.bf16.mxu0 0
        %1650 = vmatpush1.bf16.msra.mxu0 0
        %1651 = vmatprep.subr.bf16.mxu0 0
        %1652 = vmatpush1.bf16.msra.mxu0 0
        %1653 = vmatprep.subr.bf16.mxu0 0
        %1654 = vmatpush1.bf16.msra.mxu0 0
        %1655 = vmatprep.subr.bf16.mxu0 0
        %1656 = vmatpush1.bf16.msra.mxu0 0
        %1657 = vmatprep.subr.bf16.mxu0 0
        %1658 = vmatpush1.bf16.msra.mxu0 0
        %1659 = vmatprep.subr.bf16.mxu0 0
        %1660 = vmatpush1.bf16.msra.mxu0 0
        %1661 = vmatprep.subr.bf16.mxu0 0
        %1662 = vmatpush1.bf16.msra.mxu0 0
        %1663 = vmatprep.subr.bf16.mxu0 0
        %1664 = vmatpush1.bf16.msra.mxu0 0
        %1665 = vmatprep.subr.bf16.mxu0 0
        %1666 = vmatpush1.bf16.msra.mxu0 0
        %1667 = vmatprep.subr.bf16.mxu0 0
        %1668 = vmatpush1.bf16.msra.mxu0 0
        %1669 = vmatprep.subr.bf16.mxu0 0
        %1670 = vmatpush1.bf16.msra.mxu0 0
        %1671 = vmatprep.subr.bf16.mxu0 0
        %1672 = vmatpush1.bf16.msra.mxu0 0
        %1673 = vmatprep.mubr.bf16.mxu0 0
        %1674 = vmatmul.mubr.bf16.gmra.mrb[0].mxu0 %v1639
        %v1675 = vpop.f32.mrb[0].mxu0
        %v1676 = vadd.f32 %v1627, %v1675
        %v1677 = vpop.f32.mrb[0].mxu0
        %v1678 = vpop.f32.mrb[0].mxu0
        %v1679 = vpop.f32.mrb[0].mxu0
        %1680 = vdwg.mxu0
        %v1681 = vlaneseq
        %v1682 = vshrl.u32 %v1681, 7
        %v1683 = vsub.s32 0, %v1682
        %v1684 = vrot.slane %v904, %v1683
        %v1685 = vadd.f32 %v1676, %v1684
        %v1686 = vlaneseq
        %v1687 = vshrl.u32 %v1686, 7
        %v1688 = vsub.s32 0, %v1687
        %v1689 = vrot.slane %v905, %v1688
        %v1690 = vmul.f32 %v1689, %v1685
        %v1691 = vadd.f32 %v897, %v1690
        %v1692 = vsel %vm910, %v1691, 0.0
        %1693 = vadd.xlane.f32.xlu0 %v1692
        %v1694 = vpop.xlane.xlu0 %1693
        %v1695 = vmul.f32 %v1694, %v914
        %v1696 = vsub.f32 %v1691, %v1695
        %v1697 = vmul.f32 %v1696, %v1696
        %v1698 = vsel %vm910, %v1697, 0.0
        %1699 = vadd.xlane.f32.xlu0 %v1698
        %v1700 = vpop.xlane.xlu0 %1699
        %v1701 = vmul.f32 %v1700, %v914
        %v1702 = vadd.f32 %v1701, 1e-12
        %v1703 = vrsqrt.pop %v1702
        %v1704 = vmul.f32 %v1696, %v1703
        %v1705 = vlaneseq
        %v1706 = vshrl.u32 %v1705, 7
        %v1707 = vsub.s32 0, %v1706
        %v1708 = vrot.slane %v906, %v1707
        %v1709 = vmul.f32 %v1704, %v1708
        %v1710 = vlaneseq
        %v1711 = vshrl.u32 %v1710, 7
        %v1712 = vsub.s32 0, %v1711
        %v1713 = vrot.slane %v907, %v1712
        %v1714 = vadd.f32 %v1709, %v1713
        %v1715 = vpack.c.bf16 %v1714, %v1714
        %v1716 = vld [vmem:[%s6] sm:$0xf]
        %v1717 = vld [vmem:[%s6 + $0x4] sm:$0xf]
        %v1718 = vld [vmem:[%s6 + $0x8] sm:$0xf]
        %v1719 = vld [vmem:[%s6 + $0xc] sm:$0xf]
        %v1720 = vld [vmem:[%s10] sm:$0x1]
        %v1721 = vlaneseq
        %v1722 = vshrl.u32 %v1721, 7
        %v1723 = vsub.s32 0, %v1722
        %v1724 = vrot.slane %v1720, %v1723
        %v1729 = vunpack.c.l.b16 %v1716
        %v1730 = vunpack.c.l.b16 %v1717
        %v1731 = vunpack.c.l.b16 %v1718
        %v1732 = vunpack.c.l.b16 %v1719
        %v1733 = vpack.c.b16 %v1730, %v1729
        %v1734 = vpack.c.b16 %v1732, %v1731
        %v1738 = vsel %vm959, %v1715, 0
        %1740 = vmatprep.subr.bf16.mxu0 0
        %1741 = vmatpush1.bf16.msra.mxu0 %v1733
        %1742 = vmatprep.subr.bf16.mxu0 0
        %1743 = vmatpush1.bf16.msra.mxu0 %v1734
        %1744 = vmatprep.subr.bf16.mxu0 0
        %1745 = vmatpush1.bf16.msra.mxu0 0
        %1746 = vmatprep.subr.bf16.mxu0 0
        %1747 = vmatpush1.bf16.msra.mxu0 0
        %1748 = vmatprep.subr.bf16.mxu0 0
        %1749 = vmatpush1.bf16.msra.mxu0 0
        %1750 = vmatprep.subr.bf16.mxu0 0
        %1751 = vmatpush1.bf16.msra.mxu0 0
        %1752 = vmatprep.subr.bf16.mxu0 0
        %1753 = vmatpush1.bf16.msra.mxu0 0
        %1754 = vmatprep.subr.bf16.mxu0 0
        %1755 = vmatpush1.bf16.msra.mxu0 0
        %1756 = vmatprep.subr.bf16.mxu0 0
        %1757 = vmatpush1.bf16.msra.mxu0 0
        %1758 = vmatprep.subr.bf16.mxu0 0
        %1759 = vmatpush1.bf16.msra.mxu0 0
        %1760 = vmatprep.subr.bf16.mxu0 0
        %1761 = vmatpush1.bf16.msra.mxu0 0
        %1762 = vmatprep.subr.bf16.mxu0 0
        %1763 = vmatpush1.bf16.msra.mxu0 0
        %1764 = vmatprep.subr.bf16.mxu0 0
        %1765 = vmatpush1.bf16.msra.mxu0 0
        %1766 = vmatprep.subr.bf16.mxu0 0
        %1767 = vmatpush1.bf16.msra.mxu0 0
        %1768 = vmatprep.subr.bf16.mxu0 0
        %1769 = vmatpush1.bf16.msra.mxu0 0
        %1770 = vmatprep.subr.bf16.mxu0 0
        %1771 = vmatpush1.bf16.msra.mxu0 0
        %1772 = vmatprep.mubr.bf16.mxu0 0
        %1773 = vmatmul.mubr.bf16.gmra.mrb[0].mxu0 %v1738
        %v1774 = vpop.f32.mrb[0].mxu0
        %v1775 = vadd.f32 %v1724, %v1774
        %v1776 = vpop.f32.mrb[0].mxu0
        %v1777 = vpop.f32.mrb[0].mxu0
        %v1778 = vpop.f32.mrb[0].mxu0
        %1779 = vdwg.mxu0
        %v1780 = vmul.f32 %v1775, %v1775
        %v1781 = vmul.f32 %v1775, %v1780
        %v1782 = vmul.f32 %v1781, 0.044715
        %v1783 = vadd.f32 %v1775, %v1782
        %v1784 = vmul.f32 %v1783, 0.7978846
        %v1785 = vtanh.pop %v1784
        %v1786 = vadd.f32 %v1785, 1.0
        %v1787 = vmul.f32 %v1786, 0.5
        %v1788 = vmul.f32 %v1775, %v1787
        %v1789 = vpack.c.bf16 %v1788, %v1788
        %v1790 = vld [vmem:[%s7] sm:$0xf]
        %v1791 = vld [vmem:[%s7 + $0x4] sm:$0xf]
        %v1792 = vld [vmem:[%s7 + $0x8] sm:$0xf]
        %v1793 = vld [vmem:[%s7 + $0xc] sm:$0xf]
        %v1794 = vld [vmem:[%s7 + $0x10] sm:$0xf]
        %v1795 = vld [vmem:[%s7 + $0x14] sm:$0xf]
        %v1796 = vld [vmem:[%s7 + $0x18] sm:$0xf]
        %v1797 = vld [vmem:[%s7 + $0x1c] sm:$0xf]
        %v1798 = vld [vmem:[%s7 + $0x20] sm:$0xf]
        %v1799 = vld [vmem:[%s7 + $0x24] sm:$0xf]
        %v1800 = vld [vmem:[%s7 + $0x28] sm:$0xf]
        %v1801 = vld [vmem:[%s7 + $0x2c] sm:$0xf]
        %v1802 = vld [vmem:[%s7 + $0x30] sm:$0xf]
        %v1803 = vld [vmem:[%s7 + $0x34] sm:$0xf]
        %v1804 = vld [vmem:[%s7 + $0x38] sm:$0xf]
        %v1805 = vld [vmem:[%s7 + $0x3c] sm:$0xf]
        %v1806 = vlaneseq
        %v1807 = vshrl.u32 %v1806, 7
        %v1808 = vsub.s32 0, %v1807
        %v1809 = vrot.slane %v908, %v1808
        %v1826 = vunpack.c.l.b16 %v1790
        %v1827 = vunpack.c.l.b16 %v1791
        %v1828 = vunpack.c.l.b16 %v1792
        %v1829 = vunpack.c.l.b16 %v1793
        %v1830 = vunpack.c.l.b16 %v1794
        %v1831 = vunpack.c.l.b16 %v1795
        %v1832 = vunpack.c.l.b16 %v1796
        %v1833 = vunpack.c.l.b16 %v1797
        %v1834 = vunpack.c.l.b16 %v1798
        %v1835 = vunpack.c.l.b16 %v1799
        %v1836 = vunpack.c.l.b16 %v1800
        %v1837 = vunpack.c.l.b16 %v1801
        %v1838 = vunpack.c.l.b16 %v1802
        %v1839 = vunpack.c.l.b16 %v1803
        %v1840 = vunpack.c.l.b16 %v1804
        %v1841 = vunpack.c.l.b16 %v1805
        %v1842 = vpack.c.b16 %v1827, %v1826
        %v1843 = vpack.c.b16 %v1829, %v1828
        %v1844 = vpack.c.b16 %v1831, %v1830
        %v1845 = vpack.c.b16 %v1833, %v1832
        %v1846 = vpack.c.b16 %v1835, %v1834
        %v1847 = vpack.c.b16 %v1837, %v1836
        %v1848 = vpack.c.b16 %v1839, %v1838
        %v1849 = vpack.c.b16 %v1841, %v1840
        %1858 = vmatprep.subr.bf16.mxu0 0
        %1859 = vmatpush1.bf16.msra.mxu0 %v1842
        %1860 = vmatprep.subr.bf16.mxu0 0
        %1861 = vmatpush1.bf16.msra.mxu0 %v1843
        %1862 = vmatprep.subr.bf16.mxu0 0
        %1863 = vmatpush1.bf16.msra.mxu0 %v1844
        %1864 = vmatprep.subr.bf16.mxu0 0
        %1865 = vmatpush1.bf16.msra.mxu0 %v1845
        %1866 = vmatprep.subr.bf16.mxu0 0
        %1867 = vmatpush1.bf16.msra.mxu0 %v1846
        %1868 = vmatprep.subr.bf16.mxu0 0
        %1869 = vmatpush1.bf16.msra.mxu0 %v1847
        %1870 = vmatprep.subr.bf16.mxu0 0
        %1871 = vmatpush1.bf16.msra.mxu0 %v1848
        %1872 = vmatprep.subr.bf16.mxu0 0
        %1873 = vmatpush1.bf16.msra.mxu0 %v1849
        %1874 = vmatprep.subr.bf16.mxu0 0
        %1875 = vmatpush1.bf16.msra.mxu0 0
        %1876 = vmatprep.subr.bf16.mxu0 0
        %1877 = vmatpush1.bf16.msra.mxu0 0
        %1878 = vmatprep.subr.bf16.mxu0 0
        %1879 = vmatpush1.bf16.msra.mxu0 0
        %1880 = vmatprep.subr.bf16.mxu0 0
        %1881 = vmatpush1.bf16.msra.mxu0 0
        %1882 = vmatprep.subr.bf16.mxu0 0
        %1883 = vmatpush1.bf16.msra.mxu0 0
        %1884 = vmatprep.subr.bf16.mxu0 0
        %1885 = vmatpush1.bf16.msra.mxu0 0
        %1886 = vmatprep.subr.bf16.mxu0 0
        %1887 = vmatpush1.bf16.msra.mxu0 0
        %1888 = vmatprep.subr.bf16.mxu0 0
        %1889 = vmatpush1.bf16.msra.mxu0 0
        %1890 = vmatprep.mubr.bf16.mxu0 0
        %1891 = vmatmul.mubr.bf16.gmra.mrb[0].mxu0 %v1789
        %v1892 = vpop.f32.mrb[0].mxu0
        %v1893 = vadd.f32 %v1809, %v1892
        %v1894 = vpop.f32.mrb[0].mxu0
        %v1895 = vpop.f32.mrb[0].mxu0
        %v1896 = vpop.f32.mrb[0].mxu0
        %1897 = vdwg.mxu0
        %v1898 = vlaneseq
        %v1899 = vshrl.u32 %v1898, 7
        %v1900 = vsub.s32 0, %v1899
        %v1901 = vrot.slane %v909, %v1900
        %v1902 = vmul.f32 %v1901, %v1893
        %v1903 = vadd.f32 %v1691, %v1902
        %v1904 = vld [vmem:[%s9 + $0xd] sm:$0x1]
        %v1905 = vld [vmem:[%s9 + $0xe] sm:$0x1]
        %v1906 = vld [vmem:[%s9 + $0xf] sm:$0x1]
        %v1907 = vld [vmem:[%s9 + $0x10] sm:$0x1]
        %v1908 = vld [vmem:[%s9 + $0x11] sm:$0x1]
        %v1909 = vld [vmem:[%s9 + $0x12] sm:$0x1]
        %v1910 = vld [vmem:[%s9 + $0x13] sm:$0x1]
        %v1911 = vld [vmem:[%s9 + $0x14] sm:$0x1]
        %v1912 = vsel %vm910, %v1903, 0.0
        %1913 = vadd.xlane.f32.xlu0 %v1912
        %v1914 = vpop.xlane.xlu0 %1913
        %v1915 = vmul.f32 %v1914, %v914
        %v1916 = vsub.f32 %v1903, %v1915
        %v1917 = vmul.f32 %v1916, %v1916
        %v1918 = vsel %vm910, %v1917, 0.0
        %1919 = vadd.xlane.f32.xlu0 %v1918
        %v1920 = vpop.xlane.xlu0 %1919
        %v1921 = vmul.f32 %v1920, %v914
        %v1922 = vadd.f32 %v1921, 1e-12
        %v1923 = vrsqrt.pop %v1922
        %v1924 = vmul.f32 %v1916, %v1923
        %v1925 = vlaneseq
        %v1926 = vshrl.u32 %v1925, 7
        %v1927 = vsub.s32 0, %v1926
        %v1928 = vrot.slane %v1904, %v1927
        %v1929 = vmul.f32 %v1924, %v1928
        %v1930 = vlaneseq
        %v1931 = vshrl.u32 %v1930, 7
        %v1932 = vsub.s32 0, %v1931
        %v1933 = vrot.slane %v1905, %v1932
        %v1934 = vadd.f32 %v1929, %v1933
        %v1935 = vpack.c.bf16 %v1934, %v1934
        %s1936 = scalar_lea.vmem %s3, 96
        %v1937 = vld [vmem:[%s1936] sm:$0xf]
        %v1938 = vld [vmem:[%s1936 + $0x4] sm:$0xf]
        %v1939 = vld [vmem:[%s1936 + $0x8] sm:$0xf]
        %v1940 = vld [vmem:[%s1936 + $0xc] sm:$0xf]
        %s1941 = scalar_lea.vmem %s4, 2
        %v1942 = vld [vmem:[%s1941] sm:$0x1]
        %v1944 = vlaneseq
        %v1945 = vshrl.u32 %v1944, 7
        %v1946 = vsub.s32 0, %v1945
        %v1947 = vrot.slane %v1942, %v1946
        %v1953 = vunpack.c.l.b16 %v1937
        %v1954 = vunpack.c.l.b16 %v1938
        %v1955 = vunpack.c.l.b16 %v1939
        %v1956 = vunpack.c.l.b16 %v1940
        %v1957 = vpack.c.b16 %v1954, %v1953
        %v1958 = vpack.c.b16 %v1956, %v1955
        %v1962 = vsel %vm959, %v1935, 0
        %1964 = vmatprep.subr.bf16.mxu0 0
        %1965 = vmatpush1.bf16.msra.mxu0 %v1957
        %1966 = vmatprep.subr.bf16.mxu0 0
        %1967 = vmatpush1.bf16.msra.mxu0 %v1958
        %1968 = vmatprep.subr.bf16.mxu0 0
        %1969 = vmatpush1.bf16.msra.mxu0 0
        %1970 = vmatprep.subr.bf16.mxu0 0
        %1971 = vmatpush1.bf16.msra.mxu0 0
        %1972 = vmatprep.subr.bf16.mxu0 0
        %1973 = vmatpush1.bf16.msra.mxu0 0
        %1974 = vmatprep.subr.bf16.mxu0 0
        %1975 = vmatpush1.bf16.msra.mxu0 0
        %1976 = vmatprep.subr.bf16.mxu0 0
        %1977 = vmatpush1.bf16.msra.mxu0 0
        %1978 = vmatprep.subr.bf16.mxu0 0
        %1979 = vmatpush1.bf16.msra.mxu0 0
        %1980 = vmatprep.subr.bf16.mxu0 0
        %1981 = vmatpush1.bf16.msra.mxu0 0
        %1982 = vmatprep.subr.bf16.mxu0 0
        %1983 = vmatpush1.bf16.msra.mxu0 0
        %1984 = vmatprep.subr.bf16.mxu0 0
        %1985 = vmatpush1.bf16.msra.mxu0 0
        %1986 = vmatprep.subr.bf16.mxu0 0
        %1987 = vmatpush1.bf16.msra.mxu0 0
        %1988 = vmatprep.subr.bf16.mxu0 0
        %1989 = vmatpush1.bf16.msra.mxu0 0
        %1990 = vmatprep.subr.bf16.mxu0 0
        %1991 = vmatpush1.bf16.msra.mxu0 0
        %1992 = vmatprep.subr.bf16.mxu0 0
        %1993 = vmatpush1.bf16.msra.mxu0 0
        %1994 = vmatprep.subr.bf16.mxu0 0
        %1995 = vmatpush1.bf16.msra.mxu0 0
        %1996 = vmatprep.mubr.bf16.mxu0 0
        %1997 = vmatmul.mubr.bf16.gmra.mrb[0].mxu0 %v1962
        %v1998 = vpop.f32.mrb[0].mxu0
        %v1999 = vadd.f32 %v1947, %v1998
        %v2000 = vpop.f32.mrb[0].mxu0
        %v2001 = vpop.f32.mrb[0].mxu0
        %v2002 = vpop.f32.mrb[0].mxu0
        %2003 = vdwg.mxu0
        %s2004 = scalar_lea.vmem %s3, 128
        %v2005 = vld [vmem:[%s2004] sm:$0xf]
        %v2006 = vld [vmem:[%s2004 + $0x4] sm:$0xf]
        %v2007 = vld [vmem:[%s2004 + $0x8] sm:$0xf]
        %v2008 = vld [vmem:[%s2004 + $0xc] sm:$0xf]
        %v2013 = vunpack.c.l.b16 %v2005
        %v2014 = vunpack.c.l.b16 %v2006
        %v2015 = vunpack.c.l.b16 %v2007
        %v2016 = vunpack.c.l.b16 %v2008
        %v2017 = vpack.c.b16 %v2014, %v2013
        %v2018 = vpack.c.b16 %v2016, %v2015
        %2021 = vmatprep.subr.bf16.mxu0 0
        %2022 = vmatpush1.bf16.msra.mxu0 %v2017
        %2023 = vmatprep.subr.bf16.mxu0 0
        %2024 = vmatpush1.bf16.msra.mxu0 %v2018
        %2025 = vmatprep.subr.bf16.mxu0 0
        %2026 = vmatpush1.bf16.msra.mxu0 0
        %2027 = vmatprep.subr.bf16.mxu0 0
        %2028 = vmatpush1.bf16.msra.mxu0 0
        %2029 = vmatprep.subr.bf16.mxu0 0
        %2030 = vmatpush1.bf16.msra.mxu0 0
        %2031 = vmatprep.subr.bf16.mxu0 0
        %2032 = vmatpush1.bf16.msra.mxu0 0
        %2033 = vmatprep.subr.bf16.mxu0 0
        %2034 = vmatpush1.bf16.msra.mxu0 0
        %2035 = vmatprep.subr.bf16.mxu0 0
        %2036 = vmatpush1.bf16.msra.mxu0 0
        %2037 = vmatprep.subr.bf16.mxu0 0
        %2038 = vmatpush1.bf16.msra.mxu0 0
        %2039 = vmatprep.subr.bf16.mxu0 0
        %2040 = vmatpush1.bf16.msra.mxu0 0
        %2041 = vmatprep.subr.bf16.mxu0 0
        %2042 = vmatpush1.bf16.msra.mxu0 0
        %2043 = vmatprep.subr.bf16.mxu0 0
        %2044 = vmatpush1.bf16.msra.mxu0 0
        %2045 = vmatprep.subr.bf16.mxu0 0
        %2046 = vmatpush1.bf16.msra.mxu0 0
        %2047 = vmatprep.subr.bf16.mxu0 0
        %2048 = vmatpush1.bf16.msra.mxu0 0
        %2049 = vmatprep.subr.bf16.mxu0 0
        %2050 = vmatpush1.bf16.msra.mxu0 0
        %2051 = vmatprep.subr.bf16.mxu0 0
        %2052 = vmatpush1.bf16.msra.mxu0 0
        %2053 = vmatprep.mubr.bf16.mxu0 0
        %2054 = vmatmul.mubr.bf16.gmra.mrb[0].mxu0 %v1962
        %v2055 = vpop.f32.mrb[0].mxu0
        %v2056 = vadd.f32 0.0, %v2055
        %v2057 = vpop.f32.mrb[0].mxu0
        %v2058 = vpop.f32.mrb[0].mxu0
        %v2059 = vpop.f32.mrb[0].mxu0
        %2060 = vdwg.mxu0
        %s2061 = scalar_lea.vmem %s3, 160
        %v2062 = vld [vmem:[%s2061] sm:$0xf]
        %v2063 = vld [vmem:[%s2061 + $0x4] sm:$0xf]
        %v2064 = vld [vmem:[%s2061 + $0x8] sm:$0xf]
        %v2065 = vld [vmem:[%s2061 + $0xc] sm:$0xf]
        %v2070 = vunpack.c.l.b16 %v2062
        %v2071 = vunpack.c.l.b16 %v2063
        %v2072 = vunpack.c.l.b16 %v2064
        %v2073 = vunpack.c.l.b16 %v2065
        %v2074 = vpack.c.b16 %v2071, %v2070
        %v2075 = vpack.c.b16 %v2073, %v2072
        %2078 = vmatprep.subr.bf16.mxu0 0
        %2079 = vmatpush1.bf16.msra.mxu0 %v2074
        %2080 = vmatprep.subr.bf16.mxu0 0
        %2081 = vmatpush1.bf16.msra.mxu0 %v2075
        %2082 = vmatprep.subr.bf16.mxu0 0
        %2083 = vmatpush1.bf16.msra.mxu0 0
        %2084 = vmatprep.subr.bf16.mxu0 0
        %2085 = vmatpush1.bf16.msra.mxu0 0
        %2086 = vmatprep.subr.bf16.mxu0 0
        %2087 = vmatpush1.bf16.msra.mxu0 0
        %2088 = vmatprep.subr.bf16.mxu0 0
        %2089 = vmatpush1.bf16.msra.mxu0 0
        %2090 = vmatprep.subr.bf16.mxu0 0
        %2091 = vmatpush1.bf16.msra.mxu0 0
        %2092 = vmatprep.subr.bf16.mxu0 0
        %2093 = vmatpush1.bf16.msra.mxu0 0
        %2094 = vmatprep.subr.bf16.mxu0 0
        %2095 = vmatpush1.bf16.msra.mxu0 0
        %2096 = vmatprep.subr.bf16.mxu0 0
        %2097 = vmatpush1.bf16.msra.mxu0 0
        %2098 = vmatprep.subr.bf16.mxu0 0
        %2099 = vmatpush1.bf16.msra.mxu0 0
        %2100 = vmatprep.subr.bf16.mxu0 0
        %2101 = vmatpush1.bf16.msra.mxu0 0
        %2102 = vmatprep.subr.bf16.mxu0 0
        %2103 = vmatpush1.bf16.msra.mxu0 0
        %2104 = vmatprep.subr.bf16.mxu0 0
        %2105 = vmatpush1.bf16.msra.mxu0 0
        %2106 = vmatprep.subr.bf16.mxu0 0
        %2107 = vmatpush1.bf16.msra.mxu0 0
        %2108 = vmatprep.subr.bf16.mxu0 0
        %2109 = vmatpush1.bf16.msra.mxu0 0
        %2110 = vmatprep.mubr.bf16.mxu0 0
        %2111 = vmatmul.mubr.bf16.gmra.mrb[0].mxu0 %v1962
        %v2112 = vpop.f32.mrb[0].mxu0
        %v2113 = vadd.f32 0.0, %v2112
        %v2114 = vpop.f32.mrb[0].mxu0
        %v2115 = vpop.f32.mrb[0].mxu0
        %v2116 = vpop.f32.mrb[0].mxu0
        %2117 = vdwg.mxu0
        %s2118 = scalar_lea.vmem %s1, 16
        %v2119 = vld [vmem:[%s2118] sm:$0x1f]
        %v2121 = vsel %vm1118, %v1999, 0
        %v2124 = vsel %vm1118, %v2056, 0
        %2126 = vmatprep.subr.mxu0 0.0
        %2127 = vmatpush1.xpose.msra.mxu0 %v2124
        %2128 = vmatprep.subr.mxu0 0.0
        %2129 = vmatpush1.xpose.msra.mxu0 0.0
        %2130 = vmatprep.subr.mxu0 0.0
        %2131 = vmatpush1.xpose.msra.mxu0 0.0
        %2132 = vmatprep.subr.mxu0 0.0
        %2133 = vmatpush1.xpose.msra.mxu0 0.0
        %2134 = vmatprep.subr.mxu0 0.0
        %2135 = vmatpush1.xpose.msra.mxu0 0.0
        %2136 = vmatprep.subr.mxu0 0.0
        %2137 = vmatpush1.xpose.msra.mxu0 0.0
        %2138 = vmatprep.subr.mxu0 0.0
        %2139 = vmatpush1.xpose.msra.mxu0 0.0
        %2140 = vmatprep.subr.mxu0 0.0
        %2141 = vmatpush1.xpose.msra.mxu0 0.0
        %2142 = vmatprep.subr.mxu0 0.0
        %2143 = vmatpush1.xpose.msra.mxu0 0.0
        %2144 = vmatprep.subr.mxu0 0.0
        %2145 = vmatpush1.xpose.msra.mxu0 0.0
        %2146 = vmatprep.subr.mxu0 0.0
        %2147 = vmatpush1.xpose.msra.mxu0 0.0
        %2148 = vmatprep.subr.mxu0 0.0
        %2149 = vmatpush1.xpose.msra.mxu0 0.0
        %2150 = vmatprep.subr.mxu0 0.0
        %2151 = vmatpush1.xpose.msra.mxu0 0.0
        %2152 = vmatprep.subr.mxu0 0.0
        %2153 = vmatpush1.xpose.msra.mxu0 0.0
        %2154 = vmatprep.subr.mxu0 0.0
        %2155 = vmatpush1.xpose.msra.mxu0 0.0
        %2156 = vmatprep.subr.mxu0 0.0
        %2157 = vmatpush1.xpose.msra.mxu0 0.0
        %2158 = vmatprep.subr.mxu0 0.0
        %2159 = vmatpush1.xpose.msra.mxu0 0.0
        %2160 = vmatprep.subr.mxu0 0.0
        %2161 = vmatpush1.xpose.msra.mxu0 0.0
        %2162 = vmatprep.subr.mxu0 0.0
        %2163 = vmatpush1.xpose.msra.mxu0 0.0
        %2164 = vmatprep.subr.mxu0 0.0
        %2165 = vmatpush1.xpose.msra.mxu0 0.0
        %2166 = vmatprep.subr.mxu0 0.0
        %2167 = vmatpush1.xpose.msra.mxu0 0.0
        %2168 = vmatprep.subr.mxu0 0.0
        %2169 = vmatpush1.xpose.msra.mxu0 0.0
        %2170 = vmatprep.subr.mxu0 0.0
        %2171 = vmatpush1.xpose.msra.mxu0 0.0
        %2172 = vmatprep.subr.mxu0 0.0
        %2173 = vmatpush1.xpose.msra.mxu0 0.0
        %2174 = vmatprep.subr.mxu0 0.0
        %2175 = vmatpush1.xpose.msra.mxu0 0.0
        %2176 = vmatprep.subr.mxu0 0.0
        %2177 = vmatpush1.xpose.msra.mxu0 0.0
        %2178 = vmatprep.subr.mxu0 0.0
        %2179 = vmatpush1.xpose.msra.mxu0 0.0
        %2180 = vmatprep.subr.mxu0 0.0
        %2181 = vmatpush1.xpose.msra.mxu0 0.0
        %2182 = vmatprep.subr.mxu0 0.0
        %2183 = vmatpush1.xpose.msra.mxu0 0.0
        %2184 = vmatprep.subr.mxu0 0.0
        %2185 = vmatpush1.xpose.msra.mxu0 0.0
        %2186 = vmatprep.subr.mxu0 0.0
        %2187 = vmatpush1.xpose.msra.mxu0 0.0
        %2188 = vmatprep.subr.mxu0 0.0
        %2189 = vmatpush1.xpose.msra.mxu0 0.0
        %2190 = vmatprep.mubr.f32.mxu0 0.0
        %2191 = vmatmul.mubr.f32.gmra.mrb[0].mxu0 %v2121
        %v2192 = vpop.f32.mrb[0].mxu0
        %v2193 = vadd.f32 %v2119, %v2192
        %v2194 = vpop.f32.mrb[0].mxu0
        %2195 = vdwg.mxu0
        %v2196 = vsel %vm1195, %v2193, -inf
        %2197 = vmax.xlane.f32.xlu0 %v2196
        %v2198 = vpop.xlane.xlu0 %2197
        %v2199 = vsub.f32 %v2193, %v2198
        %v2200 = vmul.f32 %v2199, 1.442695
        %v2201 = vpow.pop %v2200
        %v2202 = vsel %vm1195, %v2201, 0.0
        %2203 = vadd.xlane.f32.xlu0 %v2202
        %v2204 = vpop.xlane.xlu0 %2203
        %v2205 = vrcp.pop %v2204
        %v2206 = vmul.f32 %v2201, %v2205
        %v2207 = vpack.c.bf16 %v2206, %v2206
        %v2208 = vpack.c.bf16 %v2113, %v2113
        %v2210 = vsel %vm1209, %v2207, 0
        %v2213 = vand.u32 %v2208, %v1216
        %2215 = vmatprep.subr.bf16.mxu0 0
        %2216 = vmatpush1.bf16.msra.mxu0 %v2213
        %2217 = vmatprep.subr.bf16.mxu0 0
        %2218 = vmatpush1.bf16.msra.mxu0 0
        %2219 = vmatprep.subr.bf16.mxu0 0
        %2220 = vmatpush1.bf16.msra.mxu0 0
        %2221 = vmatprep.subr.bf16.mxu0 0
        %2222 = vmatpush1.bf16.msra.mxu0 0
        %2223 = vmatprep.subr.bf16.mxu0 0
        %2224 = vmatpush1.bf16.msra.mxu0 0
        %2225 = vmatprep.subr.bf16.mxu0 0
        %2226 = vmatpush1.bf16.msra.mxu0 0
        %2227 = vmatprep.subr.bf16.mxu0 0
        %2228 = vmatpush1.bf16.msra.mxu0 0
        %2229 = vmatprep.subr.bf16.mxu0 0
        %2230 = vmatpush1.bf16.msra.mxu0 0
        %2231 = vmatprep.subr.bf16.mxu0 0
        %2232 = vmatpush1.bf16.msra.mxu0 0
        %2233 = vmatprep.subr.bf16.mxu0 0
        %2234 = vmatpush1.bf16.msra.mxu0 0
        %2235 = vmatprep.subr.bf16.mxu0 0
        %2236 = vmatpush1.bf16.msra.mxu0 0
        %2237 = vmatprep.subr.bf16.mxu0 0
        %2238 = vmatpush1.bf16.msra.mxu0 0
        %2239 = vmatprep.subr.bf16.mxu0 0
        %2240 = vmatpush1.bf16.msra.mxu0 0
        %2241 = vmatprep.subr.bf16.mxu0 0
        %2242 = vmatpush1.bf16.msra.mxu0 0
        %2243 = vmatprep.subr.bf16.mxu0 0
        %2244 = vmatpush1.bf16.msra.mxu0 0
        %2245 = vmatprep.subr.bf16.mxu0 0
        %2246 = vmatpush1.bf16.msra.mxu0 0
        %2247 = vmatprep.mubr.bf16.mxu0 0
        %2248 = vmatmul.mubr.bf16.gmra.mrb[0].mxu0 %v2210
        %v2249 = vpop.f32.mrb[0].mxu0
        %v2250 = vadd.f32 0.0, %v2249
        %v2251 = vpop.f32.mrb[0].mxu0
        %v2252 = vpop.f32.mrb[0].mxu0
        %v2253 = vpop.f32.mrb[0].mxu0
        %2254 = vdwg.mxu0
        %v2255 = vpack.c.bf16 %v2250, %v2250
        %s2256 = scalar_lea.vmem %s5, 16
        %v2257 = vld [vmem:[%s2256] sm:$0xf]
        %v2258 = vld [vmem:[%s2256 + $0x4] sm:$0xf]
        %s2259 = scalar_lea.vmem %s3, 112
        %v2260 = vld [vmem:[%s2259] sm:$0xf]
        %v2261 = vld [vmem:[%s2259 + $0x4] sm:$0xf]
        %v2262 = vld [vmem:[%s2259 + $0x8] sm:$0xf]
        %v2263 = vld [vmem:[%s2259 + $0xc] sm:$0xf]
        %s2264 = scalar_lea.vmem %s4, 3
        %v2265 = vld [vmem:[%s2264] sm:$0x1]
        %v2267 = vlaneseq
        %v2268 = vshrl.u32 %v2267, 7
        %v2269 = vsub.s32 0, %v2268
        %v2270 = vrot.slane %v2265, %v2269
        %v2276 = vunpack.c.l.b16 %v2260
        %v2277 = vunpack.c.l.b16 %v2261
        %v2278 = vunpack.c.l.b16 %v2262
        %v2279 = vunpack.c.l.b16 %v2263
        %v2280 = vpack.c.b16 %v2277, %v2276
        %v2281 = vpack.c.b16 %v2279, %v2278
        %2284 = vmatprep.subr.bf16.mxu0 0
        %2285 = vmatpush1.bf16.msra.mxu0 %v2280
        %2286 = vmatprep.subr.bf16.mxu0 0
        %2287 = vmatpush1.bf16.msra.mxu0 %v2281
        %2288 = vmatprep.subr.bf16.mxu0 0
        %2289 = vmatpush1.bf16.msra.mxu0 0
        %2290 = vmatprep.subr.bf16.mxu0 0
        %2291 = vmatpush1.bf16.msra.mxu0 0
        %2292 = vmatprep.subr.bf16.mxu0 0
        %2293 = vmatpush1.bf16.msra.mxu0 0
        %2294 = vmatprep.subr.bf16.mxu0 0
        %2295 = vmatpush1.bf16.msra.mxu0 0
        %2296 = vmatprep.subr.bf16.mxu0 0
        %2297 = vmatpush1.bf16.msra.mxu0 0
        %2298 = vmatprep.subr.bf16.mxu0 0
        %2299 = vmatpush1.bf16.msra.mxu0 0
        %2300 = vmatprep.subr.bf16.mxu0 0
        %2301 = vmatpush1.bf16.msra.mxu0 0
        %2302 = vmatprep.subr.bf16.mxu0 0
        %2303 = vmatpush1.bf16.msra.mxu0 0
        %2304 = vmatprep.subr.bf16.mxu0 0
        %2305 = vmatpush1.bf16.msra.mxu0 0
        %2306 = vmatprep.subr.bf16.mxu0 0
        %2307 = vmatpush1.bf16.msra.mxu0 0
        %2308 = vmatprep.subr.bf16.mxu0 0
        %2309 = vmatpush1.bf16.msra.mxu0 0
        %2310 = vmatprep.subr.bf16.mxu0 0
        %2311 = vmatpush1.bf16.msra.mxu0 0
        %2312 = vmatprep.subr.bf16.mxu0 0
        %2313 = vmatpush1.bf16.msra.mxu0 0
        %2314 = vmatprep.subr.bf16.mxu0 0
        %2315 = vmatpush1.bf16.msra.mxu0 0
        %2316 = vmatprep.mubr.bf16.mxu0 0
        %2317 = vmatmul.mubr.bf16.gmra.mrb[0].mxu0 %v1962
        %v2318 = vpop.f32.mrb[0].mxu0
        %v2319 = vadd.f32 %v2270, %v2318
        %v2320 = vpop.f32.mrb[0].mxu0
        %v2321 = vpop.f32.mrb[0].mxu0
        %v2322 = vpop.f32.mrb[0].mxu0
        %2323 = vdwg.mxu0
        %s2324 = scalar_lea.vmem %s3, 144
        %v2325 = vld [vmem:[%s2324] sm:$0xf]
        %v2326 = vld [vmem:[%s2324 + $0x4] sm:$0xf]
        %v2327 = vld [vmem:[%s2324 + $0x8] sm:$0xf]
        %v2328 = vld [vmem:[%s2324 + $0xc] sm:$0xf]
        %v2333 = vunpack.c.l.b16 %v2325
        %v2334 = vunpack.c.l.b16 %v2326
        %v2335 = vunpack.c.l.b16 %v2327
        %v2336 = vunpack.c.l.b16 %v2328
        %v2337 = vpack.c.b16 %v2334, %v2333
        %v2338 = vpack.c.b16 %v2336, %v2335
        %2341 = vmatprep.subr.bf16.mxu0 0
        %2342 = vmatpush1.bf16.msra.mxu0 %v2337
        %2343 = vmatprep.subr.bf16.mxu0 0
        %2344 = vmatpush1.bf16.msra.mxu0 %v2338
        %2345 = vmatprep.subr.bf16.mxu0 0
        %2346 = vmatpush1.bf16.msra.mxu0 0
        %2347 = vmatprep.subr.bf16.mxu0 0
        %2348 = vmatpush1.bf16.msra.mxu0 0
        %2349 = vmatprep.subr.bf16.mxu0 0
        %2350 = vmatpush1.bf16.msra.mxu0 0
        %2351 = vmatprep.subr.bf16.mxu0 0
        %2352 = vmatpush1.bf16.msra.mxu0 0
        %2353 = vmatprep.subr.bf16.mxu0 0
        %2354 = vmatpush1.bf16.msra.mxu0 0
        %2355 = vmatprep.subr.bf16.mxu0 0
        %2356 = vmatpush1.bf16.msra.mxu0 0
        %2357 = vmatprep.subr.bf16.mxu0 0
        %2358 = vmatpush1.bf16.msra.mxu0 0
        %2359 = vmatprep.subr.bf16.mxu0 0
        %2360 = vmatpush1.bf16.msra.mxu0 0
        %2361 = vmatprep.subr.bf16.mxu0 0
        %2362 = vmatpush1.bf16.msra.mxu0 0
        %2363 = vmatprep.subr.bf16.mxu0 0
        %2364 = vmatpush1.bf16.msra.mxu0 0
        %2365 = vmatprep.subr.bf16.mxu0 0
        %2366 = vmatpush1.bf16.msra.mxu0 0
        %2367 = vmatprep.subr.bf16.mxu0 0
        %2368 = vmatpush1.bf16.msra.mxu0 0
        %2369 = vmatprep.subr.bf16.mxu0 0
        %2370 = vmatpush1.bf16.msra.mxu0 0
        %2371 = vmatprep.subr.bf16.mxu0 0
        %2372 = vmatpush1.bf16.msra.mxu0 0
        %2373 = vmatprep.mubr.bf16.mxu0 0
        %2374 = vmatmul.mubr.bf16.gmra.mrb[0].mxu0 %v1962
        %v2375 = vpop.f32.mrb[0].mxu0
        %v2376 = vadd.f32 0.0, %v2375
        %v2377 = vpop.f32.mrb[0].mxu0
        %v2378 = vpop.f32.mrb[0].mxu0
        %v2379 = vpop.f32.mrb[0].mxu0
        %2380 = vdwg.mxu0
        %s2381 = scalar_lea.vmem %s3, 176
        %v2382 = vld [vmem:[%s2381] sm:$0xf]
        %v2383 = vld [vmem:[%s2381 + $0x4] sm:$0xf]
        %v2384 = vld [vmem:[%s2381 + $0x8] sm:$0xf]
        %v2385 = vld [vmem:[%s2381 + $0xc] sm:$0xf]
        %v2390 = vunpack.c.l.b16 %v2382
        %v2391 = vunpack.c.l.b16 %v2383
        %v2392 = vunpack.c.l.b16 %v2384
        %v2393 = vunpack.c.l.b16 %v2385
        %v2394 = vpack.c.b16 %v2391, %v2390
        %v2395 = vpack.c.b16 %v2393, %v2392
        %2398 = vmatprep.subr.bf16.mxu0 0
        %2399 = vmatpush1.bf16.msra.mxu0 %v2394
        %2400 = vmatprep.subr.bf16.mxu0 0
        %2401 = vmatpush1.bf16.msra.mxu0 %v2395
        %2402 = vmatprep.subr.bf16.mxu0 0
        %2403 = vmatpush1.bf16.msra.mxu0 0
        %2404 = vmatprep.subr.bf16.mxu0 0
        %2405 = vmatpush1.bf16.msra.mxu0 0
        %2406 = vmatprep.subr.bf16.mxu0 0
        %2407 = vmatpush1.bf16.msra.mxu0 0
        %2408 = vmatprep.subr.bf16.mxu0 0
        %2409 = vmatpush1.bf16.msra.mxu0 0
        %2410 = vmatprep.subr.bf16.mxu0 0
        %2411 = vmatpush1.bf16.msra.mxu0 0
        %2412 = vmatprep.subr.bf16.mxu0 0
        %2413 = vmatpush1.bf16.msra.mxu0 0
        %2414 = vmatprep.subr.bf16.mxu0 0
        %2415 = vmatpush1.bf16.msra.mxu0 0
        %2416 = vmatprep.subr.bf16.mxu0 0
        %2417 = vmatpush1.bf16.msra.mxu0 0
        %2418 = vmatprep.subr.bf16.mxu0 0
        %2419 = vmatpush1.bf16.msra.mxu0 0
        %2420 = vmatprep.subr.bf16.mxu0 0
        %2421 = vmatpush1.bf16.msra.mxu0 0
        %2422 = vmatprep.subr.bf16.mxu0 0
        %2423 = vmatpush1.bf16.msra.mxu0 0
        %2424 = vmatprep.subr.bf16.mxu0 0
        %2425 = vmatpush1.bf16.msra.mxu0 0
        %2426 = vmatprep.subr.bf16.mxu0 0
        %2427 = vmatpush1.bf16.msra.mxu0 0
        %2428 = vmatprep.subr.bf16.mxu0 0
        %2429 = vmatpush1.bf16.msra.mxu0 0
        %2430 = vmatprep.mubr.bf16.mxu0 0
        %2431 = vmatmul.mubr.bf16.gmra.mrb[0].mxu0 %v1962
        %v2432 = vpop.f32.mrb[0].mxu0
        %v2433 = vadd.f32 0.0, %v2432
        %v2434 = vpop.f32.mrb[0].mxu0
        %v2435 = vpop.f32.mrb[0].mxu0
        %v2436 = vpop.f32.mrb[0].mxu0
        %2437 = vdwg.mxu0
        %s2438 = scalar_lea.vmem %s1, 24
        %v2439 = vld [vmem:[%s2438] sm:$0x1f]
        %v2441 = vsel %vm1118, %v2319, 0
        %v2444 = vsel %vm1118, %v2376, 0
        %2446 = vmatprep.subr.mxu0 0.0
        %2447 = vmatpush1.xpose.msra.mxu0 %v2444
        %2448 = vmatprep.subr.mxu0 0.0
        %2449 = vmatpush1.xpose.msra.mxu0 0.0
        %2450 = vmatprep.subr.mxu0 0.0
        %2451 = vmatpush1.xpose.msra.mxu0 0.0
        %2452 = vmatprep.subr.mxu0 0.0
        %2453 = vmatpush1.xpose.msra.mxu0 0.0
        %2454 = vmatprep.subr.mxu0 0.0
        %2455 = vmatpush1.xpose.msra.mxu0 0.0
        %2456 = vmatprep.subr.mxu0 0.0
        %2457 = vmatpush1.xpose.msra.mxu0 0.0
        %2458 = vmatprep.subr.mxu0 0.0
        %2459 = vmatpush1.xpose.msra.mxu0 0.0
        %2460 = vmatprep.subr.mxu0 0.0
        %2461 = vmatpush1.xpose.msra.mxu0 0.0
        %2462 = vmatprep.subr.mxu0 0.0
        %2463 = vmatpush1.xpose.msra.mxu0 0.0
        %2464 = vmatprep.subr.mxu0 0.0
        %2465 = vmatpush1.xpose.msra.mxu0 0.0
        %2466 = vmatprep.subr.mxu0 0.0
        %2467 = vmatpush1.xpose.msra.mxu0 0.0
        %2468 = vmatprep.subr.mxu0 0.0
        %2469 = vmatpush1.xpose.msra.mxu0 0.0
        %2470 = vmatprep.subr.mxu0 0.0
        %2471 = vmatpush1.xpose.msra.mxu0 0.0
        %2472 = vmatprep.subr.mxu0 0.0
        %2473 = vmatpush1.xpose.msra.mxu0 0.0
        %2474 = vmatprep.subr.mxu0 0.0
        %2475 = vmatpush1.xpose.msra.mxu0 0.0
        %2476 = vmatprep.subr.mxu0 0.0
        %2477 = vmatpush1.xpose.msra.mxu0 0.0
        %2478 = vmatprep.subr.mxu0 0.0
        %2479 = vmatpush1.xpose.msra.mxu0 0.0
        %2480 = vmatprep.subr.mxu0 0.0
        %2481 = vmatpush1.xpose.msra.mxu0 0.0
        %2482 = vmatprep.subr.mxu0 0.0
        %2483 = vmatpush1.xpose.msra.mxu0 0.0
        %2484 = vmatprep.subr.mxu0 0.0
        %2485 = vmatpush1.xpose.msra.mxu0 0.0
        %2486 = vmatprep.subr.mxu0 0.0
        %2487 = vmatpush1.xpose.msra.mxu0 0.0
        %2488 = vmatprep.subr.mxu0 0.0
        %2489 = vmatpush1.xpose.msra.mxu0 0.0
        %2490 = vmatprep.subr.mxu0 0.0
        %2491 = vmatpush1.xpose.msra.mxu0 0.0
        %2492 = vmatprep.subr.mxu0 0.0
        %2493 = vmatpush1.xpose.msra.mxu0 0.0
        %2494 = vmatprep.subr.mxu0 0.0
        %2495 = vmatpush1.xpose.msra.mxu0 0.0
        %2496 = vmatprep.subr.mxu0 0.0
        %2497 = vmatpush1.xpose.msra.mxu0 0.0
        %2498 = vmatprep.subr.mxu0 0.0
        %2499 = vmatpush1.xpose.msra.mxu0 0.0
        %2500 = vmatprep.subr.mxu0 0.0
        %2501 = vmatpush1.xpose.msra.mxu0 0.0
        %2502 = vmatprep.subr.mxu0 0.0
        %2503 = vmatpush1.xpose.msra.mxu0 0.0
        %2504 = vmatprep.subr.mxu0 0.0
        %2505 = vmatpush1.xpose.msra.mxu0 0.0
        %2506 = vmatprep.subr.mxu0 0.0
        %2507 = vmatpush1.xpose.msra.mxu0 0.0
        %2508 = vmatprep.subr.mxu0 0.0
        %2509 = vmatpush1.xpose.msra.mxu0 0.0
        %2510 = vmatprep.mubr.f32.mxu0 0.0
        %2511 = vmatmul.mubr.f32.gmra.mrb[0].mxu0 %v2441
        %v2512 = vpop.f32.mrb[0].mxu0
        %v2513 = vadd.f32 %v2439, %v2512
        %v2514 = vpop.f32.mrb[0].mxu0
        %2515 = vdwg.mxu0
        %v2516 = vsel %vm1195, %v2513, -inf
        %2517 = vmax.xlane.f32.xlu0 %v2516
        %v2518 = vpop.xlane.xlu0 %2517
        %v2519 = vsub.f32 %v2513, %v2518
        %v2520 = vmul.f32 %v2519, 1.442695
        %v2521 = vpow.pop %v2520
        %v2522 = vsel %vm1195, %v2521, 0.0
        %2523 = vadd.xlane.f32.xlu0 %v2522
        %v2524 = vpop.xlane.xlu0 %2523
        %v2525 = vrcp.pop %v2524
        %v2526 = vmul.f32 %v2521, %v2525
        %v2527 = vpack.c.bf16 %v2526, %v2526
        %v2528 = vpack.c.bf16 %v2433, %v2433
        %v2530 = vsel %vm1209, %v2527, 0
        %v2533 = vand.u32 %v2528, %v1216
        %2535 = vmatprep.subr.bf16.mxu0 0
        %2536 = vmatpush1.bf16.msra.mxu0 %v2533
        %2537 = vmatprep.subr.bf16.mxu0 0
        %2538 = vmatpush1.bf16.msra.mxu0 0
        %2539 = vmatprep.subr.bf16.mxu0 0
        %2540 = vmatpush1.bf16.msra.mxu0 0
        %2541 = vmatprep.subr.bf16.mxu0 0
        %2542 = vmatpush1.bf16.msra.mxu0 0
        %2543 = vmatprep.subr.bf16.mxu0 0
        %2544 = vmatpush1.bf16.msra.mxu0 0
        %2545 = vmatprep.subr.bf16.mxu0 0
        %2546 = vmatpush1.bf16.msra.mxu0 0
        %2547 = vmatprep.subr.bf16.mxu0 0
        %2548 = vmatpush1.bf16.msra.mxu0 0
        %2549 = vmatprep.subr.bf16.mxu0 0
        %2550 = vmatpush1.bf16.msra.mxu0 0
        %2551 = vmatprep.subr.bf16.mxu0 0
        %2552 = vmatpush1.bf16.msra.mxu0 0
        %2553 = vmatprep.subr.bf16.mxu0 0
        %2554 = vmatpush1.bf16.msra.mxu0 0
        %2555 = vmatprep.subr.bf16.mxu0 0
        %2556 = vmatpush1.bf16.msra.mxu0 0
        %2557 = vmatprep.subr.bf16.mxu0 0
        %2558 = vmatpush1.bf16.msra.mxu0 0
        %2559 = vmatprep.subr.bf16.mxu0 0
        %2560 = vmatpush1.bf16.msra.mxu0 0
        %2561 = vmatprep.subr.bf16.mxu0 0
        %2562 = vmatpush1.bf16.msra.mxu0 0
        %2563 = vmatprep.subr.bf16.mxu0 0
        %2564 = vmatpush1.bf16.msra.mxu0 0
        %2565 = vmatprep.subr.bf16.mxu0 0
        %2566 = vmatpush1.bf16.msra.mxu0 0
        %2567 = vmatprep.mubr.bf16.mxu0 0
        %2568 = vmatmul.mubr.bf16.gmra.mrb[0].mxu0 %v2530
        %v2569 = vpop.f32.mrb[0].mxu0
        %v2570 = vadd.f32 0.0, %v2569
        %v2571 = vpop.f32.mrb[0].mxu0
        %v2572 = vpop.f32.mrb[0].mxu0
        %v2573 = vpop.f32.mrb[0].mxu0
        %2574 = vdwg.mxu0
        %v2575 = vpack.c.bf16 %v2570, %v2570
        %s2576 = scalar_lea.vmem %s5, 24
        %v2577 = vld [vmem:[%s2576] sm:$0xf]
        %v2578 = vld [vmem:[%s2576 + $0x4] sm:$0xf]
        %v2581 = vunpack.c.l.b16 %v2577
        %v2582 = vunpack.c.l.b16 %v2578
        %v2583 = vpack.c.b16 %v2582, %v2581
        %v2586 = vsel %vm1118, %v2575, 0
        %2588 = vmatprep.subr.bf16.mxu0 0
        %2589 = vmatpush1.bf16.msra.mxu0 %v2583
        %2590 = vmatprep.subr.bf16.mxu0 0
        %2591 = vmatpush1.bf16.msra.mxu0 0
        %2592 = vmatprep.subr.bf16.mxu0 0
        %2593 = vmatpush1.bf16.msra.mxu0 0
        %2594 = vmatprep.subr.bf16.mxu0 0
        %2595 = vmatpush1.bf16.msra.mxu0 0
        %2596 = vmatprep.subr.bf16.mxu0 0
        %2597 = vmatpush1.bf16.msra.mxu0 0
        %2598 = vmatprep.subr.bf16.mxu0 0
        %2599 = vmatpush1.bf16.msra.mxu0 0
        %2600 = vmatprep.subr.bf16.mxu0 0
        %2601 = vmatpush1.bf16.msra.mxu0 0
        %2602 = vmatprep.subr.bf16.mxu0 0
        %2603 = vmatpush1.bf16.msra.mxu0 0
        %2604 = vmatprep.subr.bf16.mxu0 0
        %2605 = vmatpush1.bf16.msra.mxu0 0
        %2606 = vmatprep.subr.bf16.mxu0 0
        %2607 = vmatpush1.bf16.msra.mxu0 0
        %2608 = vmatprep.subr.bf16.mxu0 0
        %2609 = vmatpush1.bf16.msra.mxu0 0
        %2610 = vmatprep.subr.bf16.mxu0 0
        %2611 = vmatpush1.bf16.msra.mxu0 0
        %2612 = vmatprep.subr.bf16.mxu0 0
        %2613 = vmatpush1.bf16.msra.mxu0 0
        %2614 = vmatprep.subr.bf16.mxu0 0
        %2615 = vmatpush1.bf16.msra.mxu0 0
        %2616 = vmatprep.subr.bf16.mxu0 0
        %2617 = vmatpush1.bf16.msra.mxu0 0
        %2618 = vmatprep.subr.bf16.mxu0 0
        %2619 = vmatpush1.bf16.msra.mxu0 0
        %2620 = vmatprep.mubr.bf16.mxu0 0
        %2621 = vmatmul.mubr.bf16.gmra.mrb[0].mxu0 %v2586
        %v2622 = vpop.f32.mrb[0].mxu0
        %v2623 = vadd.f32 0.0, %v2622
        %v2624 = vpop.f32.mrb[0].mxu0
        %v2625 = vpop.f32.mrb[0].mxu0
        %v2626 = vpop.f32.mrb[0].mxu0
        %2627 = vdwg.mxu0
        %v2630 = vunpack.c.l.b16 %v2257
        %v2631 = vunpack.c.l.b16 %v2258
        %v2632 = vpack.c.b16 %v2631, %v2630
        %v2635 = vsel %vm1118, %v2255, 0
        %2637 = vmatprep.subr.bf16.mxu0 0
        %2638 = vmatpush1.bf16.msra.mxu0 %v2632
        %2639 = vmatprep.subr.bf16.mxu0 0
        %2640 = vmatpush1.bf16.msra.mxu0 0
        %2641 = vmatprep.subr.bf16.mxu0 0
        %2642 = vmatpush1.bf16.msra.mxu0 0
        %2643 = vmatprep.subr.bf16.mxu0 0
        %2644 = vmatpush1.bf16.msra.mxu0 0
        %2645 = vmatprep.subr.bf16.mxu0 0
        %2646 = vmatpush1.bf16.msra.mxu0 0
        %2647 = vmatprep.subr.bf16.mxu0 0
        %2648 = vmatpush1.bf16.msra.mxu0 0
        %2649 = vmatprep.subr.bf16.mxu0 0
        %2650 = vmatpush1.bf16.msra.mxu0 0
        %2651 = vmatprep.subr.bf16.mxu0 0
        %2652 = vmatpush1.bf16.msra.mxu0 0
        %2653 = vmatprep.subr.bf16.mxu0 0
        %2654 = vmatpush1.bf16.msra.mxu0 0
        %2655 = vmatprep.subr.bf16.mxu0 0
        %2656 = vmatpush1.bf16.msra.mxu0 0
        %2657 = vmatprep.subr.bf16.mxu0 0
        %2658 = vmatpush1.bf16.msra.mxu0 0
        %2659 = vmatprep.subr.bf16.mxu0 0
        %2660 = vmatpush1.bf16.msra.mxu0 0
        %2661 = vmatprep.subr.bf16.mxu0 0
        %2662 = vmatpush1.bf16.msra.mxu0 0
        %2663 = vmatprep.subr.bf16.mxu0 0
        %2664 = vmatpush1.bf16.msra.mxu0 0
        %2665 = vmatprep.subr.bf16.mxu0 0
        %2666 = vmatpush1.bf16.msra.mxu0 0
        %2667 = vmatprep.subr.bf16.mxu0 0
        %2668 = vmatpush1.bf16.msra.mxu0 0
        %2669 = vmatprep.mubr.bf16.mxu0 0
        %2670 = vmatmul.mubr.bf16.gmra.mrb[0].mxu0 %v2635
        %v2671 = vpop.f32.mrb[0].mxu0
        %v2672 = vadd.f32 %v2623, %v2671
        %v2673 = vpop.f32.mrb[0].mxu0
        %v2674 = vpop.f32.mrb[0].mxu0
        %v2675 = vpop.f32.mrb[0].mxu0
        %2676 = vdwg.mxu0
        %v2677 = vlaneseq
        %v2678 = vshrl.u32 %v2677, 7
        %v2679 = vsub.s32 0, %v2678
        %v2680 = vrot.slane %v1906, %v2679
        %v2681 = vadd.f32 %v2672, %v2680
        %v2682 = vlaneseq
        %v2683 = vshrl.u32 %v2682, 7
        %v2684 = vsub.s32 0, %v2683
        %v2685 = vrot.slane %v1907, %v2684
        %v2686 = vmul.f32 %v2685, %v2681
        %v2687 = vadd.f32 %v1903, %v2686
        %v2688 = vsel %vm910, %v2687, 0.0
        %2689 = vadd.xlane.f32.xlu0 %v2688
        %v2690 = vpop.xlane.xlu0 %2689
        %v2691 = vmul.f32 %v2690, %v914
        %v2692 = vsub.f32 %v2687, %v2691
        %v2693 = vmul.f32 %v2692, %v2692
        %v2694 = vsel %vm910, %v2693, 0.0
        %2695 = vadd.xlane.f32.xlu0 %v2694
        %v2696 = vpop.xlane.xlu0 %2695
        %v2697 = vmul.f32 %v2696, %v914
        %v2698 = vadd.f32 %v2697, 1e-12
        %v2699 = vrsqrt.pop %v2698
        %v2700 = vmul.f32 %v2692, %v2699
        %v2701 = vlaneseq
        %v2702 = vshrl.u32 %v2701, 7
        %v2703 = vsub.s32 0, %v2702
        %v2704 = vrot.slane %v1908, %v2703
        %v2705 = vmul.f32 %v2700, %v2704
        %v2706 = vlaneseq
        %v2707 = vshrl.u32 %v2706, 7
        %v2708 = vsub.s32 0, %v2707
        %v2709 = vrot.slane %v1909, %v2708
        %v2710 = vadd.f32 %v2705, %v2709
        %v2711 = vpack.c.bf16 %v2710, %v2710
        %s2712 = scalar_lea.vmem %s6, 16
        %v2713 = vld [vmem:[%s2712] sm:$0xf]
        %v2714 = vld [vmem:[%s2712 + $0x4] sm:$0xf]
        %v2715 = vld [vmem:[%s2712 + $0x8] sm:$0xf]
        %v2716 = vld [vmem:[%s2712 + $0xc] sm:$0xf]
        %v2717 = vld [vmem:[%s10 + $0x1] sm:$0x1]
        %v2718 = vlaneseq
        %v2719 = vshrl.u32 %v2718, 7
        %v2720 = vsub.s32 0, %v2719
        %v2721 = vrot.slane %v2717, %v2720
        %v2726 = vunpack.c.l.b16 %v2713
        %v2727 = vunpack.c.l.b16 %v2714
        %v2728 = vunpack.c.l.b16 %v2715
        %v2729 = vunpack.c.l.b16 %v2716
        %v2730 = vpack.c.b16 %v2727, %v2726
        %v2731 = vpack.c.b16 %v2729, %v2728
        %v2735 = vsel %vm959, %v2711, 0
        %2737 = vmatprep.subr.bf16.mxu0 0
        %2738 = vmatpush1.bf16.msra.mxu0 %v2730
        %2739 = vmatprep.subr.bf16.mxu0 0
        %2740 = vmatpush1.bf16.msra.mxu0 %v2731
        %2741 = vmatprep.subr.bf16.mxu0 0
        %2742 = vmatpush1.bf16.msra.mxu0 0
        %2743 = vmatprep.subr.bf16.mxu0 0
        %2744 = vmatpush1.bf16.msra.mxu0 0
        %2745 = vmatprep.subr.bf16.mxu0 0
        %2746 = vmatpush1.bf16.msra.mxu0 0
        %2747 = vmatprep.subr.bf16.mxu0 0
        %2748 = vmatpush1.bf16.msra.mxu0 0
        %2749 = vmatprep.subr.bf16.mxu0 0
        %2750 = vmatpush1.bf16.msra.mxu0 0
        %2751 = vmatprep.subr.bf16.mxu0 0
        %2752 = vmatpush1.bf16.msra.mxu0 0
        %2753 = vmatprep.subr.bf16.mxu0 0
        %2754 = vmatpush1.bf16.msra.mxu0 0
        %2755 = vmatprep.subr.bf16.mxu0 0
        %2756 = vmatpush1.bf16.msra.mxu0 0
        %2757 = vmatprep.subr.bf16.mxu0 0
        %2758 = vmatpush1.bf16.msra.mxu0 0
        %2759 = vmatprep.subr.bf16.mxu0 0
        %2760 = vmatpush1.bf16.msra.mxu0 0
        %2761 = vmatprep.subr.bf16.mxu0 0
        %2762 = vmatpush1.bf16.msra.mxu0 0
        %2763 = vmatprep.subr.bf16.mxu0 0
        %2764 = vmatpush1.bf16.msra.mxu0 0
        %2765 = vmatprep.subr.bf16.mxu0 0
        %2766 = vmatpush1.bf16.msra.mxu0 0
        %2767 = vmatprep.subr.bf16.mxu0 0
        %2768 = vmatpush1.bf16.msra.mxu0 0
        %2769 = vmatprep.mubr.bf16.mxu0 0
        %2770 = vmatmul.mubr.bf16.gmra.mrb[0].mxu0 %v2735
        %v2771 = vpop.f32.mrb[0].mxu0
        %v2772 = vadd.f32 %v2721, %v2771
        %v2773 = vpop.f32.mrb[0].mxu0
        %v2774 = vpop.f32.mrb[0].mxu0
        %v2775 = vpop.f32.mrb[0].mxu0
        %2776 = vdwg.mxu0
        %v2777 = vmul.f32 %v2772, %v2772
        %v2778 = vmul.f32 %v2772, %v2777
        %v2779 = vmul.f32 %v2778, 0.044715
        %v2780 = vadd.f32 %v2772, %v2779
        %v2781 = vmul.f32 %v2780, 0.7978846
        %v2782 = vtanh.pop %v2781
        %v2783 = vadd.f32 %v2782, 1.0
        %v2784 = vmul.f32 %v2783, 0.5
        %v2785 = vmul.f32 %v2772, %v2784
        %v2786 = vpack.c.bf16 %v2785, %v2785
        %s2787 = scalar_lea.vmem %s7, 64
        %v2788 = vld [vmem:[%s2787] sm:$0xf]
        %v2789 = vld [vmem:[%s2787 + $0x4] sm:$0xf]
        %v2790 = vld [vmem:[%s2787 + $0x8] sm:$0xf]
        %v2791 = vld [vmem:[%s2787 + $0xc] sm:$0xf]
        %v2792 = vld [vmem:[%s2787 + $0x10] sm:$0xf]
        %v2793 = vld [vmem:[%s2787 + $0x14] sm:$0xf]
        %v2794 = vld [vmem:[%s2787 + $0x18] sm:$0xf]
        %v2795 = vld [vmem:[%s2787 + $0x1c] sm:$0xf]
        %v2796 = vld [vmem:[%s2787 + $0x20] sm:$0xf]
        %v2797 = vld [vmem:[%s2787 + $0x24] sm:$0xf]
        %v2798 = vld [vmem:[%s2787 + $0x28] sm:$0xf]
        %v2799 = vld [vmem:[%s2787 + $0x2c] sm:$0xf]
        %v2800 = vld [vmem:[%s2787 + $0x30] sm:$0xf]
        %v2801 = vld [vmem:[%s2787 + $0x34] sm:$0xf]
        %v2802 = vld [vmem:[%s2787 + $0x38] sm:$0xf]
        %v2803 = vld [vmem:[%s2787 + $0x3c] sm:$0xf]
        %v2804 = vlaneseq
        %v2805 = vshrl.u32 %v2804, 7
        %v2806 = vsub.s32 0, %v2805
        %v2807 = vrot.slane %v1910, %v2806
        %v2824 = vunpack.c.l.b16 %v2788
        %v2825 = vunpack.c.l.b16 %v2789
        %v2826 = vunpack.c.l.b16 %v2790
        %v2827 = vunpack.c.l.b16 %v2791
        %v2828 = vunpack.c.l.b16 %v2792
        %v2829 = vunpack.c.l.b16 %v2793
        %v2830 = vunpack.c.l.b16 %v2794
        %v2831 = vunpack.c.l.b16 %v2795
        %v2832 = vunpack.c.l.b16 %v2796
        %v2833 = vunpack.c.l.b16 %v2797
        %v2834 = vunpack.c.l.b16 %v2798
        %v2835 = vunpack.c.l.b16 %v2799
        %v2836 = vunpack.c.l.b16 %v2800
        %v2837 = vunpack.c.l.b16 %v2801
        %v2838 = vunpack.c.l.b16 %v2802
        %v2839 = vunpack.c.l.b16 %v2803
        %v2840 = vpack.c.b16 %v2825, %v2824
        %v2841 = vpack.c.b16 %v2827, %v2826
        %v2842 = vpack.c.b16 %v2829, %v2828
        %v2843 = vpack.c.b16 %v2831, %v2830
        %v2844 = vpack.c.b16 %v2833, %v2832
        %v2845 = vpack.c.b16 %v2835, %v2834
        %v2846 = vpack.c.b16 %v2837, %v2836
        %v2847 = vpack.c.b16 %v2839, %v2838
        %2856 = vmatprep.subr.bf16.mxu0 0
        %2857 = vmatpush1.bf16.msra.mxu0 %v2840
        %2858 = vmatprep.subr.bf16.mxu0 0
        %2859 = vmatpush1.bf16.msra.mxu0 %v2841
        %2860 = vmatprep.subr.bf16.mxu0 0
        %2861 = vmatpush1.bf16.msra.mxu0 %v2842
        %2862 = vmatprep.subr.bf16.mxu0 0
        %2863 = vmatpush1.bf16.msra.mxu0 %v2843
        %2864 = vmatprep.subr.bf16.mxu0 0
        %2865 = vmatpush1.bf16.msra.mxu0 %v2844
        %2866 = vmatprep.subr.bf16.mxu0 0
        %2867 = vmatpush1.bf16.msra.mxu0 %v2845
        %2868 = vmatprep.subr.bf16.mxu0 0
        %2869 = vmatpush1.bf16.msra.mxu0 %v2846
        %2870 = vmatprep.subr.bf16.mxu0 0
        %2871 = vmatpush1.bf16.msra.mxu0 %v2847
        %2872 = vmatprep.subr.bf16.mxu0 0
        %2873 = vmatpush1.bf16.msra.mxu0 0
        %2874 = vmatprep.subr.bf16.mxu0 0
        %2875 = vmatpush1.bf16.msra.mxu0 0
        %2876 = vmatprep.subr.bf16.mxu0 0
        %2877 = vmatpush1.bf16.msra.mxu0 0
        %2878 = vmatprep.subr.bf16.mxu0 0
        %2879 = vmatpush1.bf16.msra.mxu0 0
        %2880 = vmatprep.subr.bf16.mxu0 0
        %2881 = vmatpush1.bf16.msra.mxu0 0
        %2882 = vmatprep.subr.bf16.mxu0 0
        %2883 = vmatpush1.bf16.msra.mxu0 0
        %2884 = vmatprep.subr.bf16.mxu0 0
        %2885 = vmatpush1.bf16.msra.mxu0 0
        %2886 = vmatprep.subr.bf16.mxu0 0
        %2887 = vmatpush1.bf16.msra.mxu0 0
        %2888 = vmatprep.mubr.bf16.mxu0 0
        %2889 = vmatmul.mubr.bf16.gmra.mrb[0].mxu0 %v2786
        %v2890 = vpop.f32.mrb[0].mxu0
        %v2891 = vadd.f32 %v2807, %v2890
        %v2892 = vpop.f32.mrb[0].mxu0
        %v2893 = vpop.f32.mrb[0].mxu0
        %v2894 = vpop.f32.mrb[0].mxu0
        %2895 = vdwg.mxu0
        %v2896 = vlaneseq
        %v2897 = vshrl.u32 %v2896, 7
        %v2898 = vsub.s32 0, %v2897
        %v2899 = vrot.slane %v1911, %v2898
        %v2900 = vmul.f32 %v2899, %v2891
        %v2901 = vadd.f32 %v2687, %v2900
        %v2902 = vlaneseq
        %v2903 = vshrl.u32 %v2902, 7
        %vm2904 = vcmp.eq.s32.totalorder %v2903, 0
        %v2905 = vsel %vm2904, 0.0, 0.25
        %v2906 = vmul.f32 %v2901, %v2905
        %v2907 = vsel %vm910, %v2906, 0.0
        %v2908 = vrot.slane %v2907, 4
        %v2909 = vadd.f32 %v2907, %v2908
        %v2910 = vrot.slane %v2909, 2
        %v2911 = vadd.f32 %v2909, %v2910
        %v2912 = vrot.slane %v2911, 1
        %v2913 = vadd.f32 %v2911, %v2912
        %v2914 = vld [vmem:[%s9 + $0x15] sm:$0x1]
        %v2915 = vld [vmem:[%s9 + $0x16] sm:$0x1]
        %v2916 = vsel %vm959, %v2913, 0.0
        %2917 = vadd.xlane.f32.xlu0 %v2916
        %v2918 = vpop.xlane.xlu0 %2917
        %v2919 = vmul.f32 %v2918, %v914
        %v2920 = vsub.f32 %v2913, %v2919
        %v2921 = vmul.f32 %v2920, %v2920
        %v2922 = vsel %vm959, %v2921, 0.0
        %2923 = vadd.xlane.f32.xlu0 %v2922
        %v2924 = vpop.xlane.xlu0 %2923
        %v2925 = vmul.f32 %v2924, %v914
        %v2926 = vadd.f32 %v2925, 1e-12
        %v2927 = vrsqrt.pop %v2926
        %v2928 = vmul.f32 %v2920, %v2927
        %v2929 = vmul.f32 %v2928, %v2914
        %v2930 = vadd.f32 %v2929, %v2915
        %v2931 = vpack.c.bf16 %v2930, %v2930
        %v2932 = vld [vmem:[%s8] sm:$0xf]
        %v2933 = vld [vmem:[%s8 + $0x4] sm:$0xf]
        %v2934 = vld [vmem:[%s8 + $0x8] sm:$0xf]
        %v2935 = vld [vmem:[%s8 + $0xc] sm:$0xf]
        %v2936 = vld [vmem:[%s10 + $0x2] sm:$0x1]
        %v2941 = vunpack.c.l.b16 %v2932
        %v2942 = vunpack.c.l.b16 %v2933
        %v2943 = vunpack.c.l.b16 %v2934
        %v2944 = vunpack.c.l.b16 %v2935
        %v2945 = vpack.c.b16 %v2942, %v2941
        %v2946 = vpack.c.b16 %v2944, %v2943
        %v2950 = vsel %vm959, %v2931, 0
        %2952 = vmatprep.subr.bf16.mxu0 0
        %2953 = vmatpush1.bf16.msra.mxu0 %v2945
        %2954 = vmatprep.subr.bf16.mxu0 0
        %2955 = vmatpush1.bf16.msra.mxu0 %v2946
        %2956 = vmatprep.subr.bf16.mxu0 0
        %2957 = vmatpush1.bf16.msra.mxu0 0
        %2958 = vmatprep.subr.bf16.mxu0 0
        %2959 = vmatpush1.bf16.msra.mxu0 0
        %2960 = vmatprep.subr.bf16.mxu0 0
        %2961 = vmatpush1.bf16.msra.mxu0 0
        %2962 = vmatprep.subr.bf16.mxu0 0
        %2963 = vmatpush1.bf16.msra.mxu0 0
        %2964 = vmatprep.subr.bf16.mxu0 0
        %2965 = vmatpush1.bf16.msra.mxu0 0
        %2966 = vmatprep.subr.bf16.mxu0 0
        %2967 = vmatpush1.bf16.msra.mxu0 0
        %2968 = vmatprep.subr.bf16.mxu0 0
        %2969 = vmatpush1.bf16.msra.mxu0 0
        %2970 = vmatprep.subr.bf16.mxu0 0
        %2971 = vmatpush1.bf16.msra.mxu0 0
        %2972 = vmatprep.subr.bf16.mxu0 0
        %2973 = vmatpush1.bf16.msra.mxu0 0
        %2974 = vmatprep.subr.bf16.mxu0 0
        %2975 = vmatpush1.bf16.msra.mxu0 0
        %2976 = vmatprep.subr.bf16.mxu0 0
        %2977 = vmatpush1.bf16.msra.mxu0 0
        %2978 = vmatprep.subr.bf16.mxu0 0
        %2979 = vmatpush1.bf16.msra.mxu0 0
        %2980 = vmatprep.subr.bf16.mxu0 0
        %2981 = vmatpush1.bf16.msra.mxu0 0
        %2982 = vmatprep.subr.bf16.mxu0 0
        %2983 = vmatpush1.bf16.msra.mxu0 0
        %2984 = vmatprep.mubr.bf16.mxu0 0
        %2985 = vmatmul.mubr.bf16.gmra.mrb[0].mxu0 %v2950
        %v2986 = vpop.f32.mrb[0].mxu0
        %v2987 = vadd.f32 %v2936, %v2986
        %v2988 = vpop.f32.mrb[0].mxu0
        %v2989 = vpop.f32.mrb[0].mxu0
        %v2990 = vpop.f32.mrb[0].mxu0
        %2991 = vdwg.mxu0
        %2992 = vst [vmem:[%s378] sm:$0x1] %v2987
        %s2993 = sand.u32 %s269, 1
        %s2994 = scalar_lea.sflag [#allocation3], %s2993
        %s2995 = sand.u32 %s269, 1
        %s2996 = scalar_lea.vmem [#allocation2], %s2995
        // Predicated region
        $region65: #{other_model_forward.1} parent=63 // pred_check
          %p2997 = pneg %p279
        $region66: #{other_model_forward.1} parent=63 // pred_check_branch
          %2999 = sbr.rel (%p2997) target = $region68
        $region67: #{other_model_forward.1} parent=63 // pred_region
          %s3001 = ssub.s32 16, 16
          %3002 = vsyncadd %s2994, %s3001
          %s3003 = smul.addr %s25, 16
          %s3004 = scalar_lea.hbm %s11, %s3003
          %s3006 = sshll.u32 %s2996, 4
          %s3007 = int_to_ptr.vmem [resolvable:$true] %s3006
          %3009 = dma.vmem_to_hbm [thread:$0]  %s3007, 16, %s3004, %s2994
        $region68: #{other_model_forward.1} parent=63 // pred_fallthru
          _
      $region64: #{other_model_forward.1} parent=5 // pred_fallthru
        _
      %p3010 = scmp.le.s32.totalorder 2, %s20
      // Predicated region
      $region69: #{other_model_forward.1} parent=5 // pred_check
        %p3011 = pneg %p3010
      $region70: #{other_model_forward.1} parent=5 // pred_check_branch
        %3013 = sbr.rel (%p3011) target = $region72
      $region71: #{other_model_forward.1} parent=5 // pred_region
        %s3014 = ssub.s32 %s20, 2
        // Predicated region
        $region73: #{other_model_forward.1} parent=71 // pred_check
          %p3015 = pneg %p285
        $region74: #{other_model_forward.1} parent=71 // pred_check_branch
          %3017 = sbr.rel (%p3015) target = $region76
        $region75: #{other_model_forward.1} parent=71 // pred_region
          %s3018 = sand.u32 %s270, 1
          %s3019 = scalar_lea.sflag [#allocation3], %s3018
          %s3020 = sand.u32 %s270, 1
          %s3021 = scalar_lea.vmem [#allocation2], %s3020
          %3022 = dma.done %s3019, 16
        $region76: #{other_model_forward.1} parent=71 // pred_fallthru
          _
      $region72: #{other_model_forward.1} parent=5 // pred_fallthru
        _
    $region6: #{other_model_forward.1} parent=1 // loop_footer
      %s24 = sadd.s32 1, %s20
    $region7: #{other_model_forward.1} parent=1 // loop_footer_branch
      %19 = sbr.rel target = $region3
    $region8: #{other_model_forward.1} parent=1 // loop_exit
      _
    %3023 = vsyncpa [#allocation3], 1
    %s3024 = scalar_lea.sflag [#allocation3], 1
    %3025 = vsyncpa %s3024, 1

</llo_original>
